<compile_context>
chip_gen: v7x
topology: tpu7x:2x2x1
jax: 0.10.0
libtpu: 0.0.40
codegen_flags: <defaults>
</compile_context>

<pallas_src>
import jax
import jax.numpy as jnp
import numpy as np
from jax.experimental import pallas as pl
from jax.experimental.pallas import tpu as pltpu

# ----------------------------- config (module_cfg) ---------------------------
C_S = 32
C_P = 32
FEAT_DIM = 16            # even (sin/cos halves)
NUM_BINS = 8
NUM_FUNCS = 3            # AngularEncoding default num_funcs
EMBED_DIFFUSE_MASK = True
EMBED_CHAIN = False      # TODO(synk): embed_chain=False; nn.Embedding(2, c_p) path not exercised
ANG_OUT = 4 * (1 + 2 * 2 * NUM_FUNCS)                        # get_out_dim(4) = 52
TOTAL_EDGE_FEATS = (FEAT_DIM * 3 + NUM_BINS + ANG_OUT * 2 * 2
                    + (2 if EMBED_DIFFUSE_MASK else 0))      # 266

MAX_TILE = 128           # (t, t) edge tile; 128 fits v7x's 64 MiB VMEM (v5e/v6e could take 256)
LN_EPS = 1e-5
MAX_LEN = 2056
HIGHEST = jax.lax.Precision.HIGHEST


# ------------------------------- Pallas kernel -------------------------------
def _edge_embedder_kernel(pi_ref, pj_ref, ti_ref, tj_ref, ca_ref, cbt_ref,
                          mask_ref, bins_ref, arel_ref, wdst_ref, b1_ref,
                          w2_ref, b2_ref, w3_ref, b3_ref, gamma_ref, beta_ref,
                          out_ref):
    t_i, cp = pi_ref.shape
    t_j = pj_ref.shape[0]
    m = t_i * t_j
    f32 = jnp.float32

    # --- squared pairwise distances from augmented coordinates (tiny MXU matmul)
    dsq = jnp.dot(ca_ref[...], cbt_ref[...], preferred_element_type=f32)    # (t_i, t_j)
    # Gram form loses the exact self-distance cancellation; force the i==j diagonal
    # to 0 so rounding (~1e-5) cannot flip bin 0 (lower edge 1e-3).
    on_diag = pl.program_id(0) == pl.program_id(1)
    rows = jax.lax.broadcasted_iota(jnp.int32, (t_i, t_j), 0)
    cols = jax.lax.broadcasted_iota(jnp.int32, (t_i, t_j), 1)
    dsq = jnp.where(jnp.logical_and(on_diag, rows == cols), 0.0, dsq)

    # --- distogram one-hot: compare squared distances against squared bin edges
    lo = bins_ref[0, :]
    hi = bins_ref[1, :]
    onehot = jnp.logical_and(dsq[..., None] > lo, dsq[..., None] < hi)      # (t_i, t_j, 8)
    onehot = onehot.astype(f32).reshape(m, NUM_BINS)

    # --- relpos positional code rebuilt from per-node sin/cos (angle addition):
    #     [sin((i-j)th) | cos((i-j)th)] = P_i*Q_j + R_i*S_j  (P,R per-i, Q,S per-j)
    ti = ti_ref[...]
    tj = tj_ref[...]
    pe = (ti[:, None, :FEAT_DIM] * tj[None, :, :FEAT_DIM]
          + ti[:, None, FEAT_DIM:] * tj[None, :, FEAT_DIM:]).reshape(m, FEAT_DIM)

    # --- layer-1 pre-activation: per-node partial projections + edge-only terms
    h = (pi_ref[...][:, None, :] + pj_ref[...][None, :, :]).reshape(m, cp)
    h = h + b1_ref[...]                                              # b1 + b_relpos@W1_rel
    h = h + jnp.dot(pe, arel_ref[...], preferred_element_type=f32)   # relpos rows of W1
    h = h + jnp.dot(onehot, wdst_ref[...], preferred_element_type=f32)  # distogram rows
    h = jnp.maximum(h, 0.0)                                          # edge_embedder[0..1]
    h = jnp.maximum(jnp.dot(h, w2_ref[...], preferred_element_type=f32)
                    + b2_ref[...], 0.0)                              # edge_embedder[2..3]
    h = jnp.dot(h, w3_ref[...], preferred_element_type=f32) + b3_ref[...]  # edge_embedder[4]

    # --- LayerNorm over channels (f32)
    mu = jnp.mean(h, axis=-1, keepdims=True)
    var = jnp.mean(jnp.square(h - mu), axis=-1, keepdims=True)
    y = (h - mu) * jax.lax.rsqrt(var + LN_EPS) * gamma_ref[...] + beta_ref[...]

    # --- pair mask + lane-dense store (last dim t_j*C_P is a multiple of 128)
    y = y.reshape(t_i, t_j, cp) * mask_ref[...][:, :, None]
    out_ref[...] = y.reshape(t_i, t_j * cp)


def _tile_and_pad(n):
    t = min(MAX_TILE, ((n + 7) // 8) * 8)
    n_pad = ((n + t - 1) // t) * t
    return n_pad, t


def _edge_embedder_pallas(proj_i, proj_j, trig_i, trig_j, ca, cbt, p_mask,
                          bins, a_rel, w_dst, b1c, w2, b2, w3, b3, gamma, beta,
                          tile):
    B, n_pad, _ = proj_i.shape
    t = tile
    nt = n_pad // t
    grid = (nt, nt, B)   # (i, j, b): megacore splits i; b innermost, "arbitrary"

    def _fixed(arr):
        zeros = (0,) * arr.ndim
        return pl.BlockSpec(arr.shape, lambda i, j, b: zeros)

    in_specs = [
        pl.BlockSpec((None, t, C_P), lambda i, j, b: (b, i, 0)),       # proj_i
        pl.BlockSpec((None, t, C_P), lambda i, j, b: (b, j, 0)),       # proj_j
        pl.BlockSpec((t, 2 * FEAT_DIM), lambda i, j, b: (i, 0)),       # trig (i rows)
        pl.BlockSpec((t, 2 * FEAT_DIM), lambda i, j, b: (j, 0)),       # trig (j rows)
        pl.BlockSpec((None, t, 8), lambda i, j, b: (b, i, 0)),         # aug coords, i rows
        pl.BlockSpec((None, 8, t), lambda i, j, b: (b, 0, j)),         # aug coords^T, j cols
        pl.BlockSpec((None, t, t), lambda i, j, b: (b, i, j)),         # p_mask (f32)
        _fixed(bins), _fixed(a_rel), _fixed(w_dst), _fixed(b1c),
        _fixed(w2), _fixed(b2), _fixed(w3), _fixed(b3),
        _fixed(gamma), _fixed(beta),
    ]
    # lane-dense output: last dim t*C_P (>=512, multiple of 128) -> unmasked stores
    out_spec = pl.BlockSpec((None, t, t * C_P), lambda i, j, b: (b, i, j))

    edges = B * n_pad * n_pad
    cost = pl.CostEstimate(
        flops=2 * edges * (2 * FEAT_DIM * C_P + NUM_BINS * C_P + 2 * C_P * C_P + 8)
              + 20 * edges * C_P,
        transcendentals=edges,
        bytes_accessed=(proj_i.size + proj_j.size + trig_i.size + trig_j.size
                        + ca.size + cbt.size + p_mask.size + edges * C_P) * 4,
    )

    return pl.pallas_call(
        _edge_embedder_kernel,
        out_shape=jax.ShapeDtypeStruct((B, n_pad, n_pad * C_P), jnp.float32),
        grid=grid,
        in_specs=in_specs,
        out_specs=out_spec,
        compiler_params=pltpu.CompilerParams(
            dimension_semantics=("parallel", "parallel", "arbitrary"),
            vmem_limit_bytes=48 * 1024 * 1024),
        cost_estimate=cost,
    )(proj_i, proj_j, trig_i, trig_j, ca, cbt, p_mask,
      bins, a_rel, w_dst, b1c, w2, b2, w3, b3, gamma, beta)


# ------------------------------ JAX glue helpers ------------------------------
def angular_encoding(x, num_funcs=NUM_FUNCS):
    # x: (..., d)  ->  (..., d * (1 + 4*num_funcs))
    k = jnp.arange(1, num_funcs + 1, dtype=jnp.float32)
    freqs = jnp.concatenate([k, 1.0 / k])
    xe = x[..., None].astype(jnp.float32)
    code = jnp.concatenate([xe, jnp.sin(xe * freqs), jnp.cos(xe * freqs)], axis=-1)
    return code.reshape(x.shape[:-1] + (-1,))


def get_index_embedding(indices, embed_size, max_len=MAX_LEN):
    k = jnp.arange(embed_size // 2, dtype=jnp.float32)
    denom = max_len ** (2.0 * k / embed_size)
    ang = indices[..., None] * jnp.pi / denom
    return jnp.concatenate([jnp.sin(ang), jnp.cos(ang)], axis=-1)


def calc_distogram(pos, min_bin, max_bin, num_bins):
    dists = jnp.linalg.norm(
        pos[:, :, None, :] - pos[:, None, :, :], axis=-1)[..., None]
    lower = jnp.linspace(min_bin, max_bin, num_bins, dtype=jnp.float32)
    upper = jnp.concatenate([lower[1:], jnp.array([1e8], dtype=jnp.float32)])
    return ((dists > lower) & (dists < upper)).astype(jnp.float32)


def cross_concat(feats_1d, num_batch, num_res):
    a = jnp.tile(feats_1d[:, :, None, :], (1, 1, num_res, 1))
    b = jnp.tile(feats_1d[:, None, :, :], (1, num_res, 1, 1))
    return jnp.concatenate([a, b], axis=-1).astype(jnp.float32).reshape(
        num_batch, num_res, num_res, -1)


# -------------------------- parameters (deterministic) ------------------------
def linear_params(key, fan_in, fan_out):
    k = 1.0 / jnp.sqrt(jnp.float32(fan_in))
    kw, kb = jax.random.split(key)
    w = jax.random.uniform(kw, (fan_in, fan_out), jnp.float32, -k, k)
    b = jax.random.uniform(kb, (1, fan_out), jnp.float32, -k, k)
    return w, b


def init_params(seed=42):
    keys = jax.random.split(jax.random.PRNGKey(seed), 5)
    w_sp, b_sp = linear_params(keys[0], C_S, FEAT_DIM)            # linear_s_p
    w_rp, b_rp = linear_params(keys[1], FEAT_DIM, FEAT_DIM)       # linear_relpos
    w1, b1 = linear_params(keys[2], TOTAL_EDGE_FEATS, C_P)        # edge_embedder[0]
    w2, b2 = linear_params(keys[3], C_P, C_P)                     # edge_embedder[2]
    w3, b3 = linear_params(keys[4], C_P, C_P)                     # edge_embedder[4]
    gamma = jnp.ones((1, C_P), jnp.float32)                       # LayerNorm weight
    beta = jnp.zeros((1, C_P), jnp.float32)                       # LayerNorm bias
    return dict(w_sp=w_sp, b_sp=b_sp, w_rp=w_rp, b_rp=b_rp,
                w1=w1, b1=b1, w2=w2, b2=b2, w3=w3, b3=b3,
                gamma=gamma, beta=beta)


# ------------------ W1 row split + per-node / per-edge precompute -------------
def _split_w1(w1):
    # feature order: [cross_node(32) | relpos(16) | dist(8) | tor(104) | sc_tor(104) | diffuse(2)]
    fd, nb, ang = FEAT_DIM, NUM_BINS, ANG_OUT
    o = 0
    w_cn_i, w_cn_j = w1[o:o + fd], w1[o + fd:o + 2 * fd]; o += 2 * fd
    w_rel = w1[o:o + fd]; o += fd
    w_dst = w1[o:o + nb]; o += nb
    w_tor_i, w_tor_j = w1[o:o + ang], w1[o + ang:o + 2 * ang]; o += 2 * ang
    w_sc_i, w_sc_j = w1[o:o + ang], w1[o + ang:o + 2 * ang]; o += 2 * ang
    w_dm_i, w_dm_j = w1[o:o + 1], w1[o + 1:o + 2]; o += 2
    assert o == TOTAL_EDGE_FEATS
    w1_i = jnp.concatenate([w_cn_i, w_tor_i, w_sc_i, w_dm_i], axis=0)   # (121, C_P)
    w1_j = jnp.concatenate([w_cn_j, w_tor_j, w_sc_j, w_dm_j], axis=0)   # (121, C_P)
    return w1_i, w1_j, w_rel, w_dst


def _precompute_edge_inputs(params, s, t, tor, sc_tor, diffuse_mask, n_pad):
    B, N, _ = s.shape
    w1_i, w1_j, w_rel, w_dst = _split_w1(params["w1"])

    # per-node features: [linear_s_p(s) | tor_emb | sc_tor_emb | diffuse_mask] = 121 wide
    p_i = jnp.dot(s, params["w_sp"], precision=HIGHEST) + params["b_sp"]
    node = jnp.concatenate(
        [p_i, angular_encoding(tor), angular_encoding(sc_tor),
         diffuse_mask[..., None].astype(jnp.float32)], axis=-1)
    proj_i = jnp.dot(node, w1_i, precision=HIGHEST)                     # (B, N, C_P)
    proj_j = jnp.dot(node, w1_j, precision=HIGHEST)                     # (B, N, C_P)

    # relpos: fold linear_relpos into the W1 relpos rows; factor the positional
    # code over (i, j) with the angle-addition identity -> per-node trig features
    a_rel = jnp.dot(params["w_rp"], w_rel, precision=HIGHEST)           # (16, C_P)
    b1c = params["b1"] + jnp.dot(params["b_rp"], w_rel, precision=HIGHEST)
    k = jnp.arange(FEAT_DIM // 2, dtype=jnp.float32)
    theta = jnp.pi / (MAX_LEN ** (2.0 * k / FEAT_DIM))                  # (8,)
    ang = jnp.arange(n_pad, dtype=jnp.float32)[:, None] * theta[None, :]
    si, ci = jnp.sin(ang), jnp.cos(ang)
    trig_i = jnp.concatenate([si, ci, ci, si], axis=-1)                 # P=[si|ci], R=[ci|si]
    trig_j = jnp.concatenate([ci, ci, -si, si], axis=-1)                # Q=[cj|cj], S=[-sj|sj]

    # augmented coordinates: dist^2(i, j) = ca[i] . cb[j]
    sq = jnp.sum(t * t, axis=-1, keepdims=True)
    one = jnp.ones_like(sq)
    zero3 = jnp.zeros_like(t)
    ca = jnp.concatenate([t, sq, one, zero3], axis=-1)                  # (B, N, 8)
    cb = jnp.concatenate([-2.0 * t, one, sq, zero3], axis=-1)           # (B, N, 8)
    cbt = jnp.transpose(cb, (0, 2, 1))                                  # (B, 8, N)

    # squared distogram bin edges
    lower = np.linspace(1e-3, 20.0, NUM_BINS, dtype=np.float32)
    upper = np.concatenate([lower[1:], np.array([1e8], np.float32)])
    bins = jnp.asarray(np.stack([lower * lower, upper * upper]))        # (2, 8)

    return proj_i, proj_j, trig_i, trig_j, ca, cbt, bins, a_rel, w_dst, b1c


# ------------------------------ full forward pass ------------------------------
def full_edge_feature_net(params, s, t, tor, sc_tor, p_mask, diffuse_mask, chain_idx):
    del chain_idx  # TODO(synk): embed_chain=False -> rel_chain_emb path not implemented
    B, N, _ = s.shape
    n_pad, tile = _tile_and_pad(N)
    (proj_i, proj_j, trig_i, trig_j, ca, cbt, bins, a_rel, w_dst, b1c) = \
        _precompute_edge_inputs(params, s, t, tor, sc_tor, diffuse_mask, n_pad)
    pmask = p_mask.astype(jnp.float32)
    pad = n_pad - N
    if pad:
        proj_i = jnp.pad(proj_i, ((0, 0), (0, pad), (0, 0)))
        proj_j = jnp.pad(proj_j, ((0, 0), (0, pad), (0, 0)))
        ca = jnp.pad(ca, ((0, 0), (0, pad), (0, 0)))
        cbt = jnp.pad(cbt, ((0, 0), (0, 0), (0, pad)))
        pmask = jnp.pad(pmask, ((0, 0), (0, pad), (0, pad)))
    out = _edge_embedder_pallas(proj_i, proj_j, trig_i, trig_j, ca, cbt, pmask,
                                bins, a_rel, w_dst, b1c,
                                params["w2"], params["b2"], params["w3"],
                                params["b3"], params["gamma"], params["beta"],
                                tile)
    out = out.reshape(B, n_pad, n_pad, C_P)      # free row-major reshape
    return out[:, :N, :N, :]


def full_edge_feature_net_ref(params, s, t, tor, sc_tor, p_mask, diffuse_mask, chain_idx):
    # pure-JAX reference with the module's original (concatenate-then-MLP) structure
    del chain_idx
    B, N, _ = s.shape
    p_i = jnp.dot(s, params["w_sp"], precision=HIGHEST) + params["b_sp"]
    cross_node = cross_concat(p_i, B, N)
    cross_tor = cross_concat(angular_encoding(tor), B, N)
    cross_sc = cross_concat(angular_encoding(sc_tor), B, N)
    r = jnp.tile(jnp.arange(N, dtype=jnp.float32)[None], (B, 1))
    pos_emb = get_index_embedding(r[:, :, None] - r[:, None, :], FEAT_DIM, max_len=MAX_LEN)
    relpos = jnp.dot(pos_emb, params["w_rp"], precision=HIGHEST) + params["b_rp"]
    dist = calc_distogram(t, 1e-3, 20.0, NUM_BINS)
    feats = [cross_node, relpos, dist, cross_tor, cross_sc]
    if EMBED_DIFFUSE_MASK:
        feats.append(cross_concat(diffuse_mask[..., None].astype(jnp.float32), B, N))
    x = jnp.concatenate(feats, axis=-1)
    assert x.shape[-1] == TOTAL_EDGE_FEATS
    h = jnp.maximum(jnp.dot(x, params["w1"], precision=HIGHEST) + params["b1"], 0.0)
    h = jnp.maximum(jnp.dot(h, params["w2"], precision=HIGHEST) + params["b2"], 0.0)
    h = jnp.dot(h, params["w3"], precision=HIGHEST) + params["b3"]
    mu = h.mean(-1, keepdims=True)
    var = ((h - mu) ** 2).mean(-1, keepdims=True)
    y = (h - mu) * jax.lax.rsqrt(var + LN_EPS) * params["gamma"] + params["beta"]
    return y * p_mask[..., None]


# ------------------------------------ main ------------------------------------
if __name__ == "__main__":
    B, N = 2, 16
    key = jax.random.PRNGKey(0)
    ks = jax.random.split(key, 7)
    s = jax.random.normal(ks[0], (B, N, C_S), jnp.float32)
    t = jax.random.normal(ks[1], (B, N, 3), jnp.float32) * 5.0
    tor = jax.random.uniform(ks[2], (B, N, 4), jnp.float32, -jnp.pi, jnp.pi)
    sc_tor = jax.random.uniform(ks[3], (B, N, 4), jnp.float32, -jnp.pi, jnp.pi)
    p_mask = (jax.random.uniform(ks[4], (B, N, N)) > 0.2).astype(jnp.float32)
    diffuse_mask = (jax.random.uniform(ks[5], (B, N)) > 0.5).astype(jnp.float32)
    chain_idx = jax.random.randint(ks[6], (B, N), 0, 2)

    params = init_params(seed=42)

    fwd = jax.jit(full_edge_feature_net)
    out = jax.block_until_ready(
        fwd(params, s, t, tor, sc_tor, p_mask, diffuse_mask, chain_idx))
    assert out.shape == (B, N, N, C_P), out.shape

    ref = jax.block_until_ready(
        full_edge_feature_net_ref(params, s, t, tor, sc_tor, p_mask,
                                  diffuse_mask, chain_idx))
    max_err = float(jnp.max(jnp.abs(out - ref)))
    assert jnp.allclose(out, ref, atol=2e-3, rtol=2e-3), max_err

    print("KERNEL_OK")
</pallas_src>

<mosaic_0001>
module attributes {stable_mosaic.version = 11 : i64} {
  func.func @_edge_embedder_kernel(%arg0: i32, %arg1: i32, %arg2: i32, %arg3: memref<1x16x32xf32, #tpu.memory_space<vmem>>, %arg4: memref<1x16x32xf32, #tpu.memory_space<vmem>>, %arg5: memref<16x32xf32, #tpu.memory_space<vmem>>, %arg6: memref<16x32xf32, #tpu.memory_space<vmem>>, %arg7: memref<1x16x8xf32, #tpu.memory_space<vmem>>, %arg8: memref<1x8x16xf32, #tpu.memory_space<vmem>>, %arg9: memref<1x16x16xf32, #tpu.memory_space<vmem>>, %arg10: memref<2x8xf32, #tpu.memory_space<vmem>>, %arg11: memref<16x32xf32, #tpu.memory_space<vmem>>, %arg12: memref<8x32xf32, #tpu.memory_space<vmem>>, %arg13: memref<1x32xf32, #tpu.memory_space<vmem>>, %arg14: memref<32x32xf32, #tpu.memory_space<vmem>>, %arg15: memref<1x32xf32, #tpu.memory_space<vmem>>, %arg16: memref<32x32xf32, #tpu.memory_space<vmem>>, %arg17: memref<1x32xf32, #tpu.memory_space<vmem>>, %arg18: memref<1x32xf32, #tpu.memory_space<vmem>>, %arg19: memref<1x32xf32, #tpu.memory_space<vmem>>, %arg20: memref<1x16x512xf32, #tpu.memory_space<vmem>>) attributes {dimension_semantics = [#tpu.dimension_semantics<parallel>, #tpu.dimension_semantics<parallel>, #tpu.dimension_semantics<arbitrary>], iteration_bounds = array<i64: 1, 1, 2>, scalar_prefetch = 0 : i64, scratch_operands = 0 : i64, tpu.core_type = #tpu.core_type<tc>, window_params = [{transform_indices = @transform_0, window_bounds = array<i64: 1, 16, 32>}, {transform_indices = @transform_1, window_bounds = array<i64: 1, 16, 32>}, {transform_indices = @transform_2, window_bounds = array<i64: 16, 32>}, {transform_indices = @transform_3, window_bounds = array<i64: 16, 32>}, {transform_indices = @transform_4, window_bounds = array<i64: 1, 16, 8>}, {transform_indices = @transform_5, window_bounds = array<i64: 1, 8, 16>}, {transform_indices = @transform_6, window_bounds = array<i64: 1, 16, 16>}, {pipeline_mode = #tpu.pipeline_mode<synchronous>, transform_indices = @transform_7, window_bounds = array<i64: 2, 8>}, {pipeline_mode = #tpu.pipeline_mode<synchronous>, transform_indices = @transform_8, window_bounds = array<i64: 16, 32>}, {pipeline_mode = #tpu.pipeline_mode<synchronous>, transform_indices = @transform_9, window_bounds = array<i64: 8, 32>}, {pipeline_mode = #tpu.pipeline_mode<synchronous>, transform_indices = @transform_10, window_bounds = array<i64: 1, 32>}, {pipeline_mode = #tpu.pipeline_mode<synchronous>, transform_indices = @transform_11, window_bounds = array<i64: 32, 32>}, {pipeline_mode = #tpu.pipeline_mode<synchronous>, transform_indices = @transform_12, window_bounds = array<i64: 1, 32>}, {pipeline_mode = #tpu.pipeline_mode<synchronous>, transform_indices = @transform_13, window_bounds = array<i64: 32, 32>}, {pipeline_mode = #tpu.pipeline_mode<synchronous>, transform_indices = @transform_14, window_bounds = array<i64: 1, 32>}, {pipeline_mode = #tpu.pipeline_mode<synchronous>, transform_indices = @transform_15, window_bounds = array<i64: 1, 32>}, {pipeline_mode = #tpu.pipeline_mode<synchronous>, transform_indices = @transform_16, window_bounds = array<i64: 1, 32>}, {transform_indices = @transform_17, window_bounds = array<i64: 1, 16, 512>}]} {
    %c0 = arith.constant 0 : index
    %c0_0 = arith.constant 0 : index
    %c0_1 = arith.constant 0 : index
    %0 = vector.load %arg7[%c0, %c0_0, %c0_1] : memref<1x16x8xf32, #tpu.memory_space<vmem>>, vector<1x16x8xf32>
    %1 = vector.shape_cast %0 : vector<1x16x8xf32> to vector<16x8xf32>
    %c0_2 = arith.constant 0 : index
    %c0_3 = arith.constant 0 : index
    %c0_4 = arith.constant 0 : index
    %2 = vector.load %arg8[%c0_2, %c0_3, %c0_4] : memref<1x8x16xf32, #tpu.memory_space<vmem>>, vector<1x8x16xf32>
    %3 = vector.shape_cast %2 : vector<1x8x16xf32> to vector<8x16xf32>
    %cst = arith.constant dense<0.000000e+00> : vector<16x16xf32>
    %4 = tpu.matmul %1, %3, %cst {dimension_numbers = #tpu.dot_dimension_numbers<[1], [0], [0], [1], [0, 0, 1, 1], [], []>} : vector<16x8xf32>, vector<8x16xf32>, vector<16x16xf32> -> vector<16x16xf32>
    %5 = arith.cmpi eq, %arg0, %arg1 : i32
    %6 = tpu.iota {dimensions = array<i32: 0>} : vector<16x16xi32>
    %7 = tpu.iota {dimensions = array<i32: 1>} : vector<16x16xi32>
    %8 = arith.cmpi eq, %6, %7 : vector<16x16xi32>
    %9 = vector.broadcast %5 : i1 to vector<16x16xi1>
    %10 = arith.andi %9, %8 : vector<16x16xi1>
    %cst_5 = arith.constant 0.000000e+00 : f32
    %11 = vector.broadcast %cst_5 : f32 to vector<16x16xf32>
    %12 = arith.select %10, %11, %4 : vector<16x16xi1>, vector<16x16xf32>
    %c0_6 = arith.constant 0 : index
    %c0_7 = arith.constant 0 : index
    %13 = vector.load %arg10[%c0_6, %c0_7] : memref<2x8xf32, #tpu.memory_space<vmem>>, vector<1x8xf32>
    %14 = vector.shape_cast %13 : vector<1x8xf32> to vector<8xf32>
    %c1 = arith.constant 1 : index
    %c0_8 = arith.constant 0 : index
    %15 = vector.load %arg10[%c1, %c0_8] : memref<2x8xf32, #tpu.memory_space<vmem>>, vector<1x8xf32>
    %16 = vector.shape_cast %15 : vector<1x8xf32> to vector<8xf32>
    %17 = vector.shape_cast %12 : vector<16x16xf32> to vector<16x16x1xf32>
    %18 = vector.shape_cast %14 : vector<8xf32> to vector<1x1x8xf32>
    %19 = vector.broadcast %17 : vector<16x16x1xf32> to vector<16x16x8xf32>
    %20 = vector.broadcast %18 : vector<1x1x8xf32> to vector<16x16x8xf32>
    %21 = arith.cmpf ogt, %19, %20 : vector<16x16x8xf32>
    %22 = vector.shape_cast %12 : vector<16x16xf32> to vector<16x16x1xf32>
    %23 = vector.shape_cast %16 : vector<8xf32> to vector<1x1x8xf32>
    %24 = vector.broadcast %22 : vector<16x16x1xf32> to vector<16x16x8xf32>
    %25 = vector.broadcast %23 : vector<1x1x8xf32> to vector<16x16x8xf32>
    %26 = arith.cmpf olt, %24, %25 : vector<16x16x8xf32>
    %27 = arith.andi %21, %26 : vector<16x16x8xi1>
    %28 = arith.extui %27 : vector<16x16x8xi1> to vector<16x16x8xi32>
    %29 = arith.sitofp %28 : vector<16x16x8xi32> to vector<16x16x8xf32>
    %30 = vector.shape_cast %29 : vector<16x16x8xf32> to vector<256x8xf32>
    %c0_9 = arith.constant 0 : index
    %c0_10 = arith.constant 0 : index
    %31 = vector.load %arg5[%c0_9, %c0_10] : memref<16x32xf32, #tpu.memory_space<vmem>>, vector<16x32xf32>
    %c0_11 = arith.constant 0 : index
    %c0_12 = arith.constant 0 : index
    %32 = vector.load %arg6[%c0_11, %c0_12] : memref<16x32xf32, #tpu.memory_space<vmem>>, vector<16x32xf32>
    %33 = vector.extract_strided_slice %31 {offsets = [0, 0], sizes = [16, 16], strides = [1, 1]} : vector<16x32xf32> to vector<16x16xf32>
    %34 = vector.shape_cast %33 : vector<16x16xf32> to vector<16x1x16xf32>
    %35 = vector.extract_strided_slice %32 {offsets = [0, 0], sizes = [16, 16], strides = [1, 1]} : vector<16x32xf32> to vector<16x16xf32>
    %36 = vector.shape_cast %35 : vector<16x16xf32> to vector<1x16x16xf32>
    %37 = vector.broadcast %34 : vector<16x1x16xf32> to vector<16x16x16xf32>
    %38 = vector.broadcast %36 : vector<1x16x16xf32> to vector<16x16x16xf32>
    %39 = arith.mulf %37, %38 : vector<16x16x16xf32>
    %40 = vector.extract_strided_slice %31 {offsets = [0, 16], sizes = [16, 16], strides = [1, 1]} : vector<16x32xf32> to vector<16x16xf32>
    %41 = vector.shape_cast %40 : vector<16x16xf32> to vector<16x1x16xf32>
    %42 = vector.extract_strided_slice %32 {offsets = [0, 16], sizes = [16, 16], strides = [1, 1]} : vector<16x32xf32> to vector<16x16xf32>
    %43 = vector.shape_cast %42 : vector<16x16xf32> to vector<1x16x16xf32>
    %44 = vector.broadcast %41 : vector<16x1x16xf32> to vector<16x16x16xf32>
    %45 = vector.broadcast %43 : vector<1x16x16xf32> to vector<16x16x16xf32>
    %46 = arith.mulf %44, %45 : vector<16x16x16xf32>
    %47 = arith.addf %39, %46 : vector<16x16x16xf32>
    %48 = vector.shape_cast %47 : vector<16x16x16xf32> to vector<256x16xf32>
    %c0_13 = arith.constant 0 : index
    %c0_14 = arith.constant 0 : index
    %c0_15 = arith.constant 0 : index
    %49 = vector.load %arg3[%c0_13, %c0_14, %c0_15] : memref<1x16x32xf32, #tpu.memory_space<vmem>>, vector<1x16x32xf32>
    %50 = vector.shape_cast %49 : vector<1x16x32xf32> to vector<16x32xf32>
    %51 = vector.shape_cast %50 : vector<16x32xf32> to vector<16x1x32xf32>
    %c0_16 = arith.constant 0 : index
    %c0_17 = arith.constant 0 : index
    %c0_18 = arith.constant 0 : index
    %52 = vector.load %arg4[%c0_16, %c0_17, %c0_18] : memref<1x16x32xf32, #tpu.memory_space<vmem>>, vector<1x16x32xf32>
    %53 = vector.shape_cast %52 : vector<1x16x32xf32> to vector<16x32xf32>
    %54 = vector.shape_cast %53 : vector<16x32xf32> to vector<1x16x32xf32>
    %55 = vector.broadcast %51 : vector<16x1x32xf32> to vector<16x16x32xf32>
    %56 = vector.broadcast %54 : vector<1x16x32xf32> to vector<16x16x32xf32>
    %57 = arith.addf %55, %56 : vector<16x16x32xf32>
    %58 = vector.shape_cast %57 : vector<16x16x32xf32> to vector<256x32xf32>
    %c0_19 = arith.constant 0 : index
    %c0_20 = arith.constant 0 : index
    %59 = vector.load %arg13[%c0_19, %c0_20] : memref<1x32xf32, #tpu.memory_space<vmem>>, vector<1x32xf32>
    %60 = vector.broadcast %59 : vector<1x32xf32> to vector<256x32xf32>
    %61 = arith.addf %58, %60 : vector<256x32xf32>
    %c0_21 = arith.constant 0 : index
    %c0_22 = arith.constant 0 : index
    %62 = vector.load %arg11[%c0_21, %c0_22] : memref<16x32xf32, #tpu.memory_space<vmem>>, vector<16x32xf32>
    %cst_23 = arith.constant dense<0.000000e+00> : vector<256x32xf32>
    %63 = tpu.matmul %48, %62, %cst_23 {dimension_numbers = #tpu.dot_dimension_numbers<[1], [0], [0], [1], [0, 0, 1, 1], [], []>} : vector<256x16xf32>, vector<16x32xf32>, vector<256x32xf32> -> vector<256x32xf32>
    %64 = arith.addf %61, %63 : vector<256x32xf32>
    %c0_24 = arith.constant 0 : index
    %c0_25 = arith.constant 0 : index
    %65 = vector.load %arg12[%c0_24, %c0_25] : memref<8x32xf32, #tpu.memory_space<vmem>>, vector<8x32xf32>
    %cst_26 = arith.constant dense<0.000000e+00> : vector<256x32xf32>
    %66 = tpu.matmul %30, %65, %cst_26 {dimension_numbers = #tpu.dot_dimension_numbers<[1], [0], [0], [1], [0, 0, 1, 1], [], []>} : vector<256x8xf32>, vector<8x32xf32>, vector<256x32xf32> -> vector<256x32xf32>
    %67 = arith.addf %64, %66 : vector<256x32xf32>
    %cst_27 = arith.constant 0.000000e+00 : f32
    %68 = vector.broadcast %cst_27 : f32 to vector<256x32xf32>
    %69 = arith.maximumf %67, %68 : vector<256x32xf32>
    %c0_28 = arith.constant 0 : index
    %c0_29 = arith.constant 0 : index
    %70 = vector.load %arg14[%c0_28, %c0_29] : memref<32x32xf32, #tpu.memory_space<vmem>>, vector<32x32xf32>
    %cst_30 = arith.constant dense<0.000000e+00> : vector<256x32xf32>
    %71 = tpu.matmul %69, %70, %cst_30 {dimension_numbers = #tpu.dot_dimension_numbers<[1], [0], [0], [1], [0, 0, 1, 1], [], []>} : vector<256x32xf32>, vector<32x32xf32>, vector<256x32xf32> -> vector<256x32xf32>
    %c0_31 = arith.constant 0 : index
    %c0_32 = arith.constant 0 : index
    %72 = vector.load %arg15[%c0_31, %c0_32] : memref<1x32xf32, #tpu.memory_space<vmem>>, vector<1x32xf32>
    %73 = vector.broadcast %72 : vector<1x32xf32> to vector<256x32xf32>
    %74 = arith.addf %71, %73 : vector<256x32xf32>
    %cst_33 = arith.constant 0.000000e+00 : f32
    %75 = vector.broadcast %cst_33 : f32 to vector<256x32xf32>
    %76 = arith.maximumf %74, %75 : vector<256x32xf32>
    %c0_34 = arith.constant 0 : index
    %c0_35 = arith.constant 0 : index
    %77 = vector.load %arg16[%c0_34, %c0_35] : memref<32x32xf32, #tpu.memory_space<vmem>>, vector<32x32xf32>
    %cst_36 = arith.constant dense<0.000000e+00> : vector<256x32xf32>
    %78 = tpu.matmul %76, %77, %cst_36 {dimension_numbers = #tpu.dot_dimension_numbers<[1], [0], [0], [1], [0, 0, 1, 1], [], []>} : vector<256x32xf32>, vector<32x32xf32>, vector<256x32xf32> -> vector<256x32xf32>
    %c0_37 = arith.constant 0 : index
    %c0_38 = arith.constant 0 : index
    %79 = vector.load %arg17[%c0_37, %c0_38] : memref<1x32xf32, #tpu.memory_space<vmem>>, vector<1x32xf32>
    %80 = vector.broadcast %79 : vector<1x32xf32> to vector<256x32xf32>
    %81 = arith.addf %78, %80 : vector<256x32xf32>
    %cst_39 = arith.constant dense<0.000000e+00> : vector<256xf32>
    %82 = vector.multi_reduction <add>, %81, %cst_39 [1] : vector<256x32xf32> to vector<256xf32>
    %83 = vector.shape_cast %82 : vector<256xf32> to vector<256x1xf32>
    %cst_40 = arith.constant 3.200000e+01 : f32
    %84 = vector.broadcast %cst_40 : f32 to vector<256x1xf32>
    %85 = arith.divf %83, %84 : vector<256x1xf32>
    %86 = vector.broadcast %85 : vector<256x1xf32> to vector<256x32xf32>
    %87 = arith.subf %81, %86 : vector<256x32xf32>
    %88 = arith.mulf %87, %87 : vector<256x32xf32>
    %cst_41 = arith.constant dense<0.000000e+00> : vector<256xf32>
    %89 = vector.multi_reduction <add>, %88, %cst_41 [1] : vector<256x32xf32> to vector<256xf32>
    %90 = vector.shape_cast %89 : vector<256xf32> to vector<256x1xf32>
    %cst_42 = arith.constant 3.200000e+01 : f32
    %91 = vector.broadcast %cst_42 : f32 to vector<256x1xf32>
    %92 = arith.divf %90, %91 : vector<256x1xf32>
    %93 = vector.broadcast %85 : vector<256x1xf32> to vector<256x32xf32>
    %94 = arith.subf %81, %93 : vector<256x32xf32>
    %cst_43 = arith.constant 9.99999974E-6 : f32
    %95 = vector.broadcast %cst_43 : f32 to vector<256x1xf32>
    %96 = arith.addf %92, %95 : vector<256x1xf32>
    %97 = math.rsqrt %96 : vector<256x1xf32>
    %98 = vector.broadcast %97 : vector<256x1xf32> to vector<256x32xf32>
    %99 = arith.mulf %94, %98 : vector<256x32xf32>
    %c0_44 = arith.constant 0 : index
    %c0_45 = arith.constant 0 : index
    %100 = vector.load %arg18[%c0_44, %c0_45] : memref<1x32xf32, #tpu.memory_space<vmem>>, vector<1x32xf32>
    %101 = vector.broadcast %100 : vector<1x32xf32> to vector<256x32xf32>
    %102 = arith.mulf %99, %101 : vector<256x32xf32>
    %c0_46 = arith.constant 0 : index
    %c0_47 = arith.constant 0 : index
    %103 = vector.load %arg19[%c0_46, %c0_47] : memref<1x32xf32, #tpu.memory_space<vmem>>, vector<1x32xf32>
    %104 = vector.broadcast %103 : vector<1x32xf32> to vector<256x32xf32>
    %105 = arith.addf %102, %104 : vector<256x32xf32>
    %106 = vector.shape_cast %105 : vector<256x32xf32> to vector<16x16x32xf32>
    %c0_48 = arith.constant 0 : index
    %c0_49 = arith.constant 0 : index
    %c0_50 = arith.constant 0 : index
    %107 = vector.load %arg9[%c0_48, %c0_49, %c0_50] : memref<1x16x16xf32, #tpu.memory_space<vmem>>, vector<1x16x16xf32>
    %108 = vector.shape_cast %107 : vector<1x16x16xf32> to vector<16x16xf32>
    %109 = vector.shape_cast %108 : vector<16x16xf32> to vector<16x16x1xf32>
    %110 = vector.broadcast %109 : vector<16x16x1xf32> to vector<16x16x32xf32>
    %111 = arith.mulf %106, %110 : vector<16x16x32xf32>
    %112 = vector.shape_cast %111 : vector<16x16x32xf32> to vector<16x512xf32>
    %c0_51 = arith.constant 0 : index
    %c0_52 = arith.constant 0 : index
    %c0_53 = arith.constant 0 : index
    %113 = vector.load %arg20[%c0_51, %c0_52, %c0_53] : memref<1x16x512xf32, #tpu.memory_space<vmem>>, vector<1x16x512xf32>
    %114 = vector.shape_cast %113 : vector<1x16x512xf32> to vector<16x512xf32>
    %115 = vector.shape_cast %112 : vector<16x512xf32> to vector<1x16x512xf32>
    tpu.vector_store %arg20[%c0_51, %c0_52, %c0_53], %115 {strides = array<i32>} : memref<1x16x512xf32, #tpu.memory_space<vmem>>, vector<1x16x512xf32>,
    return
  }
  func.func @transform_0(%arg0: i32, %arg1: i32, %arg2: i32) -> (i32, i32, i32) {
    %c0_i32 = arith.constant 0 : i32
    %c0_i32_0 = arith.constant 0 : i32
    return %arg2, %arg0, %c0_i32 : i32, i32, i32
  }
  func.func @transform_1(%arg0: i32, %arg1: i32, %arg2: i32) -> (i32, i32, i32) {
    %c0_i32 = arith.constant 0 : i32
    %c0_i32_0 = arith.constant 0 : i32
    return %arg2, %arg1, %c0_i32 : i32, i32, i32
  }
  func.func @transform_2(%arg0: i32, %arg1: i32, %arg2: i32) -> (i32, i32) {
    %c0_i32 = arith.constant 0 : i32
    %c0_i32_0 = arith.constant 0 : i32
    return %arg0, %c0_i32 : i32, i32
  }
  func.func @transform_3(%arg0: i32, %arg1: i32, %arg2: i32) -> (i32, i32) {
    %c0_i32 = arith.constant 0 : i32
    %c0_i32_0 = arith.constant 0 : i32
    return %arg1, %c0_i32 : i32, i32
  }
  func.func @transform_4(%arg0: i32, %arg1: i32, %arg2: i32) -> (i32, i32, i32) {
    %c0_i32 = arith.constant 0 : i32
    %c0_i32_0 = arith.constant 0 : i32
    return %arg2, %arg0, %c0_i32 : i32, i32, i32
  }
  func.func @transform_5(%arg0: i32, %arg1: i32, %arg2: i32) -> (i32, i32, i32) {
    %c0_i32 = arith.constant 0 : i32
    %c0_i32_0 = arith.constant 0 : i32
    return %arg2, %c0_i32, %arg1 : i32, i32, i32
  }
  func.func @transform_6(%arg0: i32, %arg1: i32, %arg2: i32) -> (i32, i32, i32) {
    %c0_i32 = arith.constant 0 : i32
    return %arg2, %arg0, %arg1 : i32, i32, i32
  }
  func.func @transform_7(%arg0: i32, %arg1: i32, %arg2: i32) -> (i32, i32) {
    %c0_i32 = arith.constant 0 : i32
    %c0_i32_0 = arith.constant 0 : i32
    %c0_i32_1 = arith.constant 0 : i32
    return %c0_i32, %c0_i32_0 : i32, i32
  }
  func.func @transform_8(%arg0: i32, %arg1: i32, %arg2: i32) -> (i32, i32) {
    %c0_i32 = arith.constant 0 : i32
    %c0_i32_0 = arith.constant 0 : i32
    %c0_i32_1 = arith.constant 0 : i32
    return %c0_i32, %c0_i32_0 : i32, i32
  }
  func.func @transform_9(%arg0: i32, %arg1: i32, %arg2: i32) -> (i32, i32) {
    %c0_i32 = arith.constant 0 : i32
    %c0_i32_0 = arith.constant 0 : i32
    %c0_i32_1 = arith.constant 0 : i32
    return %c0_i32, %c0_i32_0 : i32, i32
  }
  func.func @transform_10(%arg0: i32, %arg1: i32, %arg2: i32) -> (i32, i32) {
    %c0_i32 = arith.constant 0 : i32
    %c0_i32_0 = arith.constant 0 : i32
    %c0_i32_1 = arith.constant 0 : i32
    return %c0_i32, %c0_i32_0 : i32, i32
  }
  func.func @transform_11(%arg0: i32, %arg1: i32, %arg2: i32) -> (i32, i32) {
    %c0_i32 = arith.constant 0 : i32
    %c0_i32_0 = arith.constant 0 : i32
    %c0_i32_1 = arith.constant 0 : i32
    return %c0_i32, %c0_i32_0 : i32, i32
  }
  func.func @transform_12(%arg0: i32, %arg1: i32, %arg2: i32) -> (i32, i32) {
    %c0_i32 = arith.constant 0 : i32
    %c0_i32_0 = arith.constant 0 : i32
    %c0_i32_1 = arith.constant 0 : i32
    return %c0_i32, %c0_i32_0 : i32, i32
  }
  func.func @transform_13(%arg0: i32, %arg1: i32, %arg2: i32) -> (i32, i32) {
    %c0_i32 = arith.constant 0 : i32
    %c0_i32_0 = arith.constant 0 : i32
    %c0_i32_1 = arith.constant 0 : i32
    return %c0_i32, %c0_i32_0 : i32, i32
  }
  func.func @transform_14(%arg0: i32, %arg1: i32, %arg2: i32) -> (i32, i32) {
    %c0_i32 = arith.constant 0 : i32
    %c0_i32_0 = arith.constant 0 : i32
    %c0_i32_1 = arith.constant 0 : i32
    return %c0_i32, %c0_i32_0 : i32, i32
  }
  func.func @transform_15(%arg0: i32, %arg1: i32, %arg2: i32) -> (i32, i32) {
    %c0_i32 = arith.constant 0 : i32
    %c0_i32_0 = arith.constant 0 : i32
    %c0_i32_1 = arith.constant 0 : i32
    return %c0_i32, %c0_i32_0 : i32, i32
  }
  func.func @transform_16(%arg0: i32, %arg1: i32, %arg2: i32) -> (i32, i32) {
    %c0_i32 = arith.constant 0 : i32
    %c0_i32_0 = arith.constant 0 : i32
    %c0_i32_1 = arith.constant 0 : i32
    return %c0_i32, %c0_i32_0 : i32, i32
  }
  func.func @transform_17(%arg0: i32, %arg1: i32, %arg2: i32) -> (i32, i32, i32) {
    %c0_i32 = arith.constant 0 : i32
    return %arg2, %arg0, %arg1 : i32, i32, i32
  }
}

</mosaic_0001>

<llo_original>
// kernel: full_edge_feature_net.1
$region0: #{full_edge_feature_net.1}
  #allocation0 [shape = 'u32[]', space=smem, size = 0x4, offset = 0x4, fixed_abs, tag = 'smem constant byte address 0x4 - core index']
  #allocation1 [shape = 'u32[144,128]{1,0:T(1,128)}', space=vmem, size = 0x12000, scoped, tag = 'internal scratch']
  %s0 = inlined_call_operand.vmem [shape: f32[2,16,32], index: 0, kind: input, shape index: {}]
  %s1 = inlined_call_operand.vmem [shape: f32[2,16,32], index: 1, kind: input, shape index: {}]
  %s2 = inlined_call_operand.vmem [shape: f32[16,32], index: 2, kind: input, shape index: {}]
  %s3 = inlined_call_operand.vmem [shape: f32[16,32], index: 3, kind: input, shape index: {}]
  %s4 = inlined_call_operand.vmem [shape: f32[2,16,8], index: 4, kind: input, shape index: {}]
  %s5 = inlined_call_operand.vmem [shape: f32[2,8,16], index: 5, kind: input, shape index: {}]
  %s6 = inlined_call_operand.vmem [shape: f32[2,16,16], index: 6, kind: input, shape index: {}]
  %s7 = inlined_call_operand.vmem [shape: f32[2,8], index: 7, kind: input, shape index: {}]
  %s8 = inlined_call_operand.vmem [shape: f32[16,32], index: 8, kind: input, shape index: {}]
  %s9 = inlined_call_operand.vmem [shape: f32[8,32], index: 9, kind: input, shape index: {}]
  %s10 = inlined_call_operand.vmem [shape: f32[1,32], index: 10, kind: input, shape index: {}]
  %s11 = inlined_call_operand.vmem [shape: f32[32,32], index: 11, kind: input, shape index: {}]
  %s12 = inlined_call_operand.vmem [shape: f32[1,32], index: 12, kind: input, shape index: {}]
  %s13 = inlined_call_operand.vmem [shape: f32[32,32], index: 13, kind: input, shape index: {}]
  %s14 = inlined_call_operand.vmem [shape: f32[1,32], index: 14, kind: input, shape index: {}]
  %s15 = inlined_call_operand.vmem [shape: f32[1,32], index: 15, kind: input, shape index: {}]
  %s16 = inlined_call_operand.vmem [shape: f32[1,32], index: 16, kind: input, shape index: {}]
  %s17 = inlined_call_operand.vmem [shape: f32[2,16,512], index: 17, kind: output, shape index: {}]
  %s18 = sld [smem:[#allocation0]]
  $region101: #{full_edge_feature_net.1} parent=0
    _
  %s20 = ssub.s32 1, %s18
  %s21 = scalar_select 0, %s20, %s18
  loop: start=0, step=1, limit=4
  $region2: #{full_edge_feature_net.1} parent=0 // loop_pre_header
    _
  $region3: #{full_edge_feature_net.1} parent=0 // loop_header
    %s23 = sphi 0, %s27
    %p24 = scmp.ge.s32.totalorder %s23, 4
    %s30 = sphi 0, %s49
    %s31 = sphi 0, %s45
    %s32 = sphi 0, %s41
    %s33 = sphi 0, %s30
    %s34 = sphi 0, %s31
    %s35 = sphi 0, %s32
    %s36 = sphi 0, %s33
    %s37 = sphi 0, %s34
    %s38 = sphi 0, %s35
    %s54 = sphi 0, %s56
    %s57 = sphi 0, %s54
    %s58 = sphi 0, %s57
    %s74 = sphi 0, %s58
    %s82 = sphi 0, %s84
    %s85 = sphi 0, %s82
    %s86 = sphi 0, %s85
    %s102 = sphi 0, %s86
    %s108 = sphi 0, %s110
    %s111 = sphi 0, %s108
    %s112 = sphi 0, %s111
    %s128 = sphi 0, %s112
    %s134 = sphi 0, %s136
    %s137 = sphi 0, %s134
    %s138 = sphi 0, %s137
    %s154 = sphi 0, %s138
    %s162 = sphi 0, %s164
    %s165 = sphi 0, %s162
    %s166 = sphi 0, %s165
    %s182 = sphi 0, %s166
    %s190 = sphi 0, %s192
    %s193 = sphi 0, %s190
    %s194 = sphi 0, %s193
    %s210 = sphi 0, %s194
    %s220 = sphi 0, %s222
    %s223 = sphi 0, %s220
    %s224 = sphi 0, %s223
    %s240 = sphi 0, %s224
    %s244 = sphi 0, %s244
    %s246 = sphi 0, %s244
    %s247 = sphi 0, %s246
    %s261 = sphi 0, %s247
    %s265 = sphi 0, %s265
    %s267 = sphi 0, %s265
    %s268 = sphi 0, %s267
    %s282 = sphi 0, %s268
    %s286 = sphi 0, %s286
    %s288 = sphi 0, %s286
    %s289 = sphi 0, %s288
    %s303 = sphi 0, %s289
    %s307 = sphi 0, %s307
    %s309 = sphi 0, %s307
    %s310 = sphi 0, %s309
    %s324 = sphi 0, %s310
    %s328 = sphi 0, %s328
    %s330 = sphi 0, %s328
    %s331 = sphi 0, %s330
    %s345 = sphi 0, %s331
    %s349 = sphi 0, %s349
    %s351 = sphi 0, %s349
    %s352 = sphi 0, %s351
    %s366 = sphi 0, %s352
    %s370 = sphi 0, %s370
    %s372 = sphi 0, %s370
    %s373 = sphi 0, %s372
    %s387 = sphi 0, %s373
    %s391 = sphi 0, %s391
    %s393 = sphi 0, %s391
    %s394 = sphi 0, %s393
    %s408 = sphi 0, %s394
    %s412 = sphi 0, %s412
    %s414 = sphi 0, %s412
    %s415 = sphi 0, %s414
    %s429 = sphi 0, %s415
    %s433 = sphi 0, %s433
    %s435 = sphi 0, %s433
    %s436 = sphi 0, %s435
    %s450 = sphi 0, %s436
    %s460 = sphi 0, %s462
    %s463 = sphi 0, %s460
    %s464 = sphi 0, %s463
    %s480 = sphi 0, %s464
  $region4: #{full_edge_feature_net.1} parent=0 // loop_header_branch
    %26 = sbr.rel (%p24) target = $region8
  $region5: #{full_edge_feature_net.1} parent=0 // loop_body
    %s28 = ssub.s32 %s23, 1
    %s29 = ssub.s32 %s23, 2
    %s39 = sadd.s32 1, %s32
    %p40 = scmp.ge.s32.totalorder %s39, 2
    %s41 = scalar_select %p40, 0, %s39
    %s42 = sadd.s32 1, %s31
    %s43 = scalar_select %p40, %s42, %s31
    %p44 = scmp.ge.s32.totalorder %s43, 1
    %s45 = scalar_select %p44, 0, %s43
    %s46 = sadd.s32 1, %s30
    %s47 = scalar_select %p44, %s46, %s30
    %p48 = scmp.ge.s32.totalorder %s47, 1
    %s49 = scalar_select %p48, 0, %s47
    %s50 = ssub.s32 %s32, %s41
    %s51 = ssub.s32 %s30, %s49
    %s52 = sor.u32 %s50, %s51
    %p53 = scmp.eq.s32.totalorder %s52, 0
    %s55 = sadd.s32 %s54, 1
    %s56 = scalar_select %p53, %s54, %s55
    %p59 = pneg %p53
    %p60 = scmp.eq.s32.totalorder %s23, 1
    %p61 = por %p59, %p60
    %p62 = scmp.ne.s32.totalorder %s54, %s57
    %p63 = scmp.eq.s32.totalorder %s23, 0
    %p64 = por %p62, %p63
    %p65 = scmp.ne.s32.totalorder %s54, %s57
    %p66 = scmp.eq.s32.totalorder %s28, 1
    %p67 = por %p65, %p66
    %p68 = scmp.ne.s32.totalorder %s57, %s58
    %p69 = scmp.eq.s32.totalorder %s28, 0
    %p70 = por %p68, %p69
    %p71 = scmp.ne.s32.totalorder %s57, %s58
    %p72 = scmp.eq.s32.totalorder %s29, 1
    %p73 = por %p71, %p72
    %p75 = scmp.ne.s32.totalorder %s58, %s74
    %p76 = scmp.eq.s32.totalorder %s29, 0
    %p77 = por %p75, %p76
    %s78 = ssub.s32 %s32, %s41
    %s79 = ssub.s32 %s31, %s45
    %s80 = sor.u32 %s78, %s79
    %p81 = scmp.eq.s32.totalorder %s80, 0
    %s83 = sadd.s32 %s82, 1
    %s84 = scalar_select %p81, %s82, %s83
    %p87 = pneg %p81
    %p88 = scmp.eq.s32.totalorder %s23, 1
    %p89 = por %p87, %p88
    %p90 = scmp.ne.s32.totalorder %s82, %s85
    %p91 = scmp.eq.s32.totalorder %s23, 0
    %p92 = por %p90, %p91
    %p93 = scmp.ne.s32.totalorder %s82, %s85
    %p94 = scmp.eq.s32.totalorder %s28, 1
    %p95 = por %p93, %p94
    %p96 = scmp.ne.s32.totalorder %s85, %s86
    %p97 = scmp.eq.s32.totalorder %s28, 0
    %p98 = por %p96, %p97
    %p99 = scmp.ne.s32.totalorder %s85, %s86
    %p100 = scmp.eq.s32.totalorder %s29, 1
    %p101 = por %p99, %p100
    %p103 = scmp.ne.s32.totalorder %s86, %s102
    %p104 = scmp.eq.s32.totalorder %s29, 0
    %p105 = por %p103, %p104
    %s106 = ssub.s32 %s30, %s49
    %p107 = scmp.eq.s32.totalorder %s106, 0
    %s109 = sadd.s32 %s108, 1
    %s110 = scalar_select %p107, %s108, %s109
    %p113 = pneg %p107
    %p114 = scmp.eq.s32.totalorder %s23, 1
    %p115 = por %p113, %p114
    %p116 = scmp.ne.s32.totalorder %s108, %s111
    %p117 = scmp.eq.s32.totalorder %s23, 0
    %p118 = por %p116, %p117
    %p119 = scmp.ne.s32.totalorder %s108, %s111
    %p120 = scmp.eq.s32.totalorder %s28, 1
    %p121 = por %p119, %p120
    %p122 = scmp.ne.s32.totalorder %s111, %s112
    %p123 = scmp.eq.s32.totalorder %s28, 0
    %p124 = por %p122, %p123
    %p125 = scmp.ne.s32.totalorder %s111, %s112
    %p126 = scmp.eq.s32.totalorder %s29, 1
    %p127 = por %p125, %p126
    %p129 = scmp.ne.s32.totalorder %s112, %s128
    %p130 = scmp.eq.s32.totalorder %s29, 0
    %p131 = por %p129, %p130
    %s132 = ssub.s32 %s31, %s45
    %p133 = scmp.eq.s32.totalorder %s132, 0
    %s135 = sadd.s32 %s134, 1
    %s136 = scalar_select %p133, %s134, %s135
    %p139 = pneg %p133
    %p140 = scmp.eq.s32.totalorder %s23, 1
    %p141 = por %p139, %p140
    %p142 = scmp.ne.s32.totalorder %s134, %s137
    %p143 = scmp.eq.s32.totalorder %s23, 0
    %p144 = por %p142, %p143
    %p145 = scmp.ne.s32.totalorder %s134, %s137
    %p146 = scmp.eq.s32.totalorder %s28, 1
    %p147 = por %p145, %p146
    %p148 = scmp.ne.s32.totalorder %s137, %s138
    %p149 = scmp.eq.s32.totalorder %s28, 0
    %p150 = por %p148, %p149
    %p151 = scmp.ne.s32.totalorder %s137, %s138
    %p152 = scmp.eq.s32.totalorder %s29, 1
    %p153 = por %p151, %p152
    %p155 = scmp.ne.s32.totalorder %s138, %s154
    %p156 = scmp.eq.s32.totalorder %s29, 0
    %p157 = por %p155, %p156
    %s158 = ssub.s32 %s32, %s41
    %s159 = ssub.s32 %s30, %s49
    %s160 = sor.u32 %s158, %s159
    %p161 = scmp.eq.s32.totalorder %s160, 0
    %s163 = sadd.s32 %s162, 1
    %s164 = scalar_select %p161, %s162, %s163
    %p167 = pneg %p161
    %p168 = scmp.eq.s32.totalorder %s23, 1
    %p169 = por %p167, %p168
    %p170 = scmp.ne.s32.totalorder %s162, %s165
    %p171 = scmp.eq.s32.totalorder %s23, 0
    %p172 = por %p170, %p171
    %p173 = scmp.ne.s32.totalorder %s162, %s165
    %p174 = scmp.eq.s32.totalorder %s28, 1
    %p175 = por %p173, %p174
    %p176 = scmp.ne.s32.totalorder %s165, %s166
    %p177 = scmp.eq.s32.totalorder %s28, 0
    %p178 = por %p176, %p177
    %p179 = scmp.ne.s32.totalorder %s165, %s166
    %p180 = scmp.eq.s32.totalorder %s29, 1
    %p181 = por %p179, %p180
    %p183 = scmp.ne.s32.totalorder %s166, %s182
    %p184 = scmp.eq.s32.totalorder %s29, 0
    %p185 = por %p183, %p184
    %s186 = ssub.s32 %s32, %s41
    %s187 = ssub.s32 %s31, %s45
    %s188 = sor.u32 %s186, %s187
    %p189 = scmp.eq.s32.totalorder %s188, 0
    %s191 = sadd.s32 %s190, 1
    %s192 = scalar_select %p189, %s190, %s191
    %p195 = pneg %p189
    %p196 = scmp.eq.s32.totalorder %s23, 1
    %p197 = por %p195, %p196
    %p198 = scmp.ne.s32.totalorder %s190, %s193
    %p199 = scmp.eq.s32.totalorder %s23, 0
    %p200 = por %p198, %p199
    %p201 = scmp.ne.s32.totalorder %s190, %s193
    %p202 = scmp.eq.s32.totalorder %s28, 1
    %p203 = por %p201, %p202
    %p204 = scmp.ne.s32.totalorder %s193, %s194
    %p205 = scmp.eq.s32.totalorder %s28, 0
    %p206 = por %p204, %p205
    %p207 = scmp.ne.s32.totalorder %s193, %s194
    %p208 = scmp.eq.s32.totalorder %s29, 1
    %p209 = por %p207, %p208
    %p211 = scmp.ne.s32.totalorder %s194, %s210
    %p212 = scmp.eq.s32.totalorder %s29, 0
    %p213 = por %p211, %p212
    %s214 = ssub.s32 %s32, %s41
    %s215 = ssub.s32 %s30, %s49
    %s216 = sor.u32 %s214, %s215
    %s217 = ssub.s32 %s31, %s45
    %s218 = sor.u32 %s216, %s217
    %p219 = scmp.eq.s32.totalorder %s218, 0
    %s221 = sadd.s32 %s220, 1
    %s222 = scalar_select %p219, %s220, %s221
    %p225 = pneg %p219
    %p226 = scmp.eq.s32.totalorder %s23, 1
    %p227 = por %p225, %p226
    %p228 = scmp.ne.s32.totalorder %s220, %s223
    %p229 = scmp.eq.s32.totalorder %s23, 0
    %p230 = por %p228, %p229
    %p231 = scmp.ne.s32.totalorder %s220, %s223
    %p232 = scmp.eq.s32.totalorder %s28, 1
    %p233 = por %p231, %p232
    %p234 = scmp.ne.s32.totalorder %s223, %s224
    %p235 = scmp.eq.s32.totalorder %s28, 0
    %p236 = por %p234, %p235
    %p237 = scmp.ne.s32.totalorder %s223, %s224
    %p238 = scmp.eq.s32.totalorder %s29, 1
    %p239 = por %p237, %p238
    %p241 = scmp.ne.s32.totalorder %s224, %s240
    %p242 = scmp.eq.s32.totalorder %s29, 0
    %p243 = por %p241, %p242
    %s245 = sadd.s32 %s244, 1
    %p248 = scmp.eq.s32.totalorder %s23, 1
    %p249 = scmp.ne.s32.totalorder %s244, %s246
    %p250 = scmp.eq.s32.totalorder %s23, 0
    %p251 = por %p249, %p250
    %p252 = scmp.ne.s32.totalorder %s244, %s246
    %p253 = scmp.eq.s32.totalorder %s28, 1
    %p254 = por %p252, %p253
    %p255 = scmp.ne.s32.totalorder %s246, %s247
    %p256 = scmp.eq.s32.totalorder %s28, 0
    %p257 = por %p255, %p256
    %p258 = scmp.ne.s32.totalorder %s246, %s247
    %p259 = scmp.eq.s32.totalorder %s29, 1
    %p260 = por %p258, %p259
    %p262 = scmp.ne.s32.totalorder %s247, %s261
    %p263 = scmp.eq.s32.totalorder %s29, 0
    %p264 = por %p262, %p263
    %s266 = sadd.s32 %s265, 1
    %p269 = scmp.eq.s32.totalorder %s23, 1
    %p270 = scmp.ne.s32.totalorder %s265, %s267
    %p271 = scmp.eq.s32.totalorder %s23, 0
    %p272 = por %p270, %p271
    %p273 = scmp.ne.s32.totalorder %s265, %s267
    %p274 = scmp.eq.s32.totalorder %s28, 1
    %p275 = por %p273, %p274
    %p276 = scmp.ne.s32.totalorder %s267, %s268
    %p277 = scmp.eq.s32.totalorder %s28, 0
    %p278 = por %p276, %p277
    %p279 = scmp.ne.s32.totalorder %s267, %s268
    %p280 = scmp.eq.s32.totalorder %s29, 1
    %p281 = por %p279, %p280
    %p283 = scmp.ne.s32.totalorder %s268, %s282
    %p284 = scmp.eq.s32.totalorder %s29, 0
    %p285 = por %p283, %p284
    %s287 = sadd.s32 %s286, 1
    %p290 = scmp.eq.s32.totalorder %s23, 1
    %p291 = scmp.ne.s32.totalorder %s286, %s288
    %p292 = scmp.eq.s32.totalorder %s23, 0
    %p293 = por %p291, %p292
    %p294 = scmp.ne.s32.totalorder %s286, %s288
    %p295 = scmp.eq.s32.totalorder %s28, 1
    %p296 = por %p294, %p295
    %p297 = scmp.ne.s32.totalorder %s288, %s289
    %p298 = scmp.eq.s32.totalorder %s28, 0
    %p299 = por %p297, %p298
    %p300 = scmp.ne.s32.totalorder %s288, %s289
    %p301 = scmp.eq.s32.totalorder %s29, 1
    %p302 = por %p300, %p301
    %p304 = scmp.ne.s32.totalorder %s289, %s303
    %p305 = scmp.eq.s32.totalorder %s29, 0
    %p306 = por %p304, %p305
    %s308 = sadd.s32 %s307, 1
    %p311 = scmp.eq.s32.totalorder %s23, 1
    %p312 = scmp.ne.s32.totalorder %s307, %s309
    %p313 = scmp.eq.s32.totalorder %s23, 0
    %p314 = por %p312, %p313
    %p315 = scmp.ne.s32.totalorder %s307, %s309
    %p316 = scmp.eq.s32.totalorder %s28, 1
    %p317 = por %p315, %p316
    %p318 = scmp.ne.s32.totalorder %s309, %s310
    %p319 = scmp.eq.s32.totalorder %s28, 0
    %p320 = por %p318, %p319
    %p321 = scmp.ne.s32.totalorder %s309, %s310
    %p322 = scmp.eq.s32.totalorder %s29, 1
    %p323 = por %p321, %p322
    %p325 = scmp.ne.s32.totalorder %s310, %s324
    %p326 = scmp.eq.s32.totalorder %s29, 0
    %p327 = por %p325, %p326
    %s329 = sadd.s32 %s328, 1
    %p332 = scmp.eq.s32.totalorder %s23, 1
    %p333 = scmp.ne.s32.totalorder %s328, %s330
    %p334 = scmp.eq.s32.totalorder %s23, 0
    %p335 = por %p333, %p334
    %p336 = scmp.ne.s32.totalorder %s328, %s330
    %p337 = scmp.eq.s32.totalorder %s28, 1
    %p338 = por %p336, %p337
    %p339 = scmp.ne.s32.totalorder %s330, %s331
    %p340 = scmp.eq.s32.totalorder %s28, 0
    %p341 = por %p339, %p340
    %p342 = scmp.ne.s32.totalorder %s330, %s331
    %p343 = scmp.eq.s32.totalorder %s29, 1
    %p344 = por %p342, %p343
    %p346 = scmp.ne.s32.totalorder %s331, %s345
    %p347 = scmp.eq.s32.totalorder %s29, 0
    %p348 = por %p346, %p347
    %s350 = sadd.s32 %s349, 1
    %p353 = scmp.eq.s32.totalorder %s23, 1
    %p354 = scmp.ne.s32.totalorder %s349, %s351
    %p355 = scmp.eq.s32.totalorder %s23, 0
    %p356 = por %p354, %p355
    %p357 = scmp.ne.s32.totalorder %s349, %s351
    %p358 = scmp.eq.s32.totalorder %s28, 1
    %p359 = por %p357, %p358
    %p360 = scmp.ne.s32.totalorder %s351, %s352
    %p361 = scmp.eq.s32.totalorder %s28, 0
    %p362 = por %p360, %p361
    %p363 = scmp.ne.s32.totalorder %s351, %s352
    %p364 = scmp.eq.s32.totalorder %s29, 1
    %p365 = por %p363, %p364
    %p367 = scmp.ne.s32.totalorder %s352, %s366
    %p368 = scmp.eq.s32.totalorder %s29, 0
    %p369 = por %p367, %p368
    %s371 = sadd.s32 %s370, 1
    %p374 = scmp.eq.s32.totalorder %s23, 1
    %p375 = scmp.ne.s32.totalorder %s370, %s372
    %p376 = scmp.eq.s32.totalorder %s23, 0
    %p377 = por %p375, %p376
    %p378 = scmp.ne.s32.totalorder %s370, %s372
    %p379 = scmp.eq.s32.totalorder %s28, 1
    %p380 = por %p378, %p379
    %p381 = scmp.ne.s32.totalorder %s372, %s373
    %p382 = scmp.eq.s32.totalorder %s28, 0
    %p383 = por %p381, %p382
    %p384 = scmp.ne.s32.totalorder %s372, %s373
    %p385 = scmp.eq.s32.totalorder %s29, 1
    %p386 = por %p384, %p385
    %p388 = scmp.ne.s32.totalorder %s373, %s387
    %p389 = scmp.eq.s32.totalorder %s29, 0
    %p390 = por %p388, %p389
    %s392 = sadd.s32 %s391, 1
    %p395 = scmp.eq.s32.totalorder %s23, 1
    %p396 = scmp.ne.s32.totalorder %s391, %s393
    %p397 = scmp.eq.s32.totalorder %s23, 0
    %p398 = por %p396, %p397
    %p399 = scmp.ne.s32.totalorder %s391, %s393
    %p400 = scmp.eq.s32.totalorder %s28, 1
    %p401 = por %p399, %p400
    %p402 = scmp.ne.s32.totalorder %s393, %s394
    %p403 = scmp.eq.s32.totalorder %s28, 0
    %p404 = por %p402, %p403
    %p405 = scmp.ne.s32.totalorder %s393, %s394
    %p406 = scmp.eq.s32.totalorder %s29, 1
    %p407 = por %p405, %p406
    %p409 = scmp.ne.s32.totalorder %s394, %s408
    %p410 = scmp.eq.s32.totalorder %s29, 0
    %p411 = por %p409, %p410
    %s413 = sadd.s32 %s412, 1
    %p416 = scmp.eq.s32.totalorder %s23, 1
    %p417 = scmp.ne.s32.totalorder %s412, %s414
    %p418 = scmp.eq.s32.totalorder %s23, 0
    %p419 = por %p417, %p418
    %p420 = scmp.ne.s32.totalorder %s412, %s414
    %p421 = scmp.eq.s32.totalorder %s28, 1
    %p422 = por %p420, %p421
    %p423 = scmp.ne.s32.totalorder %s414, %s415
    %p424 = scmp.eq.s32.totalorder %s28, 0
    %p425 = por %p423, %p424
    %p426 = scmp.ne.s32.totalorder %s414, %s415
    %p427 = scmp.eq.s32.totalorder %s29, 1
    %p428 = por %p426, %p427
    %p430 = scmp.ne.s32.totalorder %s415, %s429
    %p431 = scmp.eq.s32.totalorder %s29, 0
    %p432 = por %p430, %p431
    %s434 = sadd.s32 %s433, 1
    %p437 = scmp.eq.s32.totalorder %s23, 1
    %p438 = scmp.ne.s32.totalorder %s433, %s435
    %p439 = scmp.eq.s32.totalorder %s23, 0
    %p440 = por %p438, %p439
    %p441 = scmp.ne.s32.totalorder %s433, %s435
    %p442 = scmp.eq.s32.totalorder %s28, 1
    %p443 = por %p441, %p442
    %p444 = scmp.ne.s32.totalorder %s435, %s436
    %p445 = scmp.eq.s32.totalorder %s28, 0
    %p446 = por %p444, %p445
    %p447 = scmp.ne.s32.totalorder %s435, %s436
    %p448 = scmp.eq.s32.totalorder %s29, 1
    %p449 = por %p447, %p448
    %p451 = scmp.ne.s32.totalorder %s436, %s450
    %p452 = scmp.eq.s32.totalorder %s29, 0
    %p453 = por %p451, %p452
    %s454 = ssub.s32 %s32, %s41
    %s455 = ssub.s32 %s30, %s49
    %s456 = sor.u32 %s454, %s455
    %s457 = ssub.s32 %s31, %s45
    %s458 = sor.u32 %s456, %s457
    %p459 = scmp.eq.s32.totalorder %s458, 0
    %s461 = sadd.s32 %s460, 1
    %s462 = scalar_select %p459, %s460, %s461
    %p465 = pneg %p459
    %p466 = scmp.eq.s32.totalorder %s23, 1
    %p467 = por %p465, %p466
    %p468 = scmp.ne.s32.totalorder %s460, %s463
    %p469 = scmp.eq.s32.totalorder %s23, 0
    %p470 = por %p468, %p469
    %p471 = scmp.ne.s32.totalorder %s460, %s463
    %p472 = scmp.eq.s32.totalorder %s28, 1
    %p473 = por %p471, %p472
    %p474 = scmp.ne.s32.totalorder %s463, %s464
    %p475 = scmp.eq.s32.totalorder %s28, 0
    %p476 = por %p474, %p475
    %p477 = scmp.ne.s32.totalorder %s463, %s464
    %p478 = scmp.eq.s32.totalorder %s29, 1
    %p479 = por %p477, %p478
    %p481 = scmp.ne.s32.totalorder %s464, %s480
    %p482 = scmp.eq.s32.totalorder %s29, 0
    %p483 = por %p481, %p482
    %p484 = scmp.le.s32.totalorder 1, %s23
    %p485 = scmp.lt.s32.totalorder %s23, 3
    %p486 = pnand %p484, %p485
    %p487 = pneg %p486
    // Predicated region
    $region9: #{full_edge_feature_net.1} parent=5 // pred_check
      _
    $region10: #{full_edge_feature_net.1} parent=5 // pred_check_branch
      %489 = sbr.rel (%p486) target = $region12
    $region11: #{full_edge_feature_net.1} parent=5 // pred_region
      %s490 = ssub.s32 %s23, 1
      // Predicated region
      $region13: #{full_edge_feature_net.1} parent=11 // pred_check
        %p491 = pneg %p124
      $region14: #{full_edge_feature_net.1} parent=11 // pred_check_branch
        %493 = sbr.rel (%p491) target = $region16
      $region15: #{full_edge_feature_net.1} parent=11 // pred_region
        %s494 = smul.u32 2, %s33
        %p495 = scmp.lt.s32.totalorder %s494, 1
        %s496 = scalar_select %p495, %s494, 1
        %s497 = smul.addr %s496, 8
        %s498 = scalar_lea.vmem %s2, %s497
        %s499 = smul.u32 2, %s33
      $region16: #{full_edge_feature_net.1} parent=11 // pred_fallthru
        _
      // Predicated region
      $region17: #{full_edge_feature_net.1} parent=11 // pred_check
        %p500 = pneg %p150
      $region18: #{full_edge_feature_net.1} parent=11 // pred_check_branch
        %502 = sbr.rel (%p500) target = $region20
      $region19: #{full_edge_feature_net.1} parent=11 // pred_region
        %s503 = smul.u32 2, %s34
        %p504 = scmp.lt.s32.totalorder %s503, 1
        %s505 = scalar_select %p504, %s503, 1
        %s506 = smul.addr %s505, 8
        %s507 = scalar_lea.vmem %s3, %s506
        %s508 = smul.u32 2, %s34
      $region20: #{full_edge_feature_net.1} parent=11 // pred_fallthru
        _
      // Predicated region
      $region21: #{full_edge_feature_net.1} parent=11 // pred_check
        %p509 = pneg %p257
      $region22: #{full_edge_feature_net.1} parent=11 // pred_check_branch
        %511 = sbr.rel (%p509) target = $region24
      $region23: #{full_edge_feature_net.1} parent=11 // pred_region
        _
      $region24: #{full_edge_feature_net.1} parent=11 // pred_fallthru
        _
      // Predicated region
      $region25: #{full_edge_feature_net.1} parent=11 // pred_check
        %p512 = pneg %p278
      $region26: #{full_edge_feature_net.1} parent=11 // pred_check_branch
        %514 = sbr.rel (%p512) target = $region28
      $region27: #{full_edge_feature_net.1} parent=11 // pred_region
        _
      $region28: #{full_edge_feature_net.1} parent=11 // pred_fallthru
        _
      // Predicated region
      $region29: #{full_edge_feature_net.1} parent=11 // pred_check
        %p515 = pneg %p299
      $region30: #{full_edge_feature_net.1} parent=11 // pred_check_branch
        %517 = sbr.rel (%p515) target = $region32
      $region31: #{full_edge_feature_net.1} parent=11 // pred_region
        _
      $region32: #{full_edge_feature_net.1} parent=11 // pred_fallthru
        _
      // Predicated region
      $region33: #{full_edge_feature_net.1} parent=11 // pred_check
        %p518 = pneg %p320
      $region34: #{full_edge_feature_net.1} parent=11 // pred_check_branch
        %520 = sbr.rel (%p518) target = $region36
      $region35: #{full_edge_feature_net.1} parent=11 // pred_region
        _
      $region36: #{full_edge_feature_net.1} parent=11 // pred_fallthru
        _
      // Predicated region
      $region37: #{full_edge_feature_net.1} parent=11 // pred_check
        %p521 = pneg %p341
      $region38: #{full_edge_feature_net.1} parent=11 // pred_check_branch
        %523 = sbr.rel (%p521) target = $region40
      $region39: #{full_edge_feature_net.1} parent=11 // pred_region
        _
      $region40: #{full_edge_feature_net.1} parent=11 // pred_fallthru
        _
      // Predicated region
      $region41: #{full_edge_feature_net.1} parent=11 // pred_check
        %p524 = pneg %p362
      $region42: #{full_edge_feature_net.1} parent=11 // pred_check_branch
        %526 = sbr.rel (%p524) target = $region44
      $region43: #{full_edge_feature_net.1} parent=11 // pred_region
        _
      $region44: #{full_edge_feature_net.1} parent=11 // pred_fallthru
        _
      // Predicated region
      $region45: #{full_edge_feature_net.1} parent=11 // pred_check
        %p527 = pneg %p383
      $region46: #{full_edge_feature_net.1} parent=11 // pred_check_branch
        %529 = sbr.rel (%p527) target = $region48
      $region47: #{full_edge_feature_net.1} parent=11 // pred_region
        _
      $region48: #{full_edge_feature_net.1} parent=11 // pred_fallthru
        _
      // Predicated region
      $region49: #{full_edge_feature_net.1} parent=11 // pred_check
        %p530 = pneg %p404
      $region50: #{full_edge_feature_net.1} parent=11 // pred_check_branch
        %532 = sbr.rel (%p530) target = $region52
      $region51: #{full_edge_feature_net.1} parent=11 // pred_region
        _
      $region52: #{full_edge_feature_net.1} parent=11 // pred_fallthru
        _
      // Predicated region
      $region53: #{full_edge_feature_net.1} parent=11 // pred_check
        %p533 = pneg %p425
      $region54: #{full_edge_feature_net.1} parent=11 // pred_check_branch
        %535 = sbr.rel (%p533) target = $region56
      $region55: #{full_edge_feature_net.1} parent=11 // pred_region
        _
      $region56: #{full_edge_feature_net.1} parent=11 // pred_fallthru
        _
      // Predicated region
      $region57: #{full_edge_feature_net.1} parent=11 // pred_check
        %p536 = pneg %p446
      $region58: #{full_edge_feature_net.1} parent=11 // pred_check_branch
        %538 = sbr.rel (%p536) target = $region60
      $region59: #{full_edge_feature_net.1} parent=11 // pred_region
        _
      $region60: #{full_edge_feature_net.1} parent=11 // pred_fallthru
        _
    $region12: #{full_edge_feature_net.1} parent=5 // pred_fallthru
      _
    %p539 = scmp.lt.s32.totalorder %s23, 2
    // Predicated region
    $region61: #{full_edge_feature_net.1} parent=5 // pred_check
      %p540 = pneg %p539
    $region62: #{full_edge_feature_net.1} parent=5 // pred_check_branch
      %542 = sbr.rel (%p540) target = $region64
    $region63: #{full_edge_feature_net.1} parent=5 // pred_region
      // Predicated region
      $region65: #{full_edge_feature_net.1} parent=63 // pred_check
        %p543 = pneg %p64
      $region66: #{full_edge_feature_net.1} parent=63 // pred_check_branch
        %545 = sbr.rel (%p543) target = $region68
      $region67: #{full_edge_feature_net.1} parent=63 // pred_region
        %s546 = smul.u32 2, %s30
        %p547 = scmp.lt.s32.totalorder %s32, 1
        %s548 = scalar_select %p547, %s32, 1
        %p549 = scmp.lt.s32.totalorder %s546, 1
        %s550 = scalar_select %p549, %s546, 1
        %s551 = smul.addr %s548, 2
        %s552 = sadd.s32 %s550, %s551
        %s553 = smul.addr %s552, 8
        %s554 = scalar_lea.vmem %s0, %s553
        %s555 = smul.u32 2, %s30
      $region68: #{full_edge_feature_net.1} parent=63 // pred_fallthru
        _
      // Predicated region
      $region69: #{full_edge_feature_net.1} parent=63 // pred_check
        %p556 = pneg %p92
      $region70: #{full_edge_feature_net.1} parent=63 // pred_check_branch
        %558 = sbr.rel (%p556) target = $region72
      $region71: #{full_edge_feature_net.1} parent=63 // pred_region
        %s559 = smul.u32 2, %s31
        %p560 = scmp.lt.s32.totalorder %s32, 1
        %s561 = scalar_select %p560, %s32, 1
        %p562 = scmp.lt.s32.totalorder %s559, 1
        %s563 = scalar_select %p562, %s559, 1
        %s564 = smul.addr %s561, 2
        %s565 = sadd.s32 %s563, %s564
        %s566 = smul.addr %s565, 8
        %s567 = scalar_lea.vmem %s1, %s566
        %s568 = smul.u32 2, %s31
      $region72: #{full_edge_feature_net.1} parent=63 // pred_fallthru
        _
      // Predicated region
      $region73: #{full_edge_feature_net.1} parent=63 // pred_check
        %p569 = pneg %p172
      $region74: #{full_edge_feature_net.1} parent=63 // pred_check_branch
        %571 = sbr.rel (%p569) target = $region76
      $region75: #{full_edge_feature_net.1} parent=63 // pred_region
        %s572 = smul.u32 2, %s30
        %p573 = scmp.lt.s32.totalorder %s32, 1
        %s574 = scalar_select %p573, %s32, 1
        %p575 = scmp.lt.s32.totalorder %s572, 1
        %s576 = scalar_select %p575, %s572, 1
        %s577 = smul.addr %s574, 2
        %s578 = sadd.s32 %s576, %s577
        %s579 = smul.addr %s578, 8
        %s580 = scalar_lea.vmem %s4, %s579
        %s581 = smul.u32 2, %s30
      $region76: #{full_edge_feature_net.1} parent=63 // pred_fallthru
        _
      // Predicated region
      $region77: #{full_edge_feature_net.1} parent=63 // pred_check
        %p582 = pneg %p200
      $region78: #{full_edge_feature_net.1} parent=63 // pred_check_branch
        %584 = sbr.rel (%p582) target = $region80
      $region79: #{full_edge_feature_net.1} parent=63 // pred_region
        %p585 = scmp.lt.s32.totalorder %s32, 1
        %s586 = scalar_select %p585, %s32, 1
        %p587 = scmp.lt.s32.totalorder %s31, 0
        %s588 = scalar_select %p587, %s31, 0
        %s589 = sadd.s32 %s588, %s586
        %s590 = smul.addr %s589, 8
        %s591 = scalar_lea.vmem %s5, %s590
      $region80: #{full_edge_feature_net.1} parent=63 // pred_fallthru
        _
      // Predicated region
      $region81: #{full_edge_feature_net.1} parent=63 // pred_check
        %p592 = pneg %p230
      $region82: #{full_edge_feature_net.1} parent=63 // pred_check_branch
        %594 = sbr.rel (%p592) target = $region84
      $region83: #{full_edge_feature_net.1} parent=63 // pred_region
        %s595 = smul.u32 2, %s30
        %p596 = scmp.lt.s32.totalorder %s32, 1
        %s597 = scalar_select %p596, %s32, 1
        %p598 = scmp.lt.s32.totalorder %s595, 1
        %s599 = scalar_select %p598, %s595, 1
        %p600 = scmp.lt.s32.totalorder %s31, 0
        %s601 = scalar_select %p600, %s31, 0
        %s602 = sadd.s32 %s601, %s599
        %s603 = smul.addr %s597, 2
        %s604 = sadd.s32 %s602, %s603
        %s605 = smul.addr %s604, 8
        %s606 = scalar_lea.vmem %s6, %s605
        %s607 = smul.u32 2, %s30
      $region84: #{full_edge_feature_net.1} parent=63 // pred_fallthru
        _
    $region64: #{full_edge_feature_net.1} parent=5 // pred_fallthru
      _
    %p608 = scmp.le.s32.totalorder 1, %s23
    %p609 = scmp.lt.s32.totalorder %s23, 3
    %p610 = pnand %p608, %p609
    %p611 = pneg %p610
    // Predicated region
    $region85: #{full_edge_feature_net.1} parent=5 // pred_check
      _
    $region86: #{full_edge_feature_net.1} parent=5 // pred_check_branch
      %613 = sbr.rel (%p610) target = $region88
    $region87: #{full_edge_feature_net.1} parent=5 // pred_region
      %s614 = ssub.s32 %s23, 1
      %s615 = smul.u32 2, %s33
      %p616 = scmp.lt.s32.totalorder %s35, 1
      %s617 = scalar_select %p616, %s35, 1
      %p618 = scmp.lt.s32.totalorder %s615, 1
      %s619 = scalar_select %p618, %s615, 1
      %s620 = smul.addr %s617, 2
      %s621 = sadd.s32 %s619, %s620
      %s622 = smul.addr %s621, 8
      %s623 = scalar_lea.vmem %s0, %s622
      %p624 = pneg %p70
      %p625 = pneg %p67
      %s626 = smul.u32 2, %s34
      %p627 = scmp.lt.s32.totalorder %s35, 1
      %s628 = scalar_select %p627, %s35, 1
      %p629 = scmp.lt.s32.totalorder %s626, 1
      %s630 = scalar_select %p629, %s626, 1
      %s631 = smul.addr %s628, 2
      %s632 = sadd.s32 %s630, %s631
      %s633 = smul.addr %s632, 8
      %s634 = scalar_lea.vmem %s1, %s633
      %p635 = pneg %p98
      %p636 = pneg %p95
      %s637 = smul.u32 2, %s33
      %p638 = scmp.lt.s32.totalorder %s637, 1
      %s639 = scalar_select %p638, %s637, 1
      %s640 = smul.addr %s639, 8
      %s641 = scalar_lea.vmem %s2, %s640
      %p642 = pneg %p124
      %p643 = pneg %p121
      %s644 = smul.u32 2, %s34
      %p645 = scmp.lt.s32.totalorder %s644, 1
      %s646 = scalar_select %p645, %s644, 1
      %s647 = smul.addr %s646, 8
      %s648 = scalar_lea.vmem %s3, %s647
      %p649 = pneg %p150
      %p650 = pneg %p147
      %s651 = smul.u32 2, %s33
      %p652 = scmp.lt.s32.totalorder %s35, 1
      %s653 = scalar_select %p652, %s35, 1
      %p654 = scmp.lt.s32.totalorder %s651, 1
      %s655 = scalar_select %p654, %s651, 1
      %s656 = smul.addr %s653, 2
      %s657 = sadd.s32 %s655, %s656
      %s658 = smul.addr %s657, 8
      %s659 = scalar_lea.vmem %s4, %s658
      %p660 = pneg %p178
      %p661 = pneg %p175
      %p662 = scmp.lt.s32.totalorder %s35, 1
      %s663 = scalar_select %p662, %s35, 1
      %p664 = scmp.lt.s32.totalorder %s34, 0
      %s665 = scalar_select %p664, %s34, 0
      %s666 = sadd.s32 %s665, %s663
      %s667 = smul.addr %s666, 8
      %s668 = scalar_lea.vmem %s5, %s667
      %p669 = pneg %p206
      %p670 = pneg %p203
      %s671 = smul.u32 2, %s33
      %p672 = scmp.lt.s32.totalorder %s35, 1
      %s673 = scalar_select %p672, %s35, 1
      %p674 = scmp.lt.s32.totalorder %s671, 1
      %s675 = scalar_select %p674, %s671, 1
      %p676 = scmp.lt.s32.totalorder %s34, 0
      %s677 = scalar_select %p676, %s34, 0
      %s678 = sadd.s32 %s677, %s675
      %s679 = smul.addr %s673, 2
      %s680 = sadd.s32 %s678, %s679
      %s681 = smul.addr %s680, 8
      %s682 = scalar_lea.vmem %s6, %s681
      %p683 = pneg %p236
      %p684 = pneg %p233
      %p685 = pneg %p257
      %p686 = pneg %p254
      %p687 = pneg %p278
      %p688 = pneg %p275
      %p689 = pneg %p299
      %p690 = pneg %p296
      %p691 = pneg %p320
      %p692 = pneg %p317
      %p693 = pneg %p341
      %p694 = pneg %p338
      %p695 = pneg %p362
      %p696 = pneg %p359
      %p697 = pneg %p383
      %p698 = pneg %p380
      %p699 = pneg %p404
      %p700 = pneg %p401
      %p701 = pneg %p425
      %p702 = pneg %p422
      %p703 = pneg %p446
      %p704 = pneg %p443
      %p705 = pneg %p476
      %p706 = pneg %p473
      %s707 = smul.u32 2, %s33
      %s708 = smul.u32 4, %s34
      %p709 = scmp.lt.s32.totalorder %s35, 1
      %s710 = scalar_select %p709, %s35, 1
      %p711 = scmp.lt.s32.totalorder %s707, 1
      %s712 = scalar_select %p711, %s707, 1
      %p713 = scmp.lt.s32.totalorder %s708, 3
      %s714 = scalar_select %p713, %s708, 3
      %s715 = smul.addr %s712, 4
      %s716 = sadd.s32 %s714, %s715
      %s717 = smul.addr %s710, 8
      %s718 = sadd.s32 %s716, %s717
      %s719 = smul.addr %s718, 8
      %s720 = scalar_lea.vmem %s17, %s719
      %s721 = smul.u32 2, %s33
      %p722 = scmp.lt.s32.totalorder %s35, 1
      %s723 = scalar_select %p722, %s35, 1
      %p724 = scmp.lt.s32.totalorder %s721, 1
      %s725 = scalar_select %p724, %s721, 1
      %s726 = smul.addr %s723, 2
      %s727 = sadd.s32 %s725, %s726
      %s728 = smul.addr %s727, 8
      %s729 = scalar_lea.vmem %s0, %s728
      %s730 = smul.u32 2, %s33
      %s731 = smul.u32 2, %s34
      %p732 = scmp.lt.s32.totalorder %s35, 1
      %s733 = scalar_select %p732, %s35, 1
      %p734 = scmp.lt.s32.totalorder %s731, 1
      %s735 = scalar_select %p734, %s731, 1
      %s736 = smul.addr %s733, 2
      %s737 = sadd.s32 %s735, %s736
      %s738 = smul.addr %s737, 8
      %s739 = scalar_lea.vmem %s1, %s738
      %s740 = smul.u32 2, %s34
      %s741 = smul.u32 2, %s33
      %p742 = scmp.lt.s32.totalorder %s741, 1
      %s743 = scalar_select %p742, %s741, 1
      %s744 = smul.addr %s743, 8
      %s745 = scalar_lea.vmem %s2, %s744
      %s746 = smul.u32 2, %s33
      %s747 = smul.u32 2, %s34
      %p748 = scmp.lt.s32.totalorder %s747, 1
      %s749 = scalar_select %p748, %s747, 1
      %s750 = smul.addr %s749, 8
      %s751 = scalar_lea.vmem %s3, %s750
      %s752 = smul.u32 2, %s34
      %s753 = smul.u32 2, %s33
      %p754 = scmp.lt.s32.totalorder %s35, 1
      %s755 = scalar_select %p754, %s35, 1
      %p756 = scmp.lt.s32.totalorder %s753, 1
      %s757 = scalar_select %p756, %s753, 1
      %s758 = smul.addr %s755, 2
      %s759 = sadd.s32 %s757, %s758
      %s760 = smul.addr %s759, 8
      %s761 = scalar_lea.vmem %s4, %s760
      %s762 = smul.u32 2, %s33
      %p763 = scmp.lt.s32.totalorder %s35, 1
      %s764 = scalar_select %p763, %s35, 1
      %p765 = scmp.lt.s32.totalorder %s34, 0
      %s766 = scalar_select %p765, %s34, 0
      %s767 = sadd.s32 %s766, %s764
      %s768 = smul.addr %s767, 8
      %s769 = scalar_lea.vmem %s5, %s768
      %s770 = smul.u32 2, %s33
      %p771 = scmp.lt.s32.totalorder %s35, 1
      %s772 = scalar_select %p771, %s35, 1
      %p773 = scmp.lt.s32.totalorder %s770, 1
      %s774 = scalar_select %p773, %s770, 1
      %p775 = scmp.lt.s32.totalorder %s34, 0
      %s776 = scalar_select %p775, %s34, 0
      %s777 = sadd.s32 %s776, %s774
      %s778 = smul.addr %s772, 2
      %s779 = sadd.s32 %s777, %s778
      %s780 = smul.addr %s779, 8
      %s781 = scalar_lea.vmem %s6, %s780
      %s782 = smul.u32 2, %s33
      %s783 = smul.u32 2, %s33
      %s784 = smul.u32 4, %s34
      %p785 = scmp.lt.s32.totalorder %s35, 1
      %s786 = scalar_select %p785, %s35, 1
      %p787 = scmp.lt.s32.totalorder %s783, 1
      %s788 = scalar_select %p787, %s783, 1
      %p789 = scmp.lt.s32.totalorder %s784, 3
      %s790 = scalar_select %p789, %s784, 3
      %s791 = smul.addr %s788, 4
      %s792 = sadd.s32 %s790, %s791
      %s793 = smul.addr %s786, 8
      %s794 = sadd.s32 %s792, %s793
      %s795 = smul.addr %s794, 8
      %s796 = scalar_lea.vmem %s17, %s795
      %s797 = smul.u32 2, %s33
      %s798 = smul.u32 4, %s34
      %v799 = vld [vmem:[%s761] sm:$0xff]
      %v800 = vld [vmem:[%s761 + $0x8] sm:$0xff]
      %v801 = vld [vmem:[%s769] sm:$0xff]
      %vm802 = vcmask 64512
      %v804 = vsel %vm802, %v799, 0
      %v807 = vsel %vm802, %v800, 0
      %809 = vmatprep.subr.mxu0 0.0
      %810 = vmatpush1.msra.mxu0 %v801
      %811 = vmatprep.subr.mxu0 0.0
      %812 = vmatpush1.msra.mxu0 0.0
      %813 = vmatprep.subr.mxu0 0.0
      %814 = vmatpush1.msra.mxu0 0.0
      %815 = vmatprep.subr.mxu0 0.0
      %816 = vmatpush1.msra.mxu0 0.0
      %817 = vmatprep.subr.mxu0 0.0
      %818 = vmatpush1.msra.mxu0 0.0
      %819 = vmatprep.subr.mxu0 0.0
      %820 = vmatpush1.msra.mxu0 0.0
      %821 = vmatprep.subr.mxu0 0.0
      %822 = vmatpush1.msra.mxu0 0.0
      %823 = vmatprep.subr.mxu0 0.0
      %824 = vmatpush1.msra.mxu0 0.0
      %825 = vmatprep.subr.mxu0 0.0
      %826 = vmatpush1.msra.mxu0 0.0
      %827 = vmatprep.subr.mxu0 0.0
      %828 = vmatpush1.msra.mxu0 0.0
      %829 = vmatprep.subr.mxu0 0.0
      %830 = vmatpush1.msra.mxu0 0.0
      %831 = vmatprep.subr.mxu0 0.0
      %832 = vmatpush1.msra.mxu0 0.0
      %833 = vmatprep.subr.mxu0 0.0
      %834 = vmatpush1.msra.mxu0 0.0
      %835 = vmatprep.subr.mxu0 0.0
      %836 = vmatpush1.msra.mxu0 0.0
      %837 = vmatprep.subr.mxu0 0.0
      %838 = vmatpush1.msra.mxu0 0.0
      %839 = vmatprep.subr.mxu0 0.0
      %840 = vmatpush1.msra.mxu0 0.0
      %841 = vmatprep.subr.mxu0 0.0
      %842 = vmatpush1.msra.mxu0 0.0
      %843 = vmatprep.subr.mxu0 0.0
      %844 = vmatpush1.msra.mxu0 0.0
      %845 = vmatprep.subr.mxu0 0.0
      %846 = vmatpush1.msra.mxu0 0.0
      %847 = vmatprep.subr.mxu0 0.0
      %848 = vmatpush1.msra.mxu0 0.0
      %849 = vmatprep.subr.mxu0 0.0
      %850 = vmatpush1.msra.mxu0 0.0
      %851 = vmatprep.subr.mxu0 0.0
      %852 = vmatpush1.msra.mxu0 0.0
      %853 = vmatprep.subr.mxu0 0.0
      %854 = vmatpush1.msra.mxu0 0.0
      %855 = vmatprep.subr.mxu0 0.0
      %856 = vmatpush1.msra.mxu0 0.0
      %857 = vmatprep.subr.mxu0 0.0
      %858 = vmatpush1.msra.mxu0 0.0
      %859 = vmatprep.subr.mxu0 0.0
      %860 = vmatpush1.msra.mxu0 0.0
      %861 = vmatprep.subr.mxu0 0.0
      %862 = vmatpush1.msra.mxu0 0.0
      %863 = vmatprep.subr.mxu0 0.0
      %864 = vmatpush1.msra.mxu0 0.0
      %865 = vmatprep.subr.mxu0 0.0
      %866 = vmatpush1.msra.mxu0 0.0
      %867 = vmatprep.subr.mxu0 0.0
      %868 = vmatpush1.msra.mxu0 0.0
      %869 = vmatprep.subr.mxu0 0.0
      %870 = vmatpush1.msra.mxu0 0.0
      %871 = vmatprep.subr.mxu0 0.0
      %872 = vmatpush1.msra.mxu0 0.0
      %873 = vmatprep.mubr.f32.mxu0 0.0
      %874 = vmatmul.mubr.f32.gmra.mrb[0].mxu0 %v804
      %v875 = vpop.f32.mrb[0].mxu0
      %v876 = vadd.f32 0.0, %v875
      %v877 = vpop.f32.mrb[0].mxu0
      %878 = vmatprep.mubr.f32.mxu0 0.0
      %879 = vmatmul.mubr.f32.gmra.mrb[0].mxu0 %v807
      %v880 = vpop.f32.mrb[0].mxu0
      %v881 = vadd.f32 0.0, %v880
      %v882 = vpop.f32.mrb[0].mxu0
      %883 = vdwg.mxu0
      %p884 = scmp.eq.s32.totalorder %s33, %s34
      %v885 = vlaneseq
      %v886 = vshrl.u32 %v885, 7
      %v887 = vadd.s32 %v886, 8
      %v888 = vlaneseq
      %v889 = vand.u32 %v888, 127
      %vm890 = vcmp.eq.s32.totalorder %v886, %v889
      %vm891 = vcmp.eq.s32.totalorder %v887, %v889
      %s892 = scalar_select %p884, 1, 0
      %v893 = vstv %s892
      %vm894 = vcmp.eq.s32.totalorder %v893, 1
      %vm895 = vmand %vm894, %vm890
      %vm896 = vmand %vm894, %vm891
      %v897 = vsel %vm895, 0.0, %v876
      %v898 = vsel %vm896, 0.0, %v881
      %v899 = vld [vmem:[%s7] sm:$0x1]
      %v900 = vld [vmem:[%s7 + $0x1] sm:$0x1]
      %v901 = vlaneseq
      %v902 = vshrl.u32 %v901, 7
      %v903 = vsub.s32 0, %v902
      %v904 = vrot.slane %v897, %v903
      %906 = vbcast.lane.b32.xlu0 %v904, 256
      %v907 = vpop.permute.xlu0 %906
      %s909 = sor.u32 256, 8
      %910 = vbcast.lane.b32.xlu0 %v904, %s909
      %v911 = vpop.permute.xlu0 %910
      %v912 = vlaneseq
      %v913 = vshrl.u32 %v912, 7
      %v914 = vsub.s32 1, %v913
      %v915 = vrot.slane %v897, %v914
      %917 = vbcast.lane.b32.xlu0 %v915, 256
      %v918 = vpop.permute.xlu0 %917
      %s920 = sor.u32 256, 8
      %921 = vbcast.lane.b32.xlu0 %v915, %s920
      %v922 = vpop.permute.xlu0 %921
      %v923 = vlaneseq
      %v924 = vshrl.u32 %v923, 7
      %v925 = vsub.s32 2, %v924
      %v926 = vrot.slane %v897, %v925
      %928 = vbcast.lane.b32.xlu0 %v926, 256
      %v929 = vpop.permute.xlu0 %928
      %s931 = sor.u32 256, 8
      %932 = vbcast.lane.b32.xlu0 %v926, %s931
      %v933 = vpop.permute.xlu0 %932
      %v934 = vlaneseq
      %v935 = vshrl.u32 %v934, 7
      %v936 = vsub.s32 3, %v935
      %v937 = vrot.slane %v897, %v936
      %939 = vbcast.lane.b32.xlu0 %v937, 256
      %v940 = vpop.permute.xlu0 %939
      %s942 = sor.u32 256, 8
      %943 = vbcast.lane.b32.xlu0 %v937, %s942
      %v944 = vpop.permute.xlu0 %943
      %v945 = vlaneseq
      %v946 = vshrl.u32 %v945, 7
      %v947 = vsub.s32 4, %v946
      %v948 = vrot.slane %v897, %v947
      %950 = vbcast.lane.b32.xlu0 %v948, 256
      %v951 = vpop.permute.xlu0 %950
      %s953 = sor.u32 256, 8
      %954 = vbcast.lane.b32.xlu0 %v948, %s953
      %v955 = vpop.permute.xlu0 %954
      %v956 = vlaneseq
      %v957 = vshrl.u32 %v956, 7
      %v958 = vsub.s32 5, %v957
      %v959 = vrot.slane %v897, %v958
      %961 = vbcast.lane.b32.xlu0 %v959, 256
      %v962 = vpop.permute.xlu0 %961
      %s964 = sor.u32 256, 8
      %965 = vbcast.lane.b32.xlu0 %v959, %s964
      %v966 = vpop.permute.xlu0 %965
      %v967 = vlaneseq
      %v968 = vshrl.u32 %v967, 7
      %v969 = vsub.s32 6, %v968
      %v970 = vrot.slane %v897, %v969
      %972 = vbcast.lane.b32.xlu0 %v970, 256
      %v973 = vpop.permute.xlu0 %972
      %s975 = sor.u32 256, 8
      %976 = vbcast.lane.b32.xlu0 %v970, %s975
      %v977 = vpop.permute.xlu0 %976
      %v978 = vlaneseq
      %v979 = vshrl.u32 %v978, 7
      %v980 = vsub.s32 7, %v979
      %v981 = vrot.slane %v897, %v980
      %983 = vbcast.lane.b32.xlu0 %v981, 256
      %v984 = vpop.permute.xlu0 %983
      %s986 = sor.u32 256, 8
      %987 = vbcast.lane.b32.xlu0 %v981, %s986
      %v988 = vpop.permute.xlu0 %987
      %v989 = vlaneseq
      %v990 = vshrl.u32 %v989, 7
      %v991 = vsub.s32 0, %v990
      %v992 = vrot.slane %v898, %v991
      %994 = vbcast.lane.b32.xlu0 %v992, 256
      %v995 = vpop.permute.xlu0 %994
      %s997 = sor.u32 256, 8
      %998 = vbcast.lane.b32.xlu0 %v992, %s997
      %v999 = vpop.permute.xlu0 %998
      %v1000 = vlaneseq
      %v1001 = vshrl.u32 %v1000, 7
      %v1002 = vsub.s32 1, %v1001
      %v1003 = vrot.slane %v898, %v1002
      %1005 = vbcast.lane.b32.xlu0 %v1003, 256
      %v1006 = vpop.permute.xlu0 %1005
      %s1008 = sor.u32 256, 8
      %1009 = vbcast.lane.b32.xlu0 %v1003, %s1008
      %v1010 = vpop.permute.xlu0 %1009
      %v1011 = vlaneseq
      %v1012 = vshrl.u32 %v1011, 7
      %v1013 = vsub.s32 2, %v1012
      %v1014 = vrot.slane %v898, %v1013
      %1016 = vbcast.lane.b32.xlu0 %v1014, 256
      %v1017 = vpop.permute.xlu0 %1016
      %s1019 = sor.u32 256, 8
      %1020 = vbcast.lane.b32.xlu0 %v1014, %s1019
      %v1021 = vpop.permute.xlu0 %1020
      %v1022 = vlaneseq
      %v1023 = vshrl.u32 %v1022, 7
      %v1024 = vsub.s32 3, %v1023
      %v1025 = vrot.slane %v898, %v1024
      %1027 = vbcast.lane.b32.xlu0 %v1025, 256
      %v1028 = vpop.permute.xlu0 %1027
      %s1030 = sor.u32 256, 8
      %1031 = vbcast.lane.b32.xlu0 %v1025, %s1030
      %v1032 = vpop.permute.xlu0 %1031
      %v1033 = vlaneseq
      %v1034 = vshrl.u32 %v1033, 7
      %v1035 = vsub.s32 4, %v1034
      %v1036 = vrot.slane %v898, %v1035
      %1038 = vbcast.lane.b32.xlu0 %v1036, 256
      %v1039 = vpop.permute.xlu0 %1038
      %s1041 = sor.u32 256, 8
      %1042 = vbcast.lane.b32.xlu0 %v1036, %s1041
      %v1043 = vpop.permute.xlu0 %1042
      %v1044 = vlaneseq
      %v1045 = vshrl.u32 %v1044, 7
      %v1046 = vsub.s32 5, %v1045
      %v1047 = vrot.slane %v898, %v1046
      %1049 = vbcast.lane.b32.xlu0 %v1047, 256
      %v1050 = vpop.permute.xlu0 %1049
      %s1052 = sor.u32 256, 8
      %1053 = vbcast.lane.b32.xlu0 %v1047, %s1052
      %v1054 = vpop.permute.xlu0 %1053
      %v1055 = vlaneseq
      %v1056 = vshrl.u32 %v1055, 7
      %v1057 = vsub.s32 6, %v1056
      %v1058 = vrot.slane %v898, %v1057
      %1060 = vbcast.lane.b32.xlu0 %v1058, 256
      %v1061 = vpop.permute.xlu0 %1060
      %s1063 = sor.u32 256, 8
      %1064 = vbcast.lane.b32.xlu0 %v1058, %s1063
      %v1065 = vpop.permute.xlu0 %1064
      %v1066 = vlaneseq
      %v1067 = vshrl.u32 %v1066, 7
      %v1068 = vsub.s32 7, %v1067
      %v1069 = vrot.slane %v898, %v1068
      %1071 = vbcast.lane.b32.xlu0 %v1069, 256
      %v1072 = vpop.permute.xlu0 %1071
      %s1074 = sor.u32 256, 8
      %1075 = vbcast.lane.b32.xlu0 %v1069, %s1074
      %v1076 = vpop.permute.xlu0 %1075
      %v1077 = vlaneseq
      %v1078 = vshrl.u32 %v1077, 7
      %v1079 = vsub.s32 0, %v1078
      %v1080 = vrot.slane %v899, %v1079
      %vm1081 = vcmp.gt.f32.partialorder %v907, %v1080
      %vm1082 = vcmp.gt.f32.partialorder %v911, %v1080
      %vm1083 = vcmp.gt.f32.partialorder %v918, %v1080
      %vm1084 = vcmp.gt.f32.partialorder %v922, %v1080
      %vm1085 = vcmp.gt.f32.partialorder %v929, %v1080
      %vm1086 = vcmp.gt.f32.partialorder %v933, %v1080
      %vm1087 = vcmp.gt.f32.partialorder %v940, %v1080
      %vm1088 = vcmp.gt.f32.partialorder %v944, %v1080
      %vm1089 = vcmp.gt.f32.partialorder %v951, %v1080
      %vm1090 = vcmp.gt.f32.partialorder %v955, %v1080
      %vm1091 = vcmp.gt.f32.partialorder %v962, %v1080
      %vm1092 = vcmp.gt.f32.partialorder %v966, %v1080
      %vm1093 = vcmp.gt.f32.partialorder %v973, %v1080
      %vm1094 = vcmp.gt.f32.partialorder %v977, %v1080
      %vm1095 = vcmp.gt.f32.partialorder %v984, %v1080
      %vm1096 = vcmp.gt.f32.partialorder %v988, %v1080
      %vm1097 = vcmp.gt.f32.partialorder %v995, %v1080
      %vm1098 = vcmp.gt.f32.partialorder %v999, %v1080
      %vm1099 = vcmp.gt.f32.partialorder %v1006, %v1080
      %vm1100 = vcmp.gt.f32.partialorder %v1010, %v1080
      %vm1101 = vcmp.gt.f32.partialorder %v1017, %v1080
      %vm1102 = vcmp.gt.f32.partialorder %v1021, %v1080
      %vm1103 = vcmp.gt.f32.partialorder %v1028, %v1080
      %vm1104 = vcmp.gt.f32.partialorder %v1032, %v1080
      %vm1105 = vcmp.gt.f32.partialorder %v1039, %v1080
      %vm1106 = vcmp.gt.f32.partialorder %v1043, %v1080
      %vm1107 = vcmp.gt.f32.partialorder %v1050, %v1080
      %vm1108 = vcmp.gt.f32.partialorder %v1054, %v1080
      %vm1109 = vcmp.gt.f32.partialorder %v1061, %v1080
      %vm1110 = vcmp.gt.f32.partialorder %v1065, %v1080
      %vm1111 = vcmp.gt.f32.partialorder %v1072, %v1080
      %vm1112 = vcmp.gt.f32.partialorder %v1076, %v1080
      %v1113 = vlaneseq
      %v1114 = vshrl.u32 %v1113, 7
      %v1115 = vsub.s32 0, %v1114
      %v1116 = vrot.slane %v900, %v1115
      %vm1117 = vcmp.lt.f32.partialorder %v907, %v1116
      %vm1118 = vcmp.lt.f32.partialorder %v911, %v1116
      %vm1119 = vcmp.lt.f32.partialorder %v918, %v1116
      %vm1120 = vcmp.lt.f32.partialorder %v922, %v1116
      %vm1121 = vcmp.lt.f32.partialorder %v929, %v1116
      %vm1122 = vcmp.lt.f32.partialorder %v933, %v1116
      %vm1123 = vcmp.lt.f32.partialorder %v940, %v1116
      %vm1124 = vcmp.lt.f32.partialorder %v944, %v1116
      %vm1125 = vcmp.lt.f32.partialorder %v951, %v1116
      %vm1126 = vcmp.lt.f32.partialorder %v955, %v1116
      %vm1127 = vcmp.lt.f32.partialorder %v962, %v1116
      %vm1128 = vcmp.lt.f32.partialorder %v966, %v1116
      %vm1129 = vcmp.lt.f32.partialorder %v973, %v1116
      %vm1130 = vcmp.lt.f32.partialorder %v977, %v1116
      %vm1131 = vcmp.lt.f32.partialorder %v984, %v1116
      %vm1132 = vcmp.lt.f32.partialorder %v988, %v1116
      %vm1133 = vcmp.lt.f32.partialorder %v995, %v1116
      %vm1134 = vcmp.lt.f32.partialorder %v999, %v1116
      %vm1135 = vcmp.lt.f32.partialorder %v1006, %v1116
      %vm1136 = vcmp.lt.f32.partialorder %v1010, %v1116
      %vm1137 = vcmp.lt.f32.partialorder %v1017, %v1116
      %vm1138 = vcmp.lt.f32.partialorder %v1021, %v1116
      %vm1139 = vcmp.lt.f32.partialorder %v1028, %v1116
      %vm1140 = vcmp.lt.f32.partialorder %v1032, %v1116
      %vm1141 = vcmp.lt.f32.partialorder %v1039, %v1116
      %vm1142 = vcmp.lt.f32.partialorder %v1043, %v1116
      %vm1143 = vcmp.lt.f32.partialorder %v1050, %v1116
      %vm1144 = vcmp.lt.f32.partialorder %v1054, %v1116
      %vm1145 = vcmp.lt.f32.partialorder %v1061, %v1116
      %vm1146 = vcmp.lt.f32.partialorder %v1065, %v1116
      %vm1147 = vcmp.lt.f32.partialorder %v1072, %v1116
      %vm1148 = vcmp.lt.f32.partialorder %v1076, %v1116
      %vm1149 = vmand %vm1081, %vm1117
      %vm1150 = vmand %vm1082, %vm1118
      %vm1151 = vmand %vm1083, %vm1119
      %vm1152 = vmand %vm1084, %vm1120
      %vm1153 = vmand %vm1085, %vm1121
      %vm1154 = vmand %vm1086, %vm1122
      %vm1155 = vmand %vm1087, %vm1123
      %vm1156 = vmand %vm1088, %vm1124
      %vm1157 = vmand %vm1089, %vm1125
      %vm1158 = vmand %vm1090, %vm1126
      %vm1159 = vmand %vm1091, %vm1127
      %vm1160 = vmand %vm1092, %vm1128
      %vm1161 = vmand %vm1093, %vm1129
      %vm1162 = vmand %vm1094, %vm1130
      %vm1163 = vmand %vm1095, %vm1131
      %vm1164 = vmand %vm1096, %vm1132
      %vm1165 = vmand %vm1097, %vm1133
      %vm1166 = vmand %vm1098, %vm1134
      %vm1167 = vmand %vm1099, %vm1135
      %vm1168 = vmand %vm1100, %vm1136
      %vm1169 = vmand %vm1101, %vm1137
      %vm1170 = vmand %vm1102, %vm1138
      %vm1171 = vmand %vm1103, %vm1139
      %vm1172 = vmand %vm1104, %vm1140
      %vm1173 = vmand %vm1105, %vm1141
      %vm1174 = vmand %vm1106, %vm1142
      %vm1175 = vmand %vm1107, %vm1143
      %vm1176 = vmand %vm1108, %vm1144
      %vm1177 = vmand %vm1109, %vm1145
      %vm1178 = vmand %vm1110, %vm1146
      %vm1179 = vmand %vm1111, %vm1147
      %vm1180 = vmand %vm1112, %vm1148
      %v1181 = vsel %vm1149, 1, 0
      %v1182 = vsel %vm1150, 1, 0
      %v1183 = vsel %vm1151, 1, 0
      %v1184 = vsel %vm1152, 1, 0
      %v1185 = vsel %vm1153, 1, 0
      %v1186 = vsel %vm1154, 1, 0
      %v1187 = vsel %vm1155, 1, 0
      %v1188 = vsel %vm1156, 1, 0
      %v1189 = vsel %vm1157, 1, 0
      %v1190 = vsel %vm1158, 1, 0
      %v1191 = vsel %vm1159, 1, 0
      %v1192 = vsel %vm1160, 1, 0
      %v1193 = vsel %vm1161, 1, 0
      %v1194 = vsel %vm1162, 1, 0
      %v1195 = vsel %vm1163, 1, 0
      %v1196 = vsel %vm1164, 1, 0
      %v1197 = vsel %vm1165, 1, 0
      %v1198 = vsel %vm1166, 1, 0
      %v1199 = vsel %vm1167, 1, 0
      %v1200 = vsel %vm1168, 1, 0
      %v1201 = vsel %vm1169, 1, 0
      %v1202 = vsel %vm1170, 1, 0
      %v1203 = vsel %vm1171, 1, 0
      %v1204 = vsel %vm1172, 1, 0
      %v1205 = vsel %vm1173, 1, 0
      %v1206 = vsel %vm1174, 1, 0
      %v1207 = vsel %vm1175, 1, 0
      %v1208 = vsel %vm1176, 1, 0
      %v1209 = vsel %vm1177, 1, 0
      %v1210 = vsel %vm1178, 1, 0
      %v1211 = vsel %vm1179, 1, 0
      %v1212 = vsel %vm1180, 1, 0
      %v1213 = vcvt.s32.f32 %v1181
      %v1214 = vcvt.s32.f32 %v1182
      %v1215 = vcvt.s32.f32 %v1183
      %v1216 = vcvt.s32.f32 %v1184
      %v1217 = vcvt.s32.f32 %v1185
      %v1218 = vcvt.s32.f32 %v1186
      %v1219 = vcvt.s32.f32 %v1187
      %v1220 = vcvt.s32.f32 %v1188
      %v1221 = vcvt.s32.f32 %v1189
      %v1222 = vcvt.s32.f32 %v1190
      %v1223 = vcvt.s32.f32 %v1191
      %v1224 = vcvt.s32.f32 %v1192
      %v1225 = vcvt.s32.f32 %v1193
      %v1226 = vcvt.s32.f32 %v1194
      %v1227 = vcvt.s32.f32 %v1195
      %v1228 = vcvt.s32.f32 %v1196
      %v1229 = vcvt.s32.f32 %v1197
      %v1230 = vcvt.s32.f32 %v1198
      %v1231 = vcvt.s32.f32 %v1199
      %v1232 = vcvt.s32.f32 %v1200
      %v1233 = vcvt.s32.f32 %v1201
      %v1234 = vcvt.s32.f32 %v1202
      %v1235 = vcvt.s32.f32 %v1203
      %v1236 = vcvt.s32.f32 %v1204
      %v1237 = vcvt.s32.f32 %v1205
      %v1238 = vcvt.s32.f32 %v1206
      %v1239 = vcvt.s32.f32 %v1207
      %v1240 = vcvt.s32.f32 %v1208
      %v1241 = vcvt.s32.f32 %v1209
      %v1242 = vcvt.s32.f32 %v1210
      %v1243 = vcvt.s32.f32 %v1211
      %v1244 = vcvt.s32.f32 %v1212
      %v1245 = vld [vmem:[%s745] sm:$0xff]
      %v1246 = vld [vmem:[%s745 + $0x8] sm:$0xff]
      %v1247 = vld [vmem:[%s751] sm:$0xff]
      %v1248 = vld [vmem:[%s751 + $0x8] sm:$0xff]
      %v1251 = vcombine.high %v1245, %v1245
      %v1253 = vunpack.c.l.s4 1966171168
      %v1254 = vunpack.c.0.s8 %v1253
      %v1255 = vlaneseq
      %v1256 = vshrl.u32 %v1255, 7
      %v1257 = vsub.s32 %v1254, %v1256
      %v1258 = vrot.slane %v1245, %v1257
      %v1260 = vunpack.c.l.s4 1966171168
      %v1261 = vunpack.c.0.s8 %v1260
      %v1262 = vlaneseq
      %v1263 = vshrl.u32 %v1262, 7
      %v1264 = vsub.s32 %v1261, %v1263
      %v1265 = vrot.slane %v1251, %v1264
      %v1266 = vcombine.high %v1258, %v1258
      %v1267 = vcombine.high %v1265, %v1265
      %v1269 = vunpack.c.l.s4 1966171168
      %v1270 = vunpack.c.0.s8 %v1269
      %v1271 = vlaneseq
      %v1272 = vshrl.u32 %v1271, 7
      %v1273 = vsub.s32 %v1270, %v1272
      %v1274 = vrot.slane %v1258, %v1273
      %v1276 = vunpack.c.l.s4 1966171168
      %v1277 = vunpack.c.0.s8 %v1276
      %v1278 = vlaneseq
      %v1279 = vshrl.u32 %v1278, 7
      %v1280 = vsub.s32 %v1277, %v1279
      %v1281 = vrot.slane %v1265, %v1280
      %v1283 = vunpack.c.l.s4 1966171168
      %v1284 = vunpack.c.0.s8 %v1283
      %v1285 = vlaneseq
      %v1286 = vshrl.u32 %v1285, 7
      %v1287 = vsub.s32 %v1284, %v1286
      %v1288 = vrot.slane %v1266, %v1287
      %v1290 = vunpack.c.l.s4 1966171168
      %v1291 = vunpack.c.0.s8 %v1290
      %v1292 = vlaneseq
      %v1293 = vshrl.u32 %v1292, 7
      %v1294 = vsub.s32 %v1291, %v1293
      %v1295 = vrot.slane %v1267, %v1294
      %v1296 = vcombine.high %v1274, %v1274
      %v1297 = vcombine.high %v1281, %v1281
      %v1298 = vcombine.high %v1288, %v1288
      %v1299 = vcombine.high %v1295, %v1295
      %v1300 = vcombine.high %v1246, %v1246
      %v1302 = vunpack.c.l.s4 1966171168
      %v1303 = vunpack.c.0.s8 %v1302
      %v1304 = vlaneseq
      %v1305 = vshrl.u32 %v1304, 7
      %v1306 = vsub.s32 %v1303, %v1305
      %v1307 = vrot.slane %v1246, %v1306
      %v1309 = vunpack.c.l.s4 1966171168
      %v1310 = vunpack.c.0.s8 %v1309
      %v1311 = vlaneseq
      %v1312 = vshrl.u32 %v1311, 7
      %v1313 = vsub.s32 %v1310, %v1312
      %v1314 = vrot.slane %v1300, %v1313
      %v1315 = vcombine.high %v1307, %v1307
      %v1316 = vcombine.high %v1314, %v1314
      %v1318 = vunpack.c.l.s4 1966171168
      %v1319 = vunpack.c.0.s8 %v1318
      %v1320 = vlaneseq
      %v1321 = vshrl.u32 %v1320, 7
      %v1322 = vsub.s32 %v1319, %v1321
      %v1323 = vrot.slane %v1307, %v1322
      %v1325 = vunpack.c.l.s4 1966171168
      %v1326 = vunpack.c.0.s8 %v1325
      %v1327 = vlaneseq
      %v1328 = vshrl.u32 %v1327, 7
      %v1329 = vsub.s32 %v1326, %v1328
      %v1330 = vrot.slane %v1314, %v1329
      %v1332 = vunpack.c.l.s4 1966171168
      %v1333 = vunpack.c.0.s8 %v1332
      %v1334 = vlaneseq
      %v1335 = vshrl.u32 %v1334, 7
      %v1336 = vsub.s32 %v1333, %v1335
      %v1337 = vrot.slane %v1315, %v1336
      %v1339 = vunpack.c.l.s4 1966171168
      %v1340 = vunpack.c.0.s8 %v1339
      %v1341 = vlaneseq
      %v1342 = vshrl.u32 %v1341, 7
      %v1343 = vsub.s32 %v1340, %v1342
      %v1344 = vrot.slane %v1316, %v1343
      %v1345 = vcombine.high %v1323, %v1323
      %v1346 = vcombine.high %v1330, %v1330
      %v1347 = vcombine.high %v1337, %v1337
      %v1348 = vcombine.high %v1344, %v1344
      %v1349 = vlaneseq
      %v1350 = vshrl.u32 %v1349, 7
      %v1351 = vsub.s32 0, %v1350
      %v1352 = vrot.slane %v1274, %v1351
      %v1353 = vlaneseq
      %v1354 = vshrl.u32 %v1353, 7
      %v1355 = vsub.s32 0, %v1354
      %v1356 = vrot.slane %v1288, %v1355
      %v1357 = vlaneseq
      %v1358 = vshrl.u32 %v1357, 7
      %v1359 = vsub.s32 0, %v1358
      %v1360 = vrot.slane %v1296, %v1359
      %v1361 = vlaneseq
      %v1362 = vshrl.u32 %v1361, 7
      %v1363 = vsub.s32 0, %v1362
      %v1364 = vrot.slane %v1298, %v1363
      %v1365 = vlaneseq
      %v1366 = vshrl.u32 %v1365, 7
      %v1367 = vsub.s32 0, %v1366
      %v1368 = vrot.slane %v1281, %v1367
      %v1369 = vlaneseq
      %v1370 = vshrl.u32 %v1369, 7
      %v1371 = vsub.s32 0, %v1370
      %v1372 = vrot.slane %v1295, %v1371
      %v1373 = vlaneseq
      %v1374 = vshrl.u32 %v1373, 7
      %v1375 = vsub.s32 0, %v1374
      %v1376 = vrot.slane %v1297, %v1375
      %v1377 = vlaneseq
      %v1378 = vshrl.u32 %v1377, 7
      %v1379 = vsub.s32 0, %v1378
      %v1380 = vrot.slane %v1299, %v1379
      %v1381 = vlaneseq
      %v1382 = vshrl.u32 %v1381, 7
      %v1383 = vsub.s32 0, %v1382
      %v1384 = vrot.slane %v1323, %v1383
      %v1385 = vlaneseq
      %v1386 = vshrl.u32 %v1385, 7
      %v1387 = vsub.s32 0, %v1386
      %v1388 = vrot.slane %v1337, %v1387
      %v1389 = vlaneseq
      %v1390 = vshrl.u32 %v1389, 7
      %v1391 = vsub.s32 0, %v1390
      %v1392 = vrot.slane %v1345, %v1391
      %v1393 = vlaneseq
      %v1394 = vshrl.u32 %v1393, 7
      %v1395 = vsub.s32 0, %v1394
      %v1396 = vrot.slane %v1347, %v1395
      %v1397 = vlaneseq
      %v1398 = vshrl.u32 %v1397, 7
      %v1399 = vsub.s32 0, %v1398
      %v1400 = vrot.slane %v1330, %v1399
      %v1401 = vlaneseq
      %v1402 = vshrl.u32 %v1401, 7
      %v1403 = vsub.s32 0, %v1402
      %v1404 = vrot.slane %v1344, %v1403
      %v1405 = vlaneseq
      %v1406 = vshrl.u32 %v1405, 7
      %v1407 = vsub.s32 0, %v1406
      %v1408 = vrot.slane %v1346, %v1407
      %v1409 = vlaneseq
      %v1410 = vshrl.u32 %v1409, 7
      %v1411 = vsub.s32 0, %v1410
      %v1412 = vrot.slane %v1348, %v1411
      %v1429 = vmul.f32 %v1352, %v1247
      %v1430 = vmul.f32 %v1352, %v1248
      %v1431 = vmul.f32 %v1356, %v1247
      %v1432 = vmul.f32 %v1356, %v1248
      %v1433 = vmul.f32 %v1360, %v1247
      %v1434 = vmul.f32 %v1360, %v1248
      %v1435 = vmul.f32 %v1364, %v1247
      %v1436 = vmul.f32 %v1364, %v1248
      %v1437 = vmul.f32 %v1368, %v1247
      %v1438 = vmul.f32 %v1368, %v1248
      %v1439 = vmul.f32 %v1372, %v1247
      %v1440 = vmul.f32 %v1372, %v1248
      %v1441 = vmul.f32 %v1376, %v1247
      %v1442 = vmul.f32 %v1376, %v1248
      %v1443 = vmul.f32 %v1380, %v1247
      %v1444 = vmul.f32 %v1380, %v1248
      %v1445 = vmul.f32 %v1384, %v1247
      %v1446 = vmul.f32 %v1384, %v1248
      %v1447 = vmul.f32 %v1388, %v1247
      %v1448 = vmul.f32 %v1388, %v1248
      %v1449 = vmul.f32 %v1392, %v1247
      %v1450 = vmul.f32 %v1392, %v1248
      %v1451 = vmul.f32 %v1396, %v1247
      %v1452 = vmul.f32 %v1396, %v1248
      %v1453 = vmul.f32 %v1400, %v1247
      %v1454 = vmul.f32 %v1400, %v1248
      %v1455 = vmul.f32 %v1404, %v1247
      %v1456 = vmul.f32 %v1404, %v1248
      %v1457 = vmul.f32 %v1408, %v1247
      %v1458 = vmul.f32 %v1408, %v1248
      %v1459 = vmul.f32 %v1412, %v1247
      %v1460 = vmul.f32 %v1412, %v1248
      %1493 = vrot.lane.b32.xlu0 %v1429, 112
      %v1494 = vpop.permute.xlu0 %1493
      %1495 = vrot.lane.b32.xlu0 %v1430, 112
      %v1496 = vpop.permute.xlu0 %1495
      %1497 = vrot.lane.b32.xlu0 %v1431, 112
      %v1498 = vpop.permute.xlu0 %1497
      %1499 = vrot.lane.b32.xlu0 %v1432, 112
      %v1500 = vpop.permute.xlu0 %1499
      %1501 = vrot.lane.b32.xlu0 %v1433, 112
      %v1502 = vpop.permute.xlu0 %1501
      %1503 = vrot.lane.b32.xlu0 %v1434, 112
      %v1504 = vpop.permute.xlu0 %1503
      %1505 = vrot.lane.b32.xlu0 %v1435, 112
      %v1506 = vpop.permute.xlu0 %1505
      %1507 = vrot.lane.b32.xlu0 %v1436, 112
      %v1508 = vpop.permute.xlu0 %1507
      %1509 = vrot.lane.b32.xlu0 %v1437, 112
      %v1510 = vpop.permute.xlu0 %1509
      %1511 = vrot.lane.b32.xlu0 %v1438, 112
      %v1512 = vpop.permute.xlu0 %1511
      %1513 = vrot.lane.b32.xlu0 %v1439, 112
      %v1514 = vpop.permute.xlu0 %1513
      %1515 = vrot.lane.b32.xlu0 %v1440, 112
      %v1516 = vpop.permute.xlu0 %1515
      %1517 = vrot.lane.b32.xlu0 %v1441, 112
      %v1518 = vpop.permute.xlu0 %1517
      %1519 = vrot.lane.b32.xlu0 %v1442, 112
      %v1520 = vpop.permute.xlu0 %1519
      %1521 = vrot.lane.b32.xlu0 %v1443, 112
      %v1522 = vpop.permute.xlu0 %1521
      %1523 = vrot.lane.b32.xlu0 %v1444, 112
      %v1524 = vpop.permute.xlu0 %1523
      %1525 = vrot.lane.b32.xlu0 %v1445, 112
      %v1526 = vpop.permute.xlu0 %1525
      %1527 = vrot.lane.b32.xlu0 %v1446, 112
      %v1528 = vpop.permute.xlu0 %1527
      %1529 = vrot.lane.b32.xlu0 %v1447, 112
      %v1530 = vpop.permute.xlu0 %1529
      %1531 = vrot.lane.b32.xlu0 %v1448, 112
      %v1532 = vpop.permute.xlu0 %1531
      %1533 = vrot.lane.b32.xlu0 %v1449, 112
      %v1534 = vpop.permute.xlu0 %1533
      %1535 = vrot.lane.b32.xlu0 %v1450, 112
      %v1536 = vpop.permute.xlu0 %1535
      %1537 = vrot.lane.b32.xlu0 %v1451, 112
      %v1538 = vpop.permute.xlu0 %1537
      %1539 = vrot.lane.b32.xlu0 %v1452, 112
      %v1540 = vpop.permute.xlu0 %1539
      %1541 = vrot.lane.b32.xlu0 %v1453, 112
      %v1542 = vpop.permute.xlu0 %1541
      %1543 = vrot.lane.b32.xlu0 %v1454, 112
      %v1544 = vpop.permute.xlu0 %1543
      %1545 = vrot.lane.b32.xlu0 %v1455, 112
      %v1546 = vpop.permute.xlu0 %1545
      %1547 = vrot.lane.b32.xlu0 %v1456, 112
      %v1548 = vpop.permute.xlu0 %1547
      %1549 = vrot.lane.b32.xlu0 %v1457, 112
      %v1550 = vpop.permute.xlu0 %1549
      %1551 = vrot.lane.b32.xlu0 %v1458, 112
      %v1552 = vpop.permute.xlu0 %1551
      %1553 = vrot.lane.b32.xlu0 %v1459, 112
      %v1554 = vpop.permute.xlu0 %1553
      %1555 = vrot.lane.b32.xlu0 %v1460, 112
      %v1556 = vpop.permute.xlu0 %1555
      %v1589 = vadd.f32 %v1429, %v1494
      %v1590 = vadd.f32 %v1430, %v1496
      %v1591 = vadd.f32 %v1431, %v1498
      %v1592 = vadd.f32 %v1432, %v1500
      %v1593 = vadd.f32 %v1433, %v1502
      %v1594 = vadd.f32 %v1434, %v1504
      %v1595 = vadd.f32 %v1435, %v1506
      %v1596 = vadd.f32 %v1436, %v1508
      %v1597 = vadd.f32 %v1437, %v1510
      %v1598 = vadd.f32 %v1438, %v1512
      %v1599 = vadd.f32 %v1439, %v1514
      %v1600 = vadd.f32 %v1440, %v1516
      %v1601 = vadd.f32 %v1441, %v1518
      %v1602 = vadd.f32 %v1442, %v1520
      %v1603 = vadd.f32 %v1443, %v1522
      %v1604 = vadd.f32 %v1444, %v1524
      %v1605 = vadd.f32 %v1445, %v1526
      %v1606 = vadd.f32 %v1446, %v1528
      %v1607 = vadd.f32 %v1447, %v1530
      %v1608 = vadd.f32 %v1448, %v1532
      %v1609 = vadd.f32 %v1449, %v1534
      %v1610 = vadd.f32 %v1450, %v1536
      %v1611 = vadd.f32 %v1451, %v1538
      %v1612 = vadd.f32 %v1452, %v1540
      %v1613 = vadd.f32 %v1453, %v1542
      %v1614 = vadd.f32 %v1454, %v1544
      %v1615 = vadd.f32 %v1455, %v1546
      %v1616 = vadd.f32 %v1456, %v1548
      %v1617 = vadd.f32 %v1457, %v1550
      %v1618 = vadd.f32 %v1458, %v1552
      %v1619 = vadd.f32 %v1459, %v1554
      %v1620 = vadd.f32 %v1460, %v1556
      %v1621 = vld [vmem:[%s729] sm:$0xff]
      %v1622 = vld [vmem:[%s729 + $0x8] sm:$0xff]
      %v1625 = vcombine.high %v1621, %v1621
      %v1627 = vunpack.c.l.s4 1966171168
      %v1628 = vunpack.c.0.s8 %v1627
      %v1629 = vlaneseq
      %v1630 = vshrl.u32 %v1629, 7
      %v1631 = vsub.s32 %v1628, %v1630
      %v1632 = vrot.slane %v1621, %v1631
      %v1634 = vunpack.c.l.s4 1966171168
      %v1635 = vunpack.c.0.s8 %v1634
      %v1636 = vlaneseq
      %v1637 = vshrl.u32 %v1636, 7
      %v1638 = vsub.s32 %v1635, %v1637
      %v1639 = vrot.slane %v1625, %v1638
      %v1640 = vcombine.high %v1632, %v1632
      %v1641 = vcombine.high %v1639, %v1639
      %v1643 = vunpack.c.l.s4 1966171168
      %v1644 = vunpack.c.0.s8 %v1643
      %v1645 = vlaneseq
      %v1646 = vshrl.u32 %v1645, 7
      %v1647 = vsub.s32 %v1644, %v1646
      %v1648 = vrot.slane %v1632, %v1647
      %v1650 = vunpack.c.l.s4 1966171168
      %v1651 = vunpack.c.0.s8 %v1650
      %v1652 = vlaneseq
      %v1653 = vshrl.u32 %v1652, 7
      %v1654 = vsub.s32 %v1651, %v1653
      %v1655 = vrot.slane %v1639, %v1654
      %v1657 = vunpack.c.l.s4 1966171168
      %v1658 = vunpack.c.0.s8 %v1657
      %v1659 = vlaneseq
      %v1660 = vshrl.u32 %v1659, 7
      %v1661 = vsub.s32 %v1658, %v1660
      %v1662 = vrot.slane %v1640, %v1661
      %v1664 = vunpack.c.l.s4 1966171168
      %v1665 = vunpack.c.0.s8 %v1664
      %v1666 = vlaneseq
      %v1667 = vshrl.u32 %v1666, 7
      %v1668 = vsub.s32 %v1665, %v1667
      %v1669 = vrot.slane %v1641, %v1668
      %v1670 = vcombine.high %v1648, %v1648
      %v1671 = vcombine.high %v1655, %v1655
      %v1672 = vcombine.high %v1662, %v1662
      %v1673 = vcombine.high %v1669, %v1669
      %v1674 = vcombine.high %v1622, %v1622
      %v1676 = vunpack.c.l.s4 1966171168
      %v1677 = vunpack.c.0.s8 %v1676
      %v1678 = vlaneseq
      %v1679 = vshrl.u32 %v1678, 7
      %v1680 = vsub.s32 %v1677, %v1679
      %v1681 = vrot.slane %v1622, %v1680
      %v1683 = vunpack.c.l.s4 1966171168
      %v1684 = vunpack.c.0.s8 %v1683
      %v1685 = vlaneseq
      %v1686 = vshrl.u32 %v1685, 7
      %v1687 = vsub.s32 %v1684, %v1686
      %v1688 = vrot.slane %v1674, %v1687
      %v1689 = vcombine.high %v1681, %v1681
      %v1690 = vcombine.high %v1688, %v1688
      %v1692 = vunpack.c.l.s4 1966171168
      %v1693 = vunpack.c.0.s8 %v1692
      %v1694 = vlaneseq
      %v1695 = vshrl.u32 %v1694, 7
      %v1696 = vsub.s32 %v1693, %v1695
      %v1697 = vrot.slane %v1681, %v1696
      %v1699 = vunpack.c.l.s4 1966171168
      %v1700 = vunpack.c.0.s8 %v1699
      %v1701 = vlaneseq
      %v1702 = vshrl.u32 %v1701, 7
      %v1703 = vsub.s32 %v1700, %v1702
      %v1704 = vrot.slane %v1688, %v1703
      %v1706 = vunpack.c.l.s4 1966171168
      %v1707 = vunpack.c.0.s8 %v1706
      %v1708 = vlaneseq
      %v1709 = vshrl.u32 %v1708, 7
      %v1710 = vsub.s32 %v1707, %v1709
      %v1711 = vrot.slane %v1689, %v1710
      %v1713 = vunpack.c.l.s4 1966171168
      %v1714 = vunpack.c.0.s8 %v1713
      %v1715 = vlaneseq
      %v1716 = vshrl.u32 %v1715, 7
      %v1717 = vsub.s32 %v1714, %v1716
      %v1718 = vrot.slane %v1690, %v1717
      %v1719 = vcombine.high %v1697, %v1697
      %v1720 = vcombine.high %v1704, %v1704
      %v1721 = vcombine.high %v1711, %v1711
      %v1722 = vcombine.high %v1718, %v1718
      %v1723 = vld [vmem:[%s739] sm:$0xff]
      %v1724 = vld [vmem:[%s739 + $0x8] sm:$0xff]
      %v1725 = vlaneseq
      %v1726 = vshrl.u32 %v1725, 7
      %v1727 = vsub.s32 0, %v1726
      %v1728 = vrot.slane %v1648, %v1727
      %v1729 = vlaneseq
      %v1730 = vshrl.u32 %v1729, 7
      %v1731 = vsub.s32 0, %v1730
      %v1732 = vrot.slane %v1662, %v1731
      %v1733 = vlaneseq
      %v1734 = vshrl.u32 %v1733, 7
      %v1735 = vsub.s32 0, %v1734
      %v1736 = vrot.slane %v1670, %v1735
      %v1737 = vlaneseq
      %v1738 = vshrl.u32 %v1737, 7
      %v1739 = vsub.s32 0, %v1738
      %v1740 = vrot.slane %v1672, %v1739
      %v1741 = vlaneseq
      %v1742 = vshrl.u32 %v1741, 7
      %v1743 = vsub.s32 0, %v1742
      %v1744 = vrot.slane %v1655, %v1743
      %v1745 = vlaneseq
      %v1746 = vshrl.u32 %v1745, 7
      %v1747 = vsub.s32 0, %v1746
      %v1748 = vrot.slane %v1669, %v1747
      %v1749 = vlaneseq
      %v1750 = vshrl.u32 %v1749, 7
      %v1751 = vsub.s32 0, %v1750
      %v1752 = vrot.slane %v1671, %v1751
      %v1753 = vlaneseq
      %v1754 = vshrl.u32 %v1753, 7
      %v1755 = vsub.s32 0, %v1754
      %v1756 = vrot.slane %v1673, %v1755
      %v1757 = vlaneseq
      %v1758 = vshrl.u32 %v1757, 7
      %v1759 = vsub.s32 0, %v1758
      %v1760 = vrot.slane %v1697, %v1759
      %v1761 = vlaneseq
      %v1762 = vshrl.u32 %v1761, 7
      %v1763 = vsub.s32 0, %v1762
      %v1764 = vrot.slane %v1711, %v1763
      %v1765 = vlaneseq
      %v1766 = vshrl.u32 %v1765, 7
      %v1767 = vsub.s32 0, %v1766
      %v1768 = vrot.slane %v1719, %v1767
      %v1769 = vlaneseq
      %v1770 = vshrl.u32 %v1769, 7
      %v1771 = vsub.s32 0, %v1770
      %v1772 = vrot.slane %v1721, %v1771
      %v1773 = vlaneseq
      %v1774 = vshrl.u32 %v1773, 7
      %v1775 = vsub.s32 0, %v1774
      %v1776 = vrot.slane %v1704, %v1775
      %v1777 = vlaneseq
      %v1778 = vshrl.u32 %v1777, 7
      %v1779 = vsub.s32 0, %v1778
      %v1780 = vrot.slane %v1718, %v1779
      %v1781 = vlaneseq
      %v1782 = vshrl.u32 %v1781, 7
      %v1783 = vsub.s32 0, %v1782
      %v1784 = vrot.slane %v1720, %v1783
      %v1785 = vlaneseq
      %v1786 = vshrl.u32 %v1785, 7
      %v1787 = vsub.s32 0, %v1786
      %v1788 = vrot.slane %v1722, %v1787
      %v1805 = vadd.f32 %v1728, %v1723
      %v1806 = vadd.f32 %v1728, %v1724
      %v1807 = vadd.f32 %v1732, %v1723
      %v1808 = vadd.f32 %v1732, %v1724
      %v1809 = vadd.f32 %v1736, %v1723
      %v1810 = vadd.f32 %v1736, %v1724
      %v1811 = vadd.f32 %v1740, %v1723
      %v1812 = vadd.f32 %v1740, %v1724
      %v1813 = vadd.f32 %v1744, %v1723
      %v1814 = vadd.f32 %v1744, %v1724
      %v1815 = vadd.f32 %v1748, %v1723
      %v1816 = vadd.f32 %v1748, %v1724
      %v1817 = vadd.f32 %v1752, %v1723
      %v1818 = vadd.f32 %v1752, %v1724
      %v1819 = vadd.f32 %v1756, %v1723
      %v1820 = vadd.f32 %v1756, %v1724
      %v1821 = vadd.f32 %v1760, %v1723
      %v1822 = vadd.f32 %v1760, %v1724
      %v1823 = vadd.f32 %v1764, %v1723
      %v1824 = vadd.f32 %v1764, %v1724
      %v1825 = vadd.f32 %v1768, %v1723
      %v1826 = vadd.f32 %v1768, %v1724
      %v1827 = vadd.f32 %v1772, %v1723
      %v1828 = vadd.f32 %v1772, %v1724
      %v1829 = vadd.f32 %v1776, %v1723
      %v1830 = vadd.f32 %v1776, %v1724
      %v1831 = vadd.f32 %v1780, %v1723
      %v1832 = vadd.f32 %v1780, %v1724
      %v1833 = vadd.f32 %v1784, %v1723
      %v1834 = vadd.f32 %v1784, %v1724
      %v1835 = vadd.f32 %v1788, %v1723
      %v1836 = vadd.f32 %v1788, %v1724
      %v1837 = vld [vmem:[%s10] sm:$0x1]
      %v1839 = vlaneseq
      %v1840 = vshrl.u32 %v1839, 7
      %v1841 = vsub.s32 0, %v1840
      %v1842 = vrot.slane %v1837, %v1841
      %v1844 = vadd.f32 %v1805, %v1842
      %v1845 = vadd.f32 %v1806, %v1842
      %v1846 = vadd.f32 %v1807, %v1842
      %v1847 = vadd.f32 %v1808, %v1842
      %v1848 = vadd.f32 %v1809, %v1842
      %v1849 = vadd.f32 %v1810, %v1842
      %v1850 = vadd.f32 %v1811, %v1842
      %v1851 = vadd.f32 %v1812, %v1842
      %v1852 = vadd.f32 %v1813, %v1842
      %v1853 = vadd.f32 %v1814, %v1842
      %v1854 = vadd.f32 %v1815, %v1842
      %v1855 = vadd.f32 %v1816, %v1842
      %v1856 = vadd.f32 %v1817, %v1842
      %v1857 = vadd.f32 %v1818, %v1842
      %v1858 = vadd.f32 %v1819, %v1842
      %v1859 = vadd.f32 %v1820, %v1842
      %v1860 = vadd.f32 %v1821, %v1842
      %v1861 = vadd.f32 %v1822, %v1842
      %v1862 = vadd.f32 %v1823, %v1842
      %v1863 = vadd.f32 %v1824, %v1842
      %v1864 = vadd.f32 %v1825, %v1842
      %v1865 = vadd.f32 %v1826, %v1842
      %v1866 = vadd.f32 %v1827, %v1842
      %v1867 = vadd.f32 %v1828, %v1842
      %v1868 = vadd.f32 %v1829, %v1842
      %v1869 = vadd.f32 %v1830, %v1842
      %v1870 = vadd.f32 %v1831, %v1842
      %v1871 = vadd.f32 %v1832, %v1842
      %v1872 = vadd.f32 %v1833, %v1842
      %v1873 = vadd.f32 %v1834, %v1842
      %v1874 = vadd.f32 %v1835, %v1842
      %v1875 = vadd.f32 %v1836, %v1842
      %v1876 = vld [vmem:[%s8] sm:$0xff]
      %v1877 = vld [vmem:[%s8 + $0x8] sm:$0xff]
      %vm1878 = vcmask 130048
      %v1880 = vsel %vm1878, %v1589, 0
      %v1883 = vsel %vm1878, %v1590, 0
      %v1886 = vsel %vm1878, %v1591, 0
      %v1889 = vsel %vm1878, %v1592, 0
      %v1892 = vsel %vm1878, %v1593, 0
      %v1895 = vsel %vm1878, %v1594, 0
      %v1898 = vsel %vm1878, %v1595, 0
      %v1901 = vsel %vm1878, %v1596, 0
      %v1904 = vsel %vm1878, %v1597, 0
      %v1907 = vsel %vm1878, %v1598, 0
      %v1910 = vsel %vm1878, %v1599, 0
      %v1913 = vsel %vm1878, %v1600, 0
      %v1916 = vsel %vm1878, %v1601, 0
      %v1919 = vsel %vm1878, %v1602, 0
      %v1922 = vsel %vm1878, %v1603, 0
      %v1925 = vsel %vm1878, %v1604, 0
      %v1928 = vsel %vm1878, %v1605, 0
      %v1931 = vsel %vm1878, %v1606, 0
      %v1934 = vsel %vm1878, %v1607, 0
      %v1937 = vsel %vm1878, %v1608, 0
      %v1940 = vsel %vm1878, %v1609, 0
      %v1943 = vsel %vm1878, %v1610, 0
      %v1946 = vsel %vm1878, %v1611, 0
      %v1949 = vsel %vm1878, %v1612, 0
      %v1952 = vsel %vm1878, %v1613, 0
      %v1955 = vsel %vm1878, %v1614, 0
      %v1958 = vsel %vm1878, %v1615, 0
      %v1961 = vsel %vm1878, %v1616, 0
      %v1964 = vsel %vm1878, %v1617, 0
      %v1967 = vsel %vm1878, %v1618, 0
      %v1970 = vsel %vm1878, %v1619, 0
      %v1973 = vsel %vm1878, %v1620, 0
      %1975 = vmatprep.subr.mxu0 0.0
      %1976 = vmatpush1.msra.mxu0 %v1876
      %1977 = vmatprep.subr.mxu0 0.0
      %1978 = vmatpush1.msra.mxu0 %v1877
      %1979 = vmatprep.subr.mxu0 0.0
      %1980 = vmatpush1.msra.mxu0 0.0
      %1981 = vmatprep.subr.mxu0 0.0
      %1982 = vmatpush1.msra.mxu0 0.0
      %1983 = vmatprep.subr.mxu0 0.0
      %1984 = vmatpush1.msra.mxu0 0.0
      %1985 = vmatprep.subr.mxu0 0.0
      %1986 = vmatpush1.msra.mxu0 0.0
      %1987 = vmatprep.subr.mxu0 0.0
      %1988 = vmatpush1.msra.mxu0 0.0
      %1989 = vmatprep.subr.mxu0 0.0
      %1990 = vmatpush1.msra.mxu0 0.0
      %1991 = vmatprep.subr.mxu0 0.0
      %1992 = vmatpush1.msra.mxu0 0.0
      %1993 = vmatprep.subr.mxu0 0.0
      %1994 = vmatpush1.msra.mxu0 0.0
      %1995 = vmatprep.subr.mxu0 0.0
      %1996 = vmatpush1.msra.mxu0 0.0
      %1997 = vmatprep.subr.mxu0 0.0
      %1998 = vmatpush1.msra.mxu0 0.0
      %1999 = vmatprep.subr.mxu0 0.0
      %2000 = vmatpush1.msra.mxu0 0.0
      %2001 = vmatprep.subr.mxu0 0.0
      %2002 = vmatpush1.msra.mxu0 0.0
      %2003 = vmatprep.subr.mxu0 0.0
      %2004 = vmatpush1.msra.mxu0 0.0
      %2005 = vmatprep.subr.mxu0 0.0
      %2006 = vmatpush1.msra.mxu0 0.0
      %2007 = vmatprep.subr.mxu0 0.0
      %2008 = vmatpush1.msra.mxu0 0.0
      %2009 = vmatprep.subr.mxu0 0.0
      %2010 = vmatpush1.msra.mxu0 0.0
      %2011 = vmatprep.subr.mxu0 0.0
      %2012 = vmatpush1.msra.mxu0 0.0
      %2013 = vmatprep.subr.mxu0 0.0
      %2014 = vmatpush1.msra.mxu0 0.0
      %2015 = vmatprep.subr.mxu0 0.0
      %2016 = vmatpush1.msra.mxu0 0.0
      %2017 = vmatprep.subr.mxu0 0.0
      %2018 = vmatpush1.msra.mxu0 0.0
      %2019 = vmatprep.subr.mxu0 0.0
      %2020 = vmatpush1.msra.mxu0 0.0
      %2021 = vmatprep.subr.mxu0 0.0
      %2022 = vmatpush1.msra.mxu0 0.0
      %2023 = vmatprep.subr.mxu0 0.0
      %2024 = vmatpush1.msra.mxu0 0.0
      %2025 = vmatprep.subr.mxu0 0.0
      %2026 = vmatpush1.msra.mxu0 0.0
      %2027 = vmatprep.subr.mxu0 0.0
      %2028 = vmatpush1.msra.mxu0 0.0
      %2029 = vmatprep.subr.mxu0 0.0
      %2030 = vmatpush1.msra.mxu0 0.0
      %2031 = vmatprep.subr.mxu0 0.0
      %2032 = vmatpush1.msra.mxu0 0.0
      %2033 = vmatprep.subr.mxu0 0.0
      %2034 = vmatpush1.msra.mxu0 0.0
      %2035 = vmatprep.subr.mxu0 0.0
      %2036 = vmatpush1.msra.mxu0 0.0
      %2037 = vmatprep.subr.mxu0 0.0
      %2038 = vmatpush1.msra.mxu0 0.0
      %2039 = vmatprep.mubr.f32.mxu0 0.0
      %2040 = vmatmul.mubr.f32.gmra.mrb[0].mxu0 %v1880
      %v2041 = vpop.f32.mrb[0].mxu0
      %v2042 = vadd.f32 0.0, %v2041
      %v2043 = vpop.f32.mrb[0].mxu0
      %2044 = vmatprep.mubr.f32.mxu0 0.0
      %2045 = vmatmul.mubr.f32.gmra.mrb[0].mxu0 %v1883
      %v2046 = vpop.f32.mrb[0].mxu0
      %v2047 = vadd.f32 0.0, %v2046
      %v2048 = vpop.f32.mrb[0].mxu0
      %2049 = vmatprep.mubr.f32.mxu0 0.0
      %2050 = vmatmul.mubr.f32.gmra.mrb[0].mxu0 %v1886
      %v2051 = vpop.f32.mrb[0].mxu0
      %v2052 = vadd.f32 0.0, %v2051
      %v2053 = vpop.f32.mrb[0].mxu0
      %2054 = vmatprep.mubr.f32.mxu0 0.0
      %2055 = vmatmul.mubr.f32.gmra.mrb[0].mxu0 %v1889
      %v2056 = vpop.f32.mrb[0].mxu0
      %v2057 = vadd.f32 0.0, %v2056
      %v2058 = vpop.f32.mrb[0].mxu0
      %2059 = vmatprep.mubr.f32.mxu0 0.0
      %2060 = vmatmul.mubr.f32.gmra.mrb[0].mxu0 %v1892
      %v2061 = vpop.f32.mrb[0].mxu0
      %v2062 = vadd.f32 0.0, %v2061
      %v2063 = vpop.f32.mrb[0].mxu0
      %2064 = vmatprep.mubr.f32.mxu0 0.0
      %2065 = vmatmul.mubr.f32.gmra.mrb[0].mxu0 %v1895
      %v2066 = vpop.f32.mrb[0].mxu0
      %v2067 = vadd.f32 0.0, %v2066
      %v2068 = vpop.f32.mrb[0].mxu0
      %2069 = vmatprep.mubr.f32.mxu0 0.0
      %2070 = vmatmul.mubr.f32.gmra.mrb[0].mxu0 %v1898
      %v2071 = vpop.f32.mrb[0].mxu0
      %v2072 = vadd.f32 0.0, %v2071
      %v2073 = vpop.f32.mrb[0].mxu0
      %2074 = vmatprep.mubr.f32.mxu0 0.0
      %2075 = vmatmul.mubr.f32.gmra.mrb[0].mxu0 %v1901
      %v2076 = vpop.f32.mrb[0].mxu0
      %v2077 = vadd.f32 0.0, %v2076
      %v2078 = vpop.f32.mrb[0].mxu0
      %2079 = vmatprep.mubr.f32.mxu0 0.0
      %2080 = vmatmul.mubr.f32.gmra.mrb[0].mxu0 %v1904
      %v2081 = vpop.f32.mrb[0].mxu0
      %v2082 = vadd.f32 0.0, %v2081
      %v2083 = vpop.f32.mrb[0].mxu0
      %2084 = vmatprep.mubr.f32.mxu0 0.0
      %2085 = vmatmul.mubr.f32.gmra.mrb[0].mxu0 %v1907
      %v2086 = vpop.f32.mrb[0].mxu0
      %v2087 = vadd.f32 0.0, %v2086
      %v2088 = vpop.f32.mrb[0].mxu0
      %2089 = vmatprep.mubr.f32.mxu0 0.0
      %2090 = vmatmul.mubr.f32.gmra.mrb[0].mxu0 %v1910
      %v2091 = vpop.f32.mrb[0].mxu0
      %v2092 = vadd.f32 0.0, %v2091
      %v2093 = vpop.f32.mrb[0].mxu0
      %2094 = vmatprep.mubr.f32.mxu0 0.0
      %2095 = vmatmul.mubr.f32.gmra.mrb[0].mxu0 %v1913
      %v2096 = vpop.f32.mrb[0].mxu0
      %v2097 = vadd.f32 0.0, %v2096
      %v2098 = vpop.f32.mrb[0].mxu0
      %2099 = vmatprep.mubr.f32.mxu0 0.0
      %2100 = vmatmul.mubr.f32.gmra.mrb[0].mxu0 %v1916
      %v2101 = vpop.f32.mrb[0].mxu0
      %v2102 = vadd.f32 0.0, %v2101
      %v2103 = vpop.f32.mrb[0].mxu0
      %2104 = vmatprep.mubr.f32.mxu0 0.0
      %2105 = vmatmul.mubr.f32.gmra.mrb[0].mxu0 %v1919
      %v2106 = vpop.f32.mrb[0].mxu0
      %v2107 = vadd.f32 0.0, %v2106
      %v2108 = vpop.f32.mrb[0].mxu0
      %2109 = vmatprep.mubr.f32.mxu0 0.0
      %2110 = vmatmul.mubr.f32.gmra.mrb[0].mxu0 %v1922
      %v2111 = vpop.f32.mrb[0].mxu0
      %v2112 = vadd.f32 0.0, %v2111
      %v2113 = vpop.f32.mrb[0].mxu0
      %2114 = vmatprep.mubr.f32.mxu0 0.0
      %2115 = vmatmul.mubr.f32.gmra.mrb[0].mxu0 %v1925
      %v2116 = vpop.f32.mrb[0].mxu0
      %v2117 = vadd.f32 0.0, %v2116
      %v2118 = vpop.f32.mrb[0].mxu0
      %2119 = vmatprep.mubr.f32.mxu0 0.0
      %2120 = vmatmul.mubr.f32.gmra.mrb[0].mxu0 %v1928
      %v2121 = vpop.f32.mrb[0].mxu0
      %v2122 = vadd.f32 0.0, %v2121
      %v2123 = vpop.f32.mrb[0].mxu0
      %2124 = vmatprep.mubr.f32.mxu0 0.0
      %2125 = vmatmul.mubr.f32.gmra.mrb[0].mxu0 %v1931
      %v2126 = vpop.f32.mrb[0].mxu0
      %v2127 = vadd.f32 0.0, %v2126
      %v2128 = vpop.f32.mrb[0].mxu0
      %2129 = vmatprep.mubr.f32.mxu0 0.0
      %2130 = vmatmul.mubr.f32.gmra.mrb[0].mxu0 %v1934
      %v2131 = vpop.f32.mrb[0].mxu0
      %v2132 = vadd.f32 0.0, %v2131
      %v2133 = vpop.f32.mrb[0].mxu0
      %2134 = vmatprep.mubr.f32.mxu0 0.0
      %2135 = vmatmul.mubr.f32.gmra.mrb[0].mxu0 %v1937
      %v2136 = vpop.f32.mrb[0].mxu0
      %v2137 = vadd.f32 0.0, %v2136
      %v2138 = vpop.f32.mrb[0].mxu0
      %2139 = vmatprep.mubr.f32.mxu0 0.0
      %2140 = vmatmul.mubr.f32.gmra.mrb[0].mxu0 %v1940
      %v2141 = vpop.f32.mrb[0].mxu0
      %v2142 = vadd.f32 0.0, %v2141
      %v2143 = vpop.f32.mrb[0].mxu0
      %2144 = vmatprep.mubr.f32.mxu0 0.0
      %2145 = vmatmul.mubr.f32.gmra.mrb[0].mxu0 %v1943
      %v2146 = vpop.f32.mrb[0].mxu0
      %v2147 = vadd.f32 0.0, %v2146
      %v2148 = vpop.f32.mrb[0].mxu0
      %2149 = vmatprep.mubr.f32.mxu0 0.0
      %2150 = vmatmul.mubr.f32.gmra.mrb[0].mxu0 %v1946
      %v2151 = vpop.f32.mrb[0].mxu0
      %v2152 = vadd.f32 0.0, %v2151
      %v2153 = vpop.f32.mrb[0].mxu0
      %2154 = vmatprep.mubr.f32.mxu0 0.0
      %2155 = vmatmul.mubr.f32.gmra.mrb[0].mxu0 %v1949
      %v2156 = vpop.f32.mrb[0].mxu0
      %v2157 = vadd.f32 0.0, %v2156
      %v2158 = vpop.f32.mrb[0].mxu0
      %2159 = vmatprep.mubr.f32.mxu0 0.0
      %2160 = vmatmul.mubr.f32.gmra.mrb[0].mxu0 %v1952
      %v2161 = vpop.f32.mrb[0].mxu0
      %v2162 = vadd.f32 0.0, %v2161
      %v2163 = vpop.f32.mrb[0].mxu0
      %2164 = vmatprep.mubr.f32.mxu0 0.0
      %2165 = vmatmul.mubr.f32.gmra.mrb[0].mxu0 %v1955
      %v2166 = vpop.f32.mrb[0].mxu0
      %v2167 = vadd.f32 0.0, %v2166
      %v2168 = vpop.f32.mrb[0].mxu0
      %2169 = vmatprep.mubr.f32.mxu0 0.0
      %2170 = vmatmul.mubr.f32.gmra.mrb[0].mxu0 %v1958
      %v2171 = vpop.f32.mrb[0].mxu0
      %v2172 = vadd.f32 0.0, %v2171
      %v2173 = vpop.f32.mrb[0].mxu0
      %2174 = vmatprep.mubr.f32.mxu0 0.0
      %2175 = vmatmul.mubr.f32.gmra.mrb[0].mxu0 %v1961
      %v2176 = vpop.f32.mrb[0].mxu0
      %v2177 = vadd.f32 0.0, %v2176
      %v2178 = vpop.f32.mrb[0].mxu0
      %2179 = vmatprep.mubr.f32.mxu0 0.0
      %2180 = vmatmul.mubr.f32.gmra.mrb[0].mxu0 %v1964
      %v2181 = vpop.f32.mrb[0].mxu0
      %v2182 = vadd.f32 0.0, %v2181
      %v2183 = vpop.f32.mrb[0].mxu0
      %2184 = vmatprep.mubr.f32.mxu0 0.0
      %2185 = vmatmul.mubr.f32.gmra.mrb[0].mxu0 %v1967
      %v2186 = vpop.f32.mrb[0].mxu0
      %v2187 = vadd.f32 0.0, %v2186
      %v2188 = vpop.f32.mrb[0].mxu0
      %2189 = vmatprep.mubr.f32.mxu0 0.0
      %2190 = vmatmul.mubr.f32.gmra.mrb[0].mxu0 %v1970
      %v2191 = vpop.f32.mrb[0].mxu0
      %v2192 = vadd.f32 0.0, %v2191
      %v2193 = vpop.f32.mrb[0].mxu0
      %2194 = vmatprep.mubr.f32.mxu0 0.0
      %2195 = vmatmul.mubr.f32.gmra.mrb[0].mxu0 %v1973
      %v2196 = vpop.f32.mrb[0].mxu0
      %v2197 = vadd.f32 0.0, %v2196
      %v2198 = vpop.f32.mrb[0].mxu0
      %2199 = vdwg.mxu0
      %v2200 = vadd.f32 %v1844, %v2042
      %v2201 = vadd.f32 %v1845, %v2047
      %v2202 = vadd.f32 %v1846, %v2052
      %v2203 = vadd.f32 %v1847, %v2057
      %v2204 = vadd.f32 %v1848, %v2062
      %v2205 = vadd.f32 %v1849, %v2067
      %v2206 = vadd.f32 %v1850, %v2072
      %v2207 = vadd.f32 %v1851, %v2077
      %v2208 = vadd.f32 %v1852, %v2082
      %v2209 = vadd.f32 %v1853, %v2087
      %v2210 = vadd.f32 %v1854, %v2092
      %v2211 = vadd.f32 %v1855, %v2097
      %v2212 = vadd.f32 %v1856, %v2102
      %v2213 = vadd.f32 %v1857, %v2107
      %v2214 = vadd.f32 %v1858, %v2112
      %v2215 = vadd.f32 %v1859, %v2117
      %v2216 = vadd.f32 %v1860, %v2122
      %v2217 = vadd.f32 %v1861, %v2127
      %v2218 = vadd.f32 %v1862, %v2132
      %v2219 = vadd.f32 %v1863, %v2137
      %v2220 = vadd.f32 %v1864, %v2142
      %v2221 = vadd.f32 %v1865, %v2147
      %v2222 = vadd.f32 %v1866, %v2152
      %v2223 = vadd.f32 %v1867, %v2157
      %v2224 = vadd.f32 %v1868, %v2162
      %v2225 = vadd.f32 %v1869, %v2167
      %v2226 = vadd.f32 %v1870, %v2172
      %v2227 = vadd.f32 %v1871, %v2177
      %v2228 = vadd.f32 %v1872, %v2182
      %v2229 = vadd.f32 %v1873, %v2187
      %v2230 = vadd.f32 %v1874, %v2192
      %v2231 = vadd.f32 %v1875, %v2197
      %v2232 = vld [vmem:[%s9] sm:$0xff]
      %v2234 = vsel %vm802, %v1213, 0
      %v2237 = vsel %vm802, %v1214, 0
      %v2240 = vsel %vm802, %v1215, 0
      %v2243 = vsel %vm802, %v1216, 0
      %v2246 = vsel %vm802, %v1217, 0
      %v2249 = vsel %vm802, %v1218, 0
      %v2252 = vsel %vm802, %v1219, 0
      %v2255 = vsel %vm802, %v1220, 0
      %v2258 = vsel %vm802, %v1221, 0
      %v2261 = vsel %vm802, %v1222, 0
      %v2264 = vsel %vm802, %v1223, 0
      %v2267 = vsel %vm802, %v1224, 0
      %v2270 = vsel %vm802, %v1225, 0
      %v2273 = vsel %vm802, %v1226, 0
      %v2276 = vsel %vm802, %v1227, 0
      %v2279 = vsel %vm802, %v1228, 0
      %v2282 = vsel %vm802, %v1229, 0
      %v2285 = vsel %vm802, %v1230, 0
      %v2288 = vsel %vm802, %v1231, 0
      %v2291 = vsel %vm802, %v1232, 0
      %v2294 = vsel %vm802, %v1233, 0
      %v2297 = vsel %vm802, %v1234, 0
      %v2300 = vsel %vm802, %v1235, 0
      %v2303 = vsel %vm802, %v1236, 0
      %v2306 = vsel %vm802, %v1237, 0
      %v2309 = vsel %vm802, %v1238, 0
      %v2312 = vsel %vm802, %v1239, 0
      %v2315 = vsel %vm802, %v1240, 0
      %v2318 = vsel %vm802, %v1241, 0
      %v2321 = vsel %vm802, %v1242, 0
      %v2324 = vsel %vm802, %v1243, 0
      %v2327 = vsel %vm802, %v1244, 0
      %2329 = vmatprep.subr.mxu0 0.0
      %2330 = vmatpush1.msra.mxu0 %v2232
      %2331 = vmatprep.subr.mxu0 0.0
      %2332 = vmatpush1.msra.mxu0 0.0
      %2333 = vmatprep.subr.mxu0 0.0
      %2334 = vmatpush1.msra.mxu0 0.0
      %2335 = vmatprep.subr.mxu0 0.0
      %2336 = vmatpush1.msra.mxu0 0.0
      %2337 = vmatprep.subr.mxu0 0.0
      %2338 = vmatpush1.msra.mxu0 0.0
      %2339 = vmatprep.subr.mxu0 0.0
      %2340 = vmatpush1.msra.mxu0 0.0
      %2341 = vmatprep.subr.mxu0 0.0
      %2342 = vmatpush1.msra.mxu0 0.0
      %2343 = vmatprep.subr.mxu0 0.0
      %2344 = vmatpush1.msra.mxu0 0.0
      %2345 = vmatprep.subr.mxu0 0.0
      %2346 = vmatpush1.msra.mxu0 0.0
      %2347 = vmatprep.subr.mxu0 0.0
      %2348 = vmatpush1.msra.mxu0 0.0
      %2349 = vmatprep.subr.mxu0 0.0
      %2350 = vmatpush1.msra.mxu0 0.0
      %2351 = vmatprep.subr.mxu0 0.0
      %2352 = vmatpush1.msra.mxu0 0.0
      %2353 = vmatprep.subr.mxu0 0.0
      %2354 = vmatpush1.msra.mxu0 0.0
      %2355 = vmatprep.subr.mxu0 0.0
      %2356 = vmatpush1.msra.mxu0 0.0
      %2357 = vmatprep.subr.mxu0 0.0
      %2358 = vmatpush1.msra.mxu0 0.0
      %2359 = vmatprep.subr.mxu0 0.0
      %2360 = vmatpush1.msra.mxu0 0.0
      %2361 = vmatprep.subr.mxu0 0.0
      %2362 = vmatpush1.msra.mxu0 0.0
      %2363 = vmatprep.subr.mxu0 0.0
      %2364 = vmatpush1.msra.mxu0 0.0
      %2365 = vmatprep.subr.mxu0 0.0
      %2366 = vmatpush1.msra.mxu0 0.0
      %2367 = vmatprep.subr.mxu0 0.0
      %2368 = vmatpush1.msra.mxu0 0.0
      %2369 = vmatprep.subr.mxu0 0.0
      %2370 = vmatpush1.msra.mxu0 0.0
      %2371 = vmatprep.subr.mxu0 0.0
      %2372 = vmatpush1.msra.mxu0 0.0
      %2373 = vmatprep.subr.mxu0 0.0
      %2374 = vmatpush1.msra.mxu0 0.0
      %2375 = vmatprep.subr.mxu0 0.0
      %2376 = vmatpush1.msra.mxu0 0.0
      %2377 = vmatprep.subr.mxu0 0.0
      %2378 = vmatpush1.msra.mxu0 0.0
      %2379 = vmatprep.subr.mxu0 0.0
      %2380 = vmatpush1.msra.mxu0 0.0
      %2381 = vmatprep.subr.mxu0 0.0
      %2382 = vmatpush1.msra.mxu0 0.0
      %2383 = vmatprep.subr.mxu0 0.0
      %2384 = vmatpush1.msra.mxu0 0.0
      %2385 = vmatprep.subr.mxu0 0.0
      %2386 = vmatpush1.msra.mxu0 0.0
      %2387 = vmatprep.subr.mxu0 0.0
      %2388 = vmatpush1.msra.mxu0 0.0
      %2389 = vmatprep.subr.mxu0 0.0
      %2390 = vmatpush1.msra.mxu0 0.0
      %2391 = vmatprep.subr.mxu0 0.0
      %2392 = vmatpush1.msra.mxu0 0.0
      %2393 = vmatprep.mubr.f32.mxu0 0.0
      %2394 = vmatmul.mubr.f32.gmra.mrb[0].mxu0 %v2234
      %v2395 = vpop.f32.mrb[0].mxu0
      %v2396 = vadd.f32 0.0, %v2395
      %v2397 = vpop.f32.mrb[0].mxu0
      %2398 = vmatprep.mubr.f32.mxu0 0.0
      %2399 = vmatmul.mubr.f32.gmra.mrb[0].mxu0 %v2237
      %v2400 = vpop.f32.mrb[0].mxu0
      %v2401 = vadd.f32 0.0, %v2400
      %v2402 = vpop.f32.mrb[0].mxu0
      %2403 = vmatprep.mubr.f32.mxu0 0.0
      %2404 = vmatmul.mubr.f32.gmra.mrb[0].mxu0 %v2240
      %v2405 = vpop.f32.mrb[0].mxu0
      %v2406 = vadd.f32 0.0, %v2405
      %v2407 = vpop.f32.mrb[0].mxu0
      %2408 = vmatprep.mubr.f32.mxu0 0.0
      %2409 = vmatmul.mubr.f32.gmra.mrb[0].mxu0 %v2243
      %v2410 = vpop.f32.mrb[0].mxu0
      %v2411 = vadd.f32 0.0, %v2410
      %v2412 = vpop.f32.mrb[0].mxu0
      %2413 = vmatprep.mubr.f32.mxu0 0.0
      %2414 = vmatmul.mubr.f32.gmra.mrb[0].mxu0 %v2246
      %v2415 = vpop.f32.mrb[0].mxu0
      %v2416 = vadd.f32 0.0, %v2415
      %v2417 = vpop.f32.mrb[0].mxu0
      %2418 = vmatprep.mubr.f32.mxu0 0.0
      %2419 = vmatmul.mubr.f32.gmra.mrb[0].mxu0 %v2249
      %v2420 = vpop.f32.mrb[0].mxu0
      %v2421 = vadd.f32 0.0, %v2420
      %v2422 = vpop.f32.mrb[0].mxu0
      %2423 = vmatprep.mubr.f32.mxu0 0.0
      %2424 = vmatmul.mubr.f32.gmra.mrb[0].mxu0 %v2252
      %v2425 = vpop.f32.mrb[0].mxu0
      %v2426 = vadd.f32 0.0, %v2425
      %v2427 = vpop.f32.mrb[0].mxu0
      %2428 = vmatprep.mubr.f32.mxu0 0.0
      %2429 = vmatmul.mubr.f32.gmra.mrb[0].mxu0 %v2255
      %v2430 = vpop.f32.mrb[0].mxu0
      %v2431 = vadd.f32 0.0, %v2430
      %v2432 = vpop.f32.mrb[0].mxu0
      %2433 = vmatprep.mubr.f32.mxu0 0.0
      %2434 = vmatmul.mubr.f32.gmra.mrb[0].mxu0 %v2258
      %v2435 = vpop.f32.mrb[0].mxu0
      %v2436 = vadd.f32 0.0, %v2435
      %v2437 = vpop.f32.mrb[0].mxu0
      %2438 = vmatprep.mubr.f32.mxu0 0.0
      %2439 = vmatmul.mubr.f32.gmra.mrb[0].mxu0 %v2261
      %v2440 = vpop.f32.mrb[0].mxu0
      %v2441 = vadd.f32 0.0, %v2440
      %v2442 = vpop.f32.mrb[0].mxu0
      %2443 = vmatprep.mubr.f32.mxu0 0.0
      %2444 = vmatmul.mubr.f32.gmra.mrb[0].mxu0 %v2264
      %v2445 = vpop.f32.mrb[0].mxu0
      %v2446 = vadd.f32 0.0, %v2445
      %v2447 = vpop.f32.mrb[0].mxu0
      %2448 = vmatprep.mubr.f32.mxu0 0.0
      %2449 = vmatmul.mubr.f32.gmra.mrb[0].mxu0 %v2267
      %v2450 = vpop.f32.mrb[0].mxu0
      %v2451 = vadd.f32 0.0, %v2450
      %v2452 = vpop.f32.mrb[0].mxu0
      %2453 = vmatprep.mubr.f32.mxu0 0.0
      %2454 = vmatmul.mubr.f32.gmra.mrb[0].mxu0 %v2270
      %v2455 = vpop.f32.mrb[0].mxu0
      %v2456 = vadd.f32 0.0, %v2455
      %v2457 = vpop.f32.mrb[0].mxu0
      %2458 = vmatprep.mubr.f32.mxu0 0.0
      %2459 = vmatmul.mubr.f32.gmra.mrb[0].mxu0 %v2273
      %v2460 = vpop.f32.mrb[0].mxu0
      %v2461 = vadd.f32 0.0, %v2460
      %v2462 = vpop.f32.mrb[0].mxu0
      %2463 = vmatprep.mubr.f32.mxu0 0.0
      %2464 = vmatmul.mubr.f32.gmra.mrb[0].mxu0 %v2276
      %v2465 = vpop.f32.mrb[0].mxu0
      %v2466 = vadd.f32 0.0, %v2465
      %v2467 = vpop.f32.mrb[0].mxu0
      %2468 = vmatprep.mubr.f32.mxu0 0.0
      %2469 = vmatmul.mubr.f32.gmra.mrb[0].mxu0 %v2279
      %v2470 = vpop.f32.mrb[0].mxu0
      %v2471 = vadd.f32 0.0, %v2470
      %v2472 = vpop.f32.mrb[0].mxu0
      %2473 = vmatprep.mubr.f32.mxu0 0.0
      %2474 = vmatmul.mubr.f32.gmra.mrb[0].mxu0 %v2282
      %v2475 = vpop.f32.mrb[0].mxu0
      %v2476 = vadd.f32 0.0, %v2475
      %v2477 = vpop.f32.mrb[0].mxu0
      %2478 = vmatprep.mubr.f32.mxu0 0.0
      %2479 = vmatmul.mubr.f32.gmra.mrb[0].mxu0 %v2285
      %v2480 = vpop.f32.mrb[0].mxu0
      %v2481 = vadd.f32 0.0, %v2480
      %v2482 = vpop.f32.mrb[0].mxu0
      %2483 = vmatprep.mubr.f32.mxu0 0.0
      %2484 = vmatmul.mubr.f32.gmra.mrb[0].mxu0 %v2288
      %v2485 = vpop.f32.mrb[0].mxu0
      %v2486 = vadd.f32 0.0, %v2485
      %v2487 = vpop.f32.mrb[0].mxu0
      %2488 = vmatprep.mubr.f32.mxu0 0.0
      %2489 = vmatmul.mubr.f32.gmra.mrb[0].mxu0 %v2291
      %v2490 = vpop.f32.mrb[0].mxu0
      %v2491 = vadd.f32 0.0, %v2490
      %v2492 = vpop.f32.mrb[0].mxu0
      %2493 = vmatprep.mubr.f32.mxu0 0.0
      %2494 = vmatmul.mubr.f32.gmra.mrb[0].mxu0 %v2294
      %v2495 = vpop.f32.mrb[0].mxu0
      %v2496 = vadd.f32 0.0, %v2495
      %v2497 = vpop.f32.mrb[0].mxu0
      %2498 = vmatprep.mubr.f32.mxu0 0.0
      %2499 = vmatmul.mubr.f32.gmra.mrb[0].mxu0 %v2297
      %v2500 = vpop.f32.mrb[0].mxu0
      %v2501 = vadd.f32 0.0, %v2500
      %v2502 = vpop.f32.mrb[0].mxu0
      %2503 = vmatprep.mubr.f32.mxu0 0.0
      %2504 = vmatmul.mubr.f32.gmra.mrb[0].mxu0 %v2300
      %v2505 = vpop.f32.mrb[0].mxu0
      %v2506 = vadd.f32 0.0, %v2505
      %v2507 = vpop.f32.mrb[0].mxu0
      %2508 = vmatprep.mubr.f32.mxu0 0.0
      %2509 = vmatmul.mubr.f32.gmra.mrb[0].mxu0 %v2303
      %v2510 = vpop.f32.mrb[0].mxu0
      %v2511 = vadd.f32 0.0, %v2510
      %v2512 = vpop.f32.mrb[0].mxu0
      %2513 = vmatprep.mubr.f32.mxu0 0.0
      %2514 = vmatmul.mubr.f32.gmra.mrb[0].mxu0 %v2306
      %v2515 = vpop.f32.mrb[0].mxu0
      %v2516 = vadd.f32 0.0, %v2515
      %v2517 = vpop.f32.mrb[0].mxu0
      %2518 = vmatprep.mubr.f32.mxu0 0.0
      %2519 = vmatmul.mubr.f32.gmra.mrb[0].mxu0 %v2309
      %v2520 = vpop.f32.mrb[0].mxu0
      %v2521 = vadd.f32 0.0, %v2520
      %v2522 = vpop.f32.mrb[0].mxu0
      %2523 = vmatprep.mubr.f32.mxu0 0.0
      %2524 = vmatmul.mubr.f32.gmra.mrb[0].mxu0 %v2312
      %v2525 = vpop.f32.mrb[0].mxu0
      %v2526 = vadd.f32 0.0, %v2525
      %v2527 = vpop.f32.mrb[0].mxu0
      %2528 = vmatprep.mubr.f32.mxu0 0.0
      %2529 = vmatmul.mubr.f32.gmra.mrb[0].mxu0 %v2315
      %v2530 = vpop.f32.mrb[0].mxu0
      %v2531 = vadd.f32 0.0, %v2530
      %v2532 = vpop.f32.mrb[0].mxu0
      %2533 = vmatprep.mubr.f32.mxu0 0.0
      %2534 = vmatmul.mubr.f32.gmra.mrb[0].mxu0 %v2318
      %v2535 = vpop.f32.mrb[0].mxu0
      %v2536 = vadd.f32 0.0, %v2535
      %v2537 = vpop.f32.mrb[0].mxu0
      %2538 = vmatprep.mubr.f32.mxu0 0.0
      %2539 = vmatmul.mubr.f32.gmra.mrb[0].mxu0 %v2321
      %v2540 = vpop.f32.mrb[0].mxu0
      %v2541 = vadd.f32 0.0, %v2540
      %v2542 = vpop.f32.mrb[0].mxu0
      %2543 = vmatprep.mubr.f32.mxu0 0.0
      %2544 = vmatmul.mubr.f32.gmra.mrb[0].mxu0 %v2324
      %v2545 = vpop.f32.mrb[0].mxu0
      %v2546 = vadd.f32 0.0, %v2545
      %v2547 = vpop.f32.mrb[0].mxu0
      %2548 = vmatprep.mubr.f32.mxu0 0.0
      %2549 = vmatmul.mubr.f32.gmra.mrb[0].mxu0 %v2327
      %v2550 = vpop.f32.mrb[0].mxu0
      %v2551 = vadd.f32 0.0, %v2550
      %v2552 = vpop.f32.mrb[0].mxu0
      %2553 = vdwg.mxu0
      %v2554 = vadd.f32 %v2200, %v2396
      %v2555 = vadd.f32 %v2201, %v2401
      %v2556 = vadd.f32 %v2202, %v2406
      %v2557 = vadd.f32 %v2203, %v2411
      %v2558 = vadd.f32 %v2204, %v2416
      %v2559 = vadd.f32 %v2205, %v2421
      %v2560 = vadd.f32 %v2206, %v2426
      %v2561 = vadd.f32 %v2207, %v2431
      %v2562 = vadd.f32 %v2208, %v2436
      %v2563 = vadd.f32 %v2209, %v2441
      %v2564 = vadd.f32 %v2210, %v2446
      %v2565 = vadd.f32 %v2211, %v2451
      %v2566 = vadd.f32 %v2212, %v2456
      %v2567 = vadd.f32 %v2213, %v2461
      %v2568 = vadd.f32 %v2214, %v2466
      %v2569 = vadd.f32 %v2215, %v2471
      %v2570 = vadd.f32 %v2216, %v2476
      %v2571 = vadd.f32 %v2217, %v2481
      %v2572 = vadd.f32 %v2218, %v2486
      %v2573 = vadd.f32 %v2219, %v2491
      %v2574 = vadd.f32 %v2220, %v2496
      %v2575 = vadd.f32 %v2221, %v2501
      %v2576 = vadd.f32 %v2222, %v2506
      %v2577 = vadd.f32 %v2223, %v2511
      %v2578 = vadd.f32 %v2224, %v2516
      %v2579 = vadd.f32 %v2225, %v2521
      %v2580 = vadd.f32 %v2226, %v2526
      %v2581 = vadd.f32 %v2227, %v2531
      %v2582 = vadd.f32 %v2228, %v2536
      %v2583 = vadd.f32 %v2229, %v2541
      %v2584 = vadd.f32 %v2230, %v2546
      %v2585 = vadd.f32 %v2231, %v2551
      %v2586 = vmax.f32 %v2554, 0.0
      %v2587 = vmax.f32 %v2555, 0.0
      %v2588 = vmax.f32 %v2556, 0.0
      %v2589 = vmax.f32 %v2557, 0.0
      %v2590 = vmax.f32 %v2558, 0.0
      %v2591 = vmax.f32 %v2559, 0.0
      %v2592 = vmax.f32 %v2560, 0.0
      %v2593 = vmax.f32 %v2561, 0.0
      %v2594 = vmax.f32 %v2562, 0.0
      %v2595 = vmax.f32 %v2563, 0.0
      %v2596 = vmax.f32 %v2564, 0.0
      %v2597 = vmax.f32 %v2565, 0.0
      %v2598 = vmax.f32 %v2566, 0.0
      %v2599 = vmax.f32 %v2567, 0.0
      %v2600 = vmax.f32 %v2568, 0.0
      %v2601 = vmax.f32 %v2569, 0.0
      %v2602 = vmax.f32 %v2570, 0.0
      %v2603 = vmax.f32 %v2571, 0.0
      %v2604 = vmax.f32 %v2572, 0.0
      %v2605 = vmax.f32 %v2573, 0.0
      %v2606 = vmax.f32 %v2574, 0.0
      %v2607 = vmax.f32 %v2575, 0.0
      %v2608 = vmax.f32 %v2576, 0.0
      %v2609 = vmax.f32 %v2577, 0.0
      %v2610 = vmax.f32 %v2578, 0.0
      %v2611 = vmax.f32 %v2579, 0.0
      %v2612 = vmax.f32 %v2580, 0.0
      %v2613 = vmax.f32 %v2581, 0.0
      %v2614 = vmax.f32 %v2582, 0.0
      %v2615 = vmax.f32 %v2583, 0.0
      %v2616 = vmax.f32 %v2584, 0.0
      %v2617 = vmax.f32 %v2585, 0.0
      %v2618 = vld [vmem:[%s11] sm:$0xff]
      %v2619 = vld [vmem:[%s11 + $0x8] sm:$0xff]
      %v2620 = vld [vmem:[%s11 + $0x10] sm:$0xff]
      %v2621 = vld [vmem:[%s11 + $0x18] sm:$0xff]
      %v2622 = vld [vmem:[%s12] sm:$0x1]
      %v2624 = vlaneseq
      %v2625 = vshrl.u32 %v2624, 7
      %v2626 = vsub.s32 0, %v2625
      %v2627 = vrot.slane %v2622, %v2626
      %vm2629 = vcmask 261120
      %v2631 = vsel %vm2629, %v2586, 0
      %v2634 = vsel %vm2629, %v2587, 0
      %v2637 = vsel %vm2629, %v2588, 0
      %v2640 = vsel %vm2629, %v2589, 0
      %v2643 = vsel %vm2629, %v2590, 0
      %v2646 = vsel %vm2629, %v2591, 0
      %v2649 = vsel %vm2629, %v2592, 0
      %v2652 = vsel %vm2629, %v2593, 0
      %v2655 = vsel %vm2629, %v2594, 0
      %v2658 = vsel %vm2629, %v2595, 0
      %v2661 = vsel %vm2629, %v2596, 0
      %v2664 = vsel %vm2629, %v2597, 0
      %v2667 = vsel %vm2629, %v2598, 0
      %v2670 = vsel %vm2629, %v2599, 0
      %v2673 = vsel %vm2629, %v2600, 0
      %v2676 = vsel %vm2629, %v2601, 0
      %v2679 = vsel %vm2629, %v2602, 0
      %v2682 = vsel %vm2629, %v2603, 0
      %v2685 = vsel %vm2629, %v2604, 0
      %v2688 = vsel %vm2629, %v2605, 0
      %v2691 = vsel %vm2629, %v2606, 0
      %v2694 = vsel %vm2629, %v2607, 0
      %v2697 = vsel %vm2629, %v2608, 0
      %v2700 = vsel %vm2629, %v2609, 0
      %v2703 = vsel %vm2629, %v2610, 0
      %v2706 = vsel %vm2629, %v2611, 0
      %v2709 = vsel %vm2629, %v2612, 0
      %v2712 = vsel %vm2629, %v2613, 0
      %v2715 = vsel %vm2629, %v2614, 0
      %v2718 = vsel %vm2629, %v2615, 0
      %v2721 = vsel %vm2629, %v2616, 0
      %v2724 = vsel %vm2629, %v2617, 0
      %2726 = vmatprep.subr.mxu0 0.0
      %2727 = vmatpush1.msra.mxu0 %v2618
      %2728 = vmatprep.subr.mxu0 0.0
      %2729 = vmatpush1.msra.mxu0 %v2619
      %2730 = vmatprep.subr.mxu0 0.0
      %2731 = vmatpush1.msra.mxu0 %v2620
      %2732 = vmatprep.subr.mxu0 0.0
      %2733 = vmatpush1.msra.mxu0 %v2621
      %2734 = vmatprep.subr.mxu0 0.0
      %2735 = vmatpush1.msra.mxu0 0.0
      %2736 = vmatprep.subr.mxu0 0.0
      %2737 = vmatpush1.msra.mxu0 0.0
      %2738 = vmatprep.subr.mxu0 0.0
      %2739 = vmatpush1.msra.mxu0 0.0
      %2740 = vmatprep.subr.mxu0 0.0
      %2741 = vmatpush1.msra.mxu0 0.0
      %2742 = vmatprep.subr.mxu0 0.0
      %2743 = vmatpush1.msra.mxu0 0.0
      %2744 = vmatprep.subr.mxu0 0.0
      %2745 = vmatpush1.msra.mxu0 0.0
      %2746 = vmatprep.subr.mxu0 0.0
      %2747 = vmatpush1.msra.mxu0 0.0
      %2748 = vmatprep.subr.mxu0 0.0
      %2749 = vmatpush1.msra.mxu0 0.0
      %2750 = vmatprep.subr.mxu0 0.0
      %2751 = vmatpush1.msra.mxu0 0.0
      %2752 = vmatprep.subr.mxu0 0.0
      %2753 = vmatpush1.msra.mxu0 0.0
      %2754 = vmatprep.subr.mxu0 0.0
      %2755 = vmatpush1.msra.mxu0 0.0
      %2756 = vmatprep.subr.mxu0 0.0
      %2757 = vmatpush1.msra.mxu0 0.0
      %2758 = vmatprep.subr.mxu0 0.0
      %2759 = vmatpush1.msra.mxu0 0.0
      %2760 = vmatprep.subr.mxu0 0.0
      %2761 = vmatpush1.msra.mxu0 0.0
      %2762 = vmatprep.subr.mxu0 0.0
      %2763 = vmatpush1.msra.mxu0 0.0
      %2764 = vmatprep.subr.mxu0 0.0
      %2765 = vmatpush1.msra.mxu0 0.0
      %2766 = vmatprep.subr.mxu0 0.0
      %2767 = vmatpush1.msra.mxu0 0.0
      %2768 = vmatprep.subr.mxu0 0.0
      %2769 = vmatpush1.msra.mxu0 0.0
      %2770 = vmatprep.subr.mxu0 0.0
      %2771 = vmatpush1.msra.mxu0 0.0
      %2772 = vmatprep.subr.mxu0 0.0
      %2773 = vmatpush1.msra.mxu0 0.0
      %2774 = vmatprep.subr.mxu0 0.0
      %2775 = vmatpush1.msra.mxu0 0.0
      %2776 = vmatprep.subr.mxu0 0.0
      %2777 = vmatpush1.msra.mxu0 0.0
      %2778 = vmatprep.subr.mxu0 0.0
      %2779 = vmatpush1.msra.mxu0 0.0
      %2780 = vmatprep.subr.mxu0 0.0
      %2781 = vmatpush1.msra.mxu0 0.0
      %2782 = vmatprep.subr.mxu0 0.0
      %2783 = vmatpush1.msra.mxu0 0.0
      %2784 = vmatprep.subr.mxu0 0.0
      %2785 = vmatpush1.msra.mxu0 0.0
      %2786 = vmatprep.subr.mxu0 0.0
      %2787 = vmatpush1.msra.mxu0 0.0
      %2788 = vmatprep.subr.mxu0 0.0
      %2789 = vmatpush1.msra.mxu0 0.0
      %2790 = vmatprep.mubr.f32.mxu0 0.0
      %2791 = vmatmul.mubr.f32.gmra.mrb[0].mxu0 %v2631
      %v2792 = vpop.f32.mrb[0].mxu0
      %v2793 = vadd.f32 %v2627, %v2792
      %v2794 = vpop.f32.mrb[0].mxu0
      %2795 = vmatprep.mubr.f32.mxu0 0.0
      %2796 = vmatmul.mubr.f32.gmra.mrb[0].mxu0 %v2634
      %v2797 = vpop.f32.mrb[0].mxu0
      %v2798 = vadd.f32 %v2627, %v2797
      %v2799 = vpop.f32.mrb[0].mxu0
      %2800 = vmatprep.mubr.f32.mxu0 0.0
      %2801 = vmatmul.mubr.f32.gmra.mrb[0].mxu0 %v2637
      %v2802 = vpop.f32.mrb[0].mxu0
      %v2803 = vadd.f32 %v2627, %v2802
      %v2804 = vpop.f32.mrb[0].mxu0
      %2805 = vmatprep.mubr.f32.mxu0 0.0
      %2806 = vmatmul.mubr.f32.gmra.mrb[0].mxu0 %v2640
      %v2807 = vpop.f32.mrb[0].mxu0
      %v2808 = vadd.f32 %v2627, %v2807
      %v2809 = vpop.f32.mrb[0].mxu0
      %2810 = vmatprep.mubr.f32.mxu0 0.0
      %2811 = vmatmul.mubr.f32.gmra.mrb[0].mxu0 %v2643
      %v2812 = vpop.f32.mrb[0].mxu0
      %v2813 = vadd.f32 %v2627, %v2812
      %v2814 = vpop.f32.mrb[0].mxu0
      %2815 = vmatprep.mubr.f32.mxu0 0.0
      %2816 = vmatmul.mubr.f32.gmra.mrb[0].mxu0 %v2646
      %v2817 = vpop.f32.mrb[0].mxu0
      %v2818 = vadd.f32 %v2627, %v2817
      %v2819 = vpop.f32.mrb[0].mxu0
      %2820 = vmatprep.mubr.f32.mxu0 0.0
      %2821 = vmatmul.mubr.f32.gmra.mrb[0].mxu0 %v2649
      %v2822 = vpop.f32.mrb[0].mxu0
      %v2823 = vadd.f32 %v2627, %v2822
      %v2824 = vpop.f32.mrb[0].mxu0
      %2825 = vmatprep.mubr.f32.mxu0 0.0
      %2826 = vmatmul.mubr.f32.gmra.mrb[0].mxu0 %v2652
      %v2827 = vpop.f32.mrb[0].mxu0
      %v2828 = vadd.f32 %v2627, %v2827
      %v2829 = vpop.f32.mrb[0].mxu0
      %2830 = vmatprep.mubr.f32.mxu0 0.0
      %2831 = vmatmul.mubr.f32.gmra.mrb[0].mxu0 %v2655
      %v2832 = vpop.f32.mrb[0].mxu0
      %v2833 = vadd.f32 %v2627, %v2832
      %v2834 = vpop.f32.mrb[0].mxu0
      %2835 = vmatprep.mubr.f32.mxu0 0.0
      %2836 = vmatmul.mubr.f32.gmra.mrb[0].mxu0 %v2658
      %v2837 = vpop.f32.mrb[0].mxu0
      %v2838 = vadd.f32 %v2627, %v2837
      %v2839 = vpop.f32.mrb[0].mxu0
      %2840 = vmatprep.mubr.f32.mxu0 0.0
      %2841 = vmatmul.mubr.f32.gmra.mrb[0].mxu0 %v2661
      %v2842 = vpop.f32.mrb[0].mxu0
      %v2843 = vadd.f32 %v2627, %v2842
      %v2844 = vpop.f32.mrb[0].mxu0
      %2845 = vmatprep.mubr.f32.mxu0 0.0
      %2846 = vmatmul.mubr.f32.gmra.mrb[0].mxu0 %v2664
      %v2847 = vpop.f32.mrb[0].mxu0
      %v2848 = vadd.f32 %v2627, %v2847
      %v2849 = vpop.f32.mrb[0].mxu0
      %2850 = vmatprep.mubr.f32.mxu0 0.0
      %2851 = vmatmul.mubr.f32.gmra.mrb[0].mxu0 %v2667
      %v2852 = vpop.f32.mrb[0].mxu0
      %v2853 = vadd.f32 %v2627, %v2852
      %v2854 = vpop.f32.mrb[0].mxu0
      %2855 = vmatprep.mubr.f32.mxu0 0.0
      %2856 = vmatmul.mubr.f32.gmra.mrb[0].mxu0 %v2670
      %v2857 = vpop.f32.mrb[0].mxu0
      %v2858 = vadd.f32 %v2627, %v2857
      %v2859 = vpop.f32.mrb[0].mxu0
      %2860 = vmatprep.mubr.f32.mxu0 0.0
      %2861 = vmatmul.mubr.f32.gmra.mrb[0].mxu0 %v2673
      %v2862 = vpop.f32.mrb[0].mxu0
      %v2863 = vadd.f32 %v2627, %v2862
      %v2864 = vpop.f32.mrb[0].mxu0
      %2865 = vmatprep.mubr.f32.mxu0 0.0
      %2866 = vmatmul.mubr.f32.gmra.mrb[0].mxu0 %v2676
      %v2867 = vpop.f32.mrb[0].mxu0
      %v2868 = vadd.f32 %v2627, %v2867
      %v2869 = vpop.f32.mrb[0].mxu0
      %2870 = vmatprep.mubr.f32.mxu0 0.0
      %2871 = vmatmul.mubr.f32.gmra.mrb[0].mxu0 %v2679
      %v2872 = vpop.f32.mrb[0].mxu0
      %v2873 = vadd.f32 %v2627, %v2872
      %v2874 = vpop.f32.mrb[0].mxu0
      %2875 = vmatprep.mubr.f32.mxu0 0.0
      %2876 = vmatmul.mubr.f32.gmra.mrb[0].mxu0 %v2682
      %v2877 = vpop.f32.mrb[0].mxu0
      %v2878 = vadd.f32 %v2627, %v2877
      %v2879 = vpop.f32.mrb[0].mxu0
      %2880 = vmatprep.mubr.f32.mxu0 0.0
      %2881 = vmatmul.mubr.f32.gmra.mrb[0].mxu0 %v2685
      %v2882 = vpop.f32.mrb[0].mxu0
      %v2883 = vadd.f32 %v2627, %v2882
      %v2884 = vpop.f32.mrb[0].mxu0
      %2885 = vmatprep.mubr.f32.mxu0 0.0
      %2886 = vmatmul.mubr.f32.gmra.mrb[0].mxu0 %v2688
      %v2887 = vpop.f32.mrb[0].mxu0
      %v2888 = vadd.f32 %v2627, %v2887
      %v2889 = vpop.f32.mrb[0].mxu0
      %2890 = vmatprep.mubr.f32.mxu0 0.0
      %2891 = vmatmul.mubr.f32.gmra.mrb[0].mxu0 %v2691
      %v2892 = vpop.f32.mrb[0].mxu0
      %v2893 = vadd.f32 %v2627, %v2892
      %v2894 = vpop.f32.mrb[0].mxu0
      %2895 = vmatprep.mubr.f32.mxu0 0.0
      %2896 = vmatmul.mubr.f32.gmra.mrb[0].mxu0 %v2694
      %v2897 = vpop.f32.mrb[0].mxu0
      %v2898 = vadd.f32 %v2627, %v2897
      %v2899 = vpop.f32.mrb[0].mxu0
      %2900 = vmatprep.mubr.f32.mxu0 0.0
      %2901 = vmatmul.mubr.f32.gmra.mrb[0].mxu0 %v2697
      %v2902 = vpop.f32.mrb[0].mxu0
      %v2903 = vadd.f32 %v2627, %v2902
      %v2904 = vpop.f32.mrb[0].mxu0
      %2905 = vmatprep.mubr.f32.mxu0 0.0
      %2906 = vmatmul.mubr.f32.gmra.mrb[0].mxu0 %v2700
      %v2907 = vpop.f32.mrb[0].mxu0
      %v2908 = vadd.f32 %v2627, %v2907
      %v2909 = vpop.f32.mrb[0].mxu0
      %2910 = vmatprep.mubr.f32.mxu0 0.0
      %2911 = vmatmul.mubr.f32.gmra.mrb[0].mxu0 %v2703
      %v2912 = vpop.f32.mrb[0].mxu0
      %v2913 = vadd.f32 %v2627, %v2912
      %v2914 = vpop.f32.mrb[0].mxu0
      %2915 = vmatprep.mubr.f32.mxu0 0.0
      %2916 = vmatmul.mubr.f32.gmra.mrb[0].mxu0 %v2706
      %v2917 = vpop.f32.mrb[0].mxu0
      %v2918 = vadd.f32 %v2627, %v2917
      %v2919 = vpop.f32.mrb[0].mxu0
      %2920 = vmatprep.mubr.f32.mxu0 0.0
      %2921 = vmatmul.mubr.f32.gmra.mrb[0].mxu0 %v2709
      %v2922 = vpop.f32.mrb[0].mxu0
      %v2923 = vadd.f32 %v2627, %v2922
      %v2924 = vpop.f32.mrb[0].mxu0
      %2925 = vmatprep.mubr.f32.mxu0 0.0
      %2926 = vmatmul.mubr.f32.gmra.mrb[0].mxu0 %v2712
      %v2927 = vpop.f32.mrb[0].mxu0
      %v2928 = vadd.f32 %v2627, %v2927
      %v2929 = vpop.f32.mrb[0].mxu0
      %2930 = vmatprep.mubr.f32.mxu0 0.0
      %2931 = vmatmul.mubr.f32.gmra.mrb[0].mxu0 %v2715
      %v2932 = vpop.f32.mrb[0].mxu0
      %v2933 = vadd.f32 %v2627, %v2932
      %v2934 = vpop.f32.mrb[0].mxu0
      %2935 = vmatprep.mubr.f32.mxu0 0.0
      %2936 = vmatmul.mubr.f32.gmra.mrb[0].mxu0 %v2718
      %v2937 = vpop.f32.mrb[0].mxu0
      %v2938 = vadd.f32 %v2627, %v2937
      %v2939 = vpop.f32.mrb[0].mxu0
      %2940 = vmatprep.mubr.f32.mxu0 0.0
      %2941 = vmatmul.mubr.f32.gmra.mrb[0].mxu0 %v2721
      %v2942 = vpop.f32.mrb[0].mxu0
      %v2943 = vadd.f32 %v2627, %v2942
      %v2944 = vpop.f32.mrb[0].mxu0
      %2945 = vmatprep.mubr.f32.mxu0 0.0
      %2946 = vmatmul.mubr.f32.gmra.mrb[0].mxu0 %v2724
      %v2947 = vpop.f32.mrb[0].mxu0
      %v2948 = vadd.f32 %v2627, %v2947
      %v2949 = vpop.f32.mrb[0].mxu0
      %2950 = vdwg.mxu0
      %v2951 = vmax.f32 %v2793, 0.0
      %v2952 = vmax.f32 %v2798, 0.0
      %v2953 = vmax.f32 %v2803, 0.0
      %v2954 = vmax.f32 %v2808, 0.0
      %v2955 = vmax.f32 %v2813, 0.0
      %v2956 = vmax.f32 %v2818, 0.0
      %v2957 = vmax.f32 %v2823, 0.0
      %v2958 = vmax.f32 %v2828, 0.0
      %v2959 = vmax.f32 %v2833, 0.0
      %v2960 = vmax.f32 %v2838, 0.0
      %v2961 = vmax.f32 %v2843, 0.0
      %v2962 = vmax.f32 %v2848, 0.0
      %v2963 = vmax.f32 %v2853, 0.0
      %v2964 = vmax.f32 %v2858, 0.0
      %v2965 = vmax.f32 %v2863, 0.0
      %v2966 = vmax.f32 %v2868, 0.0
      %v2967 = vmax.f32 %v2873, 0.0
      %v2968 = vmax.f32 %v2878, 0.0
      %v2969 = vmax.f32 %v2883, 0.0
      %v2970 = vmax.f32 %v2888, 0.0
      %v2971 = vmax.f32 %v2893, 0.0
      %v2972 = vmax.f32 %v2898, 0.0
      %v2973 = vmax.f32 %v2903, 0.0
      %v2974 = vmax.f32 %v2908, 0.0
      %v2975 = vmax.f32 %v2913, 0.0
      %v2976 = vmax.f32 %v2918, 0.0
      %v2977 = vmax.f32 %v2923, 0.0
      %v2978 = vmax.f32 %v2928, 0.0
      %v2979 = vmax.f32 %v2933, 0.0
      %v2980 = vmax.f32 %v2938, 0.0
      %v2981 = vmax.f32 %v2943, 0.0
      %v2982 = vmax.f32 %v2948, 0.0
      %v2983 = vld [vmem:[%s13] sm:$0xff]
      %v2984 = vld [vmem:[%s13 + $0x8] sm:$0xff]
      %v2985 = vld [vmem:[%s13 + $0x10] sm:$0xff]
      %v2986 = vld [vmem:[%s13 + $0x18] sm:$0xff]
      %v2987 = vld [vmem:[%s14] sm:$0x1]
      %v2989 = vlaneseq
      %v2990 = vshrl.u32 %v2989, 7
      %v2991 = vsub.s32 0, %v2990
      %v2992 = vrot.slane %v2987, %v2991
      %v2995 = vsel %vm2629, %v2951, 0
      %v2998 = vsel %vm2629, %v2952, 0
      %v3001 = vsel %vm2629, %v2953, 0
      %v3004 = vsel %vm2629, %v2954, 0
      %v3007 = vsel %vm2629, %v2955, 0
      %v3010 = vsel %vm2629, %v2956, 0
      %v3013 = vsel %vm2629, %v2957, 0
      %v3016 = vsel %vm2629, %v2958, 0
      %v3019 = vsel %vm2629, %v2959, 0
      %v3022 = vsel %vm2629, %v2960, 0
      %v3025 = vsel %vm2629, %v2961, 0
      %v3028 = vsel %vm2629, %v2962, 0
      %v3031 = vsel %vm2629, %v2963, 0
      %v3034 = vsel %vm2629, %v2964, 0
      %v3037 = vsel %vm2629, %v2965, 0
      %v3040 = vsel %vm2629, %v2966, 0
      %v3043 = vsel %vm2629, %v2967, 0
      %v3046 = vsel %vm2629, %v2968, 0
      %v3049 = vsel %vm2629, %v2969, 0
      %v3052 = vsel %vm2629, %v2970, 0
      %v3055 = vsel %vm2629, %v2971, 0
      %v3058 = vsel %vm2629, %v2972, 0
      %v3061 = vsel %vm2629, %v2973, 0
      %v3064 = vsel %vm2629, %v2974, 0
      %v3067 = vsel %vm2629, %v2975, 0
      %v3070 = vsel %vm2629, %v2976, 0
      %v3073 = vsel %vm2629, %v2977, 0
      %v3076 = vsel %vm2629, %v2978, 0
      %v3079 = vsel %vm2629, %v2979, 0
      %v3082 = vsel %vm2629, %v2980, 0
      %v3085 = vsel %vm2629, %v2981, 0
      %v3088 = vsel %vm2629, %v2982, 0
      %3090 = vmatprep.subr.mxu0 0.0
      %3091 = vmatpush1.msra.mxu0 %v2983
      %3092 = vmatprep.subr.mxu0 0.0
      %3093 = vmatpush1.msra.mxu0 %v2984
      %3094 = vmatprep.subr.mxu0 0.0
      %3095 = vmatpush1.msra.mxu0 %v2985
      %3096 = vmatprep.subr.mxu0 0.0
      %3097 = vmatpush1.msra.mxu0 %v2986
      %3098 = vmatprep.subr.mxu0 0.0
      %3099 = vmatpush1.msra.mxu0 0.0
      %3100 = vmatprep.subr.mxu0 0.0
      %3101 = vmatpush1.msra.mxu0 0.0
      %3102 = vmatprep.subr.mxu0 0.0
      %3103 = vmatpush1.msra.mxu0 0.0
      %3104 = vmatprep.subr.mxu0 0.0
      %3105 = vmatpush1.msra.mxu0 0.0
      %3106 = vmatprep.subr.mxu0 0.0
      %3107 = vmatpush1.msra.mxu0 0.0
      %3108 = vmatprep.subr.mxu0 0.0
      %3109 = vmatpush1.msra.mxu0 0.0
      %3110 = vmatprep.subr.mxu0 0.0
      %3111 = vmatpush1.msra.mxu0 0.0
      %3112 = vmatprep.subr.mxu0 0.0
      %3113 = vmatpush1.msra.mxu0 0.0
      %3114 = vmatprep.subr.mxu0 0.0
      %3115 = vmatpush1.msra.mxu0 0.0
      %3116 = vmatprep.subr.mxu0 0.0
      %3117 = vmatpush1.msra.mxu0 0.0
      %3118 = vmatprep.subr.mxu0 0.0
      %3119 = vmatpush1.msra.mxu0 0.0
      %3120 = vmatprep.subr.mxu0 0.0
      %3121 = vmatpush1.msra.mxu0 0.0
      %3122 = vmatprep.subr.mxu0 0.0
      %3123 = vmatpush1.msra.mxu0 0.0
      %3124 = vmatprep.subr.mxu0 0.0
      %3125 = vmatpush1.msra.mxu0 0.0
      %3126 = vmatprep.subr.mxu0 0.0
      %3127 = vmatpush1.msra.mxu0 0.0
      %3128 = vmatprep.subr.mxu0 0.0
      %3129 = vmatpush1.msra.mxu0 0.0
      %3130 = vmatprep.subr.mxu0 0.0
      %3131 = vmatpush1.msra.mxu0 0.0
      %3132 = vmatprep.subr.mxu0 0.0
      %3133 = vmatpush1.msra.mxu0 0.0
      %3134 = vmatprep.subr.mxu0 0.0
      %3135 = vmatpush1.msra.mxu0 0.0
      %3136 = vmatprep.subr.mxu0 0.0
      %3137 = vmatpush1.msra.mxu0 0.0
      %3138 = vmatprep.subr.mxu0 0.0
      %3139 = vmatpush1.msra.mxu0 0.0
      %3140 = vmatprep.subr.mxu0 0.0
      %3141 = vmatpush1.msra.mxu0 0.0
      %3142 = vmatprep.subr.mxu0 0.0
      %3143 = vmatpush1.msra.mxu0 0.0
      %3144 = vmatprep.subr.mxu0 0.0
      %3145 = vmatpush1.msra.mxu0 0.0
      %3146 = vmatprep.subr.mxu0 0.0
      %3147 = vmatpush1.msra.mxu0 0.0
      %3148 = vmatprep.subr.mxu0 0.0
      %3149 = vmatpush1.msra.mxu0 0.0
      %3150 = vmatprep.subr.mxu0 0.0
      %3151 = vmatpush1.msra.mxu0 0.0
      %3152 = vmatprep.subr.mxu0 0.0
      %3153 = vmatpush1.msra.mxu0 0.0
      %3154 = vmatprep.mubr.f32.mxu0 0.0
      %3155 = vmatmul.mubr.f32.gmra.mrb[0].mxu0 %v2995
      %v3156 = vpop.f32.mrb[0].mxu0
      %v3157 = vadd.f32 %v2992, %v3156
      %v3158 = vpop.f32.mrb[0].mxu0
      %3159 = vmatprep.mubr.f32.mxu0 0.0
      %3160 = vmatmul.mubr.f32.gmra.mrb[0].mxu0 %v2998
      %v3161 = vpop.f32.mrb[0].mxu0
      %v3162 = vadd.f32 %v2992, %v3161
      %v3163 = vpop.f32.mrb[0].mxu0
      %3164 = vmatprep.mubr.f32.mxu0 0.0
      %3165 = vmatmul.mubr.f32.gmra.mrb[0].mxu0 %v3001
      %v3166 = vpop.f32.mrb[0].mxu0
      %v3167 = vadd.f32 %v2992, %v3166
      %v3168 = vpop.f32.mrb[0].mxu0
      %3169 = vmatprep.mubr.f32.mxu0 0.0
      %3170 = vmatmul.mubr.f32.gmra.mrb[0].mxu0 %v3004
      %v3171 = vpop.f32.mrb[0].mxu0
      %v3172 = vadd.f32 %v2992, %v3171
      %v3173 = vpop.f32.mrb[0].mxu0
      %3174 = vmatprep.mubr.f32.mxu0 0.0
      %3175 = vmatmul.mubr.f32.gmra.mrb[0].mxu0 %v3007
      %v3176 = vpop.f32.mrb[0].mxu0
      %v3177 = vadd.f32 %v2992, %v3176
      %v3178 = vpop.f32.mrb[0].mxu0
      %3179 = vmatprep.mubr.f32.mxu0 0.0
      %3180 = vmatmul.mubr.f32.gmra.mrb[0].mxu0 %v3010
      %v3181 = vpop.f32.mrb[0].mxu0
      %v3182 = vadd.f32 %v2992, %v3181
      %v3183 = vpop.f32.mrb[0].mxu0
      %3184 = vmatprep.mubr.f32.mxu0 0.0
      %3185 = vmatmul.mubr.f32.gmra.mrb[0].mxu0 %v3013
      %v3186 = vpop.f32.mrb[0].mxu0
      %v3187 = vadd.f32 %v2992, %v3186
      %v3188 = vpop.f32.mrb[0].mxu0
      %3189 = vmatprep.mubr.f32.mxu0 0.0
      %3190 = vmatmul.mubr.f32.gmra.mrb[0].mxu0 %v3016
      %v3191 = vpop.f32.mrb[0].mxu0
      %v3192 = vadd.f32 %v2992, %v3191
      %v3193 = vpop.f32.mrb[0].mxu0
      %3194 = vmatprep.mubr.f32.mxu0 0.0
      %3195 = vmatmul.mubr.f32.gmra.mrb[0].mxu0 %v3019
      %v3196 = vpop.f32.mrb[0].mxu0
      %v3197 = vadd.f32 %v2992, %v3196
      %v3198 = vpop.f32.mrb[0].mxu0
      %3199 = vmatprep.mubr.f32.mxu0 0.0
      %3200 = vmatmul.mubr.f32.gmra.mrb[0].mxu0 %v3022
      %v3201 = vpop.f32.mrb[0].mxu0
      %v3202 = vadd.f32 %v2992, %v3201
      %v3203 = vpop.f32.mrb[0].mxu0
      %3204 = vmatprep.mubr.f32.mxu0 0.0
      %3205 = vmatmul.mubr.f32.gmra.mrb[0].mxu0 %v3025
      %v3206 = vpop.f32.mrb[0].mxu0
      %v3207 = vadd.f32 %v2992, %v3206
      %v3208 = vpop.f32.mrb[0].mxu0
      %3209 = vmatprep.mubr.f32.mxu0 0.0
      %3210 = vmatmul.mubr.f32.gmra.mrb[0].mxu0 %v3028
      %v3211 = vpop.f32.mrb[0].mxu0
      %v3212 = vadd.f32 %v2992, %v3211
      %v3213 = vpop.f32.mrb[0].mxu0
      %3214 = vmatprep.mubr.f32.mxu0 0.0
      %3215 = vmatmul.mubr.f32.gmra.mrb[0].mxu0 %v3031
      %v3216 = vpop.f32.mrb[0].mxu0
      %v3217 = vadd.f32 %v2992, %v3216
      %v3218 = vpop.f32.mrb[0].mxu0
      %3219 = vmatprep.mubr.f32.mxu0 0.0
      %3220 = vmatmul.mubr.f32.gmra.mrb[0].mxu0 %v3034
      %v3221 = vpop.f32.mrb[0].mxu0
      %v3222 = vadd.f32 %v2992, %v3221
      %v3223 = vpop.f32.mrb[0].mxu0
      %3224 = vmatprep.mubr.f32.mxu0 0.0
      %3225 = vmatmul.mubr.f32.gmra.mrb[0].mxu0 %v3037
      %v3226 = vpop.f32.mrb[0].mxu0
      %v3227 = vadd.f32 %v2992, %v3226
      %v3228 = vpop.f32.mrb[0].mxu0
      %3229 = vmatprep.mubr.f32.mxu0 0.0
      %3230 = vmatmul.mubr.f32.gmra.mrb[0].mxu0 %v3040
      %v3231 = vpop.f32.mrb[0].mxu0
      %v3232 = vadd.f32 %v2992, %v3231
      %v3233 = vpop.f32.mrb[0].mxu0
      %3234 = vmatprep.mubr.f32.mxu0 0.0
      %3235 = vmatmul.mubr.f32.gmra.mrb[0].mxu0 %v3043
      %v3236 = vpop.f32.mrb[0].mxu0
      %v3237 = vadd.f32 %v2992, %v3236
      %v3238 = vpop.f32.mrb[0].mxu0
      %3239 = vmatprep.mubr.f32.mxu0 0.0
      %3240 = vmatmul.mubr.f32.gmra.mrb[0].mxu0 %v3046
      %v3241 = vpop.f32.mrb[0].mxu0
      %v3242 = vadd.f32 %v2992, %v3241
      %v3243 = vpop.f32.mrb[0].mxu0
      %3244 = vmatprep.mubr.f32.mxu0 0.0
      %3245 = vmatmul.mubr.f32.gmra.mrb[0].mxu0 %v3049
      %v3246 = vpop.f32.mrb[0].mxu0
      %v3247 = vadd.f32 %v2992, %v3246
      %v3248 = vpop.f32.mrb[0].mxu0
      %3249 = vmatprep.mubr.f32.mxu0 0.0
      %3250 = vmatmul.mubr.f32.gmra.mrb[0].mxu0 %v3052
      %v3251 = vpop.f32.mrb[0].mxu0
      %v3252 = vadd.f32 %v2992, %v3251
      %v3253 = vpop.f32.mrb[0].mxu0
      %3254 = vmatprep.mubr.f32.mxu0 0.0
      %3255 = vmatmul.mubr.f32.gmra.mrb[0].mxu0 %v3055
      %v3256 = vpop.f32.mrb[0].mxu0
      %v3257 = vadd.f32 %v2992, %v3256
      %v3258 = vpop.f32.mrb[0].mxu0
      %3259 = vmatprep.mubr.f32.mxu0 0.0
      %3260 = vmatmul.mubr.f32.gmra.mrb[0].mxu0 %v3058
      %v3261 = vpop.f32.mrb[0].mxu0
      %v3262 = vadd.f32 %v2992, %v3261
      %v3263 = vpop.f32.mrb[0].mxu0
      %3264 = vmatprep.mubr.f32.mxu0 0.0
      %3265 = vmatmul.mubr.f32.gmra.mrb[0].mxu0 %v3061
      %v3266 = vpop.f32.mrb[0].mxu0
      %v3267 = vadd.f32 %v2992, %v3266
      %v3268 = vpop.f32.mrb[0].mxu0
      %3269 = vmatprep.mubr.f32.mxu0 0.0
      %3270 = vmatmul.mubr.f32.gmra.mrb[0].mxu0 %v3064
      %v3271 = vpop.f32.mrb[0].mxu0
      %v3272 = vadd.f32 %v2992, %v3271
      %v3273 = vpop.f32.mrb[0].mxu0
      %3274 = vmatprep.mubr.f32.mxu0 0.0
      %3275 = vmatmul.mubr.f32.gmra.mrb[0].mxu0 %v3067
      %v3276 = vpop.f32.mrb[0].mxu0
      %v3277 = vadd.f32 %v2992, %v3276
      %v3278 = vpop.f32.mrb[0].mxu0
      %3279 = vmatprep.mubr.f32.mxu0 0.0
      %3280 = vmatmul.mubr.f32.gmra.mrb[0].mxu0 %v3070
      %v3281 = vpop.f32.mrb[0].mxu0
      %v3282 = vadd.f32 %v2992, %v3281
      %v3283 = vpop.f32.mrb[0].mxu0
      %3284 = vmatprep.mubr.f32.mxu0 0.0
      %3285 = vmatmul.mubr.f32.gmra.mrb[0].mxu0 %v3073
      %v3286 = vpop.f32.mrb[0].mxu0
      %v3287 = vadd.f32 %v2992, %v3286
      %v3288 = vpop.f32.mrb[0].mxu0
      %3289 = vmatprep.mubr.f32.mxu0 0.0
      %3290 = vmatmul.mubr.f32.gmra.mrb[0].mxu0 %v3076
      %v3291 = vpop.f32.mrb[0].mxu0
      %v3292 = vadd.f32 %v2992, %v3291
      %v3293 = vpop.f32.mrb[0].mxu0
      %3294 = vmatprep.mubr.f32.mxu0 0.0
      %3295 = vmatmul.mubr.f32.gmra.mrb[0].mxu0 %v3079
      %v3296 = vpop.f32.mrb[0].mxu0
      %v3297 = vadd.f32 %v2992, %v3296
      %v3298 = vpop.f32.mrb[0].mxu0
      %3299 = vmatprep.mubr.f32.mxu0 0.0
      %3300 = vmatmul.mubr.f32.gmra.mrb[0].mxu0 %v3082
      %v3301 = vpop.f32.mrb[0].mxu0
      %v3302 = vadd.f32 %v2992, %v3301
      %v3303 = vpop.f32.mrb[0].mxu0
      %3304 = vmatprep.mubr.f32.mxu0 0.0
      %3305 = vmatmul.mubr.f32.gmra.mrb[0].mxu0 %v3085
      %v3306 = vpop.f32.mrb[0].mxu0
      %v3307 = vadd.f32 %v2992, %v3306
      %v3308 = vpop.f32.mrb[0].mxu0
      %3309 = vmatprep.mubr.f32.mxu0 0.0
      %3310 = vmatmul.mubr.f32.gmra.mrb[0].mxu0 %v3088
      %v3311 = vpop.f32.mrb[0].mxu0
      %v3312 = vadd.f32 %v2992, %v3311
      %v3313 = vpop.f32.mrb[0].mxu0
      %3314 = vdwg.mxu0
      %v3315 = vsel %vm2629, %v3157, 0.0
      %3316 = vadd.xlane.f32.xlu0 %v3315
      %v3317 = vpop.xlane.xlu0 %3316
      %v3318 = vsel %vm2629, %v3162, 0.0
      %3319 = vadd.xlane.f32.xlu0 %v3318
      %v3320 = vpop.xlane.xlu0 %3319
      %v3321 = vsel %vm2629, %v3167, 0.0
      %3322 = vadd.xlane.f32.xlu0 %v3321
      %v3323 = vpop.xlane.xlu0 %3322
      %v3324 = vsel %vm2629, %v3172, 0.0
      %3325 = vadd.xlane.f32.xlu0 %v3324
      %v3326 = vpop.xlane.xlu0 %3325
      %v3327 = vsel %vm2629, %v3177, 0.0
      %3328 = vadd.xlane.f32.xlu0 %v3327
      %v3329 = vpop.xlane.xlu0 %3328
      %v3330 = vsel %vm2629, %v3182, 0.0
      %3331 = vadd.xlane.f32.xlu0 %v3330
      %v3332 = vpop.xlane.xlu0 %3331
      %v3333 = vsel %vm2629, %v3187, 0.0
      %3334 = vadd.xlane.f32.xlu0 %v3333
      %v3335 = vpop.xlane.xlu0 %3334
      %v3336 = vsel %vm2629, %v3192, 0.0
      %3337 = vadd.xlane.f32.xlu0 %v3336
      %v3338 = vpop.xlane.xlu0 %3337
      %v3339 = vsel %vm2629, %v3197, 0.0
      %3340 = vadd.xlane.f32.xlu0 %v3339
      %v3341 = vpop.xlane.xlu0 %3340
      %v3342 = vsel %vm2629, %v3202, 0.0
      %3343 = vadd.xlane.f32.xlu0 %v3342
      %v3344 = vpop.xlane.xlu0 %3343
      %v3345 = vsel %vm2629, %v3207, 0.0
      %3346 = vadd.xlane.f32.xlu0 %v3345
      %v3347 = vpop.xlane.xlu0 %3346
      %v3348 = vsel %vm2629, %v3212, 0.0
      %3349 = vadd.xlane.f32.xlu0 %v3348
      %v3350 = vpop.xlane.xlu0 %3349
      %v3351 = vsel %vm2629, %v3217, 0.0
      %3352 = vadd.xlane.f32.xlu0 %v3351
      %v3353 = vpop.xlane.xlu0 %3352
      %v3354 = vsel %vm2629, %v3222, 0.0
      %3355 = vadd.xlane.f32.xlu0 %v3354
      %v3356 = vpop.xlane.xlu0 %3355
      %v3357 = vsel %vm2629, %v3227, 0.0
      %3358 = vadd.xlane.f32.xlu0 %v3357
      %v3359 = vpop.xlane.xlu0 %3358
      %v3360 = vsel %vm2629, %v3232, 0.0
      %3361 = vadd.xlane.f32.xlu0 %v3360
      %v3362 = vpop.xlane.xlu0 %3361
      %v3363 = vsel %vm2629, %v3237, 0.0
      %3364 = vadd.xlane.f32.xlu0 %v3363
      %v3365 = vpop.xlane.xlu0 %3364
      %v3366 = vsel %vm2629, %v3242, 0.0
      %3367 = vadd.xlane.f32.xlu0 %v3366
      %v3368 = vpop.xlane.xlu0 %3367
      %v3369 = vsel %vm2629, %v3247, 0.0
      %3370 = vadd.xlane.f32.xlu0 %v3369
      %v3371 = vpop.xlane.xlu0 %3370
      %v3372 = vsel %vm2629, %v3252, 0.0
      %3373 = vadd.xlane.f32.xlu0 %v3372
      %v3374 = vpop.xlane.xlu0 %3373
      %v3375 = vsel %vm2629, %v3257, 0.0
      %3376 = vadd.xlane.f32.xlu0 %v3375
      %v3377 = vpop.xlane.xlu0 %3376
      %v3378 = vsel %vm2629, %v3262, 0.0
      %3379 = vadd.xlane.f32.xlu0 %v3378
      %v3380 = vpop.xlane.xlu0 %3379
      %v3381 = vsel %vm2629, %v3267, 0.0
      %3382 = vadd.xlane.f32.xlu0 %v3381
      %v3383 = vpop.xlane.xlu0 %3382
      %v3384 = vsel %vm2629, %v3272, 0.0
      %3385 = vadd.xlane.f32.xlu0 %v3384
      %v3386 = vpop.xlane.xlu0 %3385
      %v3387 = vsel %vm2629, %v3277, 0.0
      %3388 = vadd.xlane.f32.xlu0 %v3387
      %v3389 = vpop.xlane.xlu0 %3388
      %v3390 = vsel %vm2629, %v3282, 0.0
      %3391 = vadd.xlane.f32.xlu0 %v3390
      %v3392 = vpop.xlane.xlu0 %3391
      %v3393 = vsel %vm2629, %v3287, 0.0
      %3394 = vadd.xlane.f32.xlu0 %v3393
      %v3395 = vpop.xlane.xlu0 %3394
      %v3396 = vsel %vm2629, %v3292, 0.0
      %3397 = vadd.xlane.f32.xlu0 %v3396
      %v3398 = vpop.xlane.xlu0 %3397
      %v3399 = vsel %vm2629, %v3297, 0.0
      %3400 = vadd.xlane.f32.xlu0 %v3399
      %v3401 = vpop.xlane.xlu0 %3400
      %v3402 = vsel %vm2629, %v3302, 0.0
      %3403 = vadd.xlane.f32.xlu0 %v3402
      %v3404 = vpop.xlane.xlu0 %3403
      %v3405 = vsel %vm2629, %v3307, 0.0
      %3406 = vadd.xlane.f32.xlu0 %v3405
      %v3407 = vpop.xlane.xlu0 %3406
      %v3408 = vsel %vm2629, %v3312, 0.0
      %3409 = vadd.xlane.f32.xlu0 %v3408
      %v3410 = vpop.xlane.xlu0 %3409
      %v3411 = vrcp.pop 32.0
      %v3412 = vmul.f32 %v3317, %v3411
      %v3413 = vmul.f32 %v3320, %v3411
      %v3414 = vmul.f32 %v3323, %v3411
      %v3415 = vmul.f32 %v3326, %v3411
      %v3416 = vmul.f32 %v3329, %v3411
      %v3417 = vmul.f32 %v3332, %v3411
      %v3418 = vmul.f32 %v3335, %v3411
      %v3419 = vmul.f32 %v3338, %v3411
      %v3420 = vmul.f32 %v3341, %v3411
      %v3421 = vmul.f32 %v3344, %v3411
      %v3422 = vmul.f32 %v3347, %v3411
      %v3423 = vmul.f32 %v3350, %v3411
      %v3424 = vmul.f32 %v3353, %v3411
      %v3425 = vmul.f32 %v3356, %v3411
      %v3426 = vmul.f32 %v3359, %v3411
      %v3427 = vmul.f32 %v3362, %v3411
      %v3428 = vmul.f32 %v3365, %v3411
      %v3429 = vmul.f32 %v3368, %v3411
      %v3430 = vmul.f32 %v3371, %v3411
      %v3431 = vmul.f32 %v3374, %v3411
      %v3432 = vmul.f32 %v3377, %v3411
      %v3433 = vmul.f32 %v3380, %v3411
      %v3434 = vmul.f32 %v3383, %v3411
      %v3435 = vmul.f32 %v3386, %v3411
      %v3436 = vmul.f32 %v3389, %v3411
      %v3437 = vmul.f32 %v3392, %v3411
      %v3438 = vmul.f32 %v3395, %v3411
      %v3439 = vmul.f32 %v3398, %v3411
      %v3440 = vmul.f32 %v3401, %v3411
      %v3441 = vmul.f32 %v3404, %v3411
      %v3442 = vmul.f32 %v3407, %v3411
      %v3443 = vmul.f32 %v3410, %v3411
      %v3444 = vsub.f32 %v3157, %v3412
      %v3445 = vsub.f32 %v3162, %v3413
      %v3446 = vsub.f32 %v3167, %v3414
      %v3447 = vsub.f32 %v3172, %v3415
      %v3448 = vsub.f32 %v3177, %v3416
      %v3449 = vsub.f32 %v3182, %v3417
      %v3450 = vsub.f32 %v3187, %v3418
      %v3451 = vsub.f32 %v3192, %v3419
      %v3452 = vsub.f32 %v3197, %v3420
      %v3453 = vsub.f32 %v3202, %v3421
      %v3454 = vsub.f32 %v3207, %v3422
      %v3455 = vsub.f32 %v3212, %v3423
      %v3456 = vsub.f32 %v3217, %v3424
      %v3457 = vsub.f32 %v3222, %v3425
      %v3458 = vsub.f32 %v3227, %v3426
      %v3459 = vsub.f32 %v3232, %v3427
      %v3460 = vsub.f32 %v3237, %v3428
      %v3461 = vsub.f32 %v3242, %v3429
      %v3462 = vsub.f32 %v3247, %v3430
      %v3463 = vsub.f32 %v3252, %v3431
      %v3464 = vsub.f32 %v3257, %v3432
      %v3465 = vsub.f32 %v3262, %v3433
      %v3466 = vsub.f32 %v3267, %v3434
      %v3467 = vsub.f32 %v3272, %v3435
      %v3468 = vsub.f32 %v3277, %v3436
      %v3469 = vsub.f32 %v3282, %v3437
      %v3470 = vsub.f32 %v3287, %v3438
      %v3471 = vsub.f32 %v3292, %v3439
      %v3472 = vsub.f32 %v3297, %v3440
      %v3473 = vsub.f32 %v3302, %v3441
      %v3474 = vsub.f32 %v3307, %v3442
      %v3475 = vsub.f32 %v3312, %v3443
      %v3476 = vmul.f32 %v3444, %v3444
      %v3477 = vmul.f32 %v3445, %v3445
      %v3478 = vmul.f32 %v3446, %v3446
      %v3479 = vmul.f32 %v3447, %v3447
      %v3480 = vmul.f32 %v3448, %v3448
      %v3481 = vmul.f32 %v3449, %v3449
      %v3482 = vmul.f32 %v3450, %v3450
      %v3483 = vmul.f32 %v3451, %v3451
      %v3484 = vmul.f32 %v3452, %v3452
      %v3485 = vmul.f32 %v3453, %v3453
      %v3486 = vmul.f32 %v3454, %v3454
      %v3487 = vmul.f32 %v3455, %v3455
      %v3488 = vmul.f32 %v3456, %v3456
      %v3489 = vmul.f32 %v3457, %v3457
      %v3490 = vmul.f32 %v3458, %v3458
      %v3491 = vmul.f32 %v3459, %v3459
      %v3492 = vmul.f32 %v3460, %v3460
      %v3493 = vmul.f32 %v3461, %v3461
      %v3494 = vmul.f32 %v3462, %v3462
      %v3495 = vmul.f32 %v3463, %v3463
      %v3496 = vmul.f32 %v3464, %v3464
      %v3497 = vmul.f32 %v3465, %v3465
      %v3498 = vmul.f32 %v3466, %v3466
      %v3499 = vmul.f32 %v3467, %v3467
      %v3500 = vmul.f32 %v3468, %v3468
      %v3501 = vmul.f32 %v3469, %v3469
      %v3502 = vmul.f32 %v3470, %v3470
      %v3503 = vmul.f32 %v3471, %v3471
      %v3504 = vmul.f32 %v3472, %v3472
      %v3505 = vmul.f32 %v3473, %v3473
      %v3506 = vmul.f32 %v3474, %v3474
      %v3507 = vmul.f32 %v3475, %v3475
      %v3508 = vsel %vm2629, %v3476, 0.0
      %3509 = vadd.xlane.f32.xlu0 %v3508
      %v3510 = vpop.xlane.xlu0 %3509
      %v3511 = vsel %vm2629, %v3477, 0.0
      %3512 = vadd.xlane.f32.xlu0 %v3511
      %v3513 = vpop.xlane.xlu0 %3512
      %v3514 = vsel %vm2629, %v3478, 0.0
      %3515 = vadd.xlane.f32.xlu0 %v3514
      %v3516 = vpop.xlane.xlu0 %3515
      %v3517 = vsel %vm2629, %v3479, 0.0
      %3518 = vadd.xlane.f32.xlu0 %v3517
      %v3519 = vpop.xlane.xlu0 %3518
      %v3520 = vsel %vm2629, %v3480, 0.0
      %3521 = vadd.xlane.f32.xlu0 %v3520
      %v3522 = vpop.xlane.xlu0 %3521
      %v3523 = vsel %vm2629, %v3481, 0.0
      %3524 = vadd.xlane.f32.xlu0 %v3523
      %v3525 = vpop.xlane.xlu0 %3524
      %v3526 = vsel %vm2629, %v3482, 0.0
      %3527 = vadd.xlane.f32.xlu0 %v3526
      %v3528 = vpop.xlane.xlu0 %3527
      %v3529 = vsel %vm2629, %v3483, 0.0
      %3530 = vadd.xlane.f32.xlu0 %v3529
      %v3531 = vpop.xlane.xlu0 %3530
      %v3532 = vsel %vm2629, %v3484, 0.0
      %3533 = vadd.xlane.f32.xlu0 %v3532
      %v3534 = vpop.xlane.xlu0 %3533
      %v3535 = vsel %vm2629, %v3485, 0.0
      %3536 = vadd.xlane.f32.xlu0 %v3535
      %v3537 = vpop.xlane.xlu0 %3536
      %v3538 = vsel %vm2629, %v3486, 0.0
      %3539 = vadd.xlane.f32.xlu0 %v3538
      %v3540 = vpop.xlane.xlu0 %3539
      %v3541 = vsel %vm2629, %v3487, 0.0
      %3542 = vadd.xlane.f32.xlu0 %v3541
      %v3543 = vpop.xlane.xlu0 %3542
      %v3544 = vsel %vm2629, %v3488, 0.0
      %3545 = vadd.xlane.f32.xlu0 %v3544
      %v3546 = vpop.xlane.xlu0 %3545
      %v3547 = vsel %vm2629, %v3489, 0.0
      %3548 = vadd.xlane.f32.xlu0 %v3547
      %v3549 = vpop.xlane.xlu0 %3548
      %v3550 = vsel %vm2629, %v3490, 0.0
      %3551 = vadd.xlane.f32.xlu0 %v3550
      %v3552 = vpop.xlane.xlu0 %3551
      %v3553 = vsel %vm2629, %v3491, 0.0
      %3554 = vadd.xlane.f32.xlu0 %v3553
      %v3555 = vpop.xlane.xlu0 %3554
      %v3556 = vsel %vm2629, %v3492, 0.0
      %3557 = vadd.xlane.f32.xlu0 %v3556
      %v3558 = vpop.xlane.xlu0 %3557
      %v3559 = vsel %vm2629, %v3493, 0.0
      %3560 = vadd.xlane.f32.xlu0 %v3559
      %v3561 = vpop.xlane.xlu0 %3560
      %v3562 = vsel %vm2629, %v3494, 0.0
      %3563 = vadd.xlane.f32.xlu0 %v3562
      %v3564 = vpop.xlane.xlu0 %3563
      %v3565 = vsel %vm2629, %v3495, 0.0
      %3566 = vadd.xlane.f32.xlu0 %v3565
      %v3567 = vpop.xlane.xlu0 %3566
      %v3568 = vsel %vm2629, %v3496, 0.0
      %3569 = vadd.xlane.f32.xlu0 %v3568
      %v3570 = vpop.xlane.xlu0 %3569
      %v3571 = vsel %vm2629, %v3497, 0.0
      %3572 = vadd.xlane.f32.xlu0 %v3571
      %v3573 = vpop.xlane.xlu0 %3572
      %v3574 = vsel %vm2629, %v3498, 0.0
      %3575 = vadd.xlane.f32.xlu0 %v3574
      %v3576 = vpop.xlane.xlu0 %3575
      %v3577 = vsel %vm2629, %v3499, 0.0
      %3578 = vadd.xlane.f32.xlu0 %v3577
      %v3579 = vpop.xlane.xlu0 %3578
      %v3580 = vsel %vm2629, %v3500, 0.0
      %3581 = vadd.xlane.f32.xlu0 %v3580
      %v3582 = vpop.xlane.xlu0 %3581
      %v3583 = vsel %vm2629, %v3501, 0.0
      %3584 = vadd.xlane.f32.xlu0 %v3583
      %v3585 = vpop.xlane.xlu0 %3584
      %v3586 = vsel %vm2629, %v3502, 0.0
      %3587 = vadd.xlane.f32.xlu0 %v3586
      %v3588 = vpop.xlane.xlu0 %3587
      %v3589 = vsel %vm2629, %v3503, 0.0
      %3590 = vadd.xlane.f32.xlu0 %v3589
      %v3591 = vpop.xlane.xlu0 %3590
      %v3592 = vsel %vm2629, %v3504, 0.0
      %3593 = vadd.xlane.f32.xlu0 %v3592
      %v3594 = vpop.xlane.xlu0 %3593
      %v3595 = vsel %vm2629, %v3505, 0.0
      %3596 = vadd.xlane.f32.xlu0 %v3595
      %v3597 = vpop.xlane.xlu0 %3596
      %v3598 = vsel %vm2629, %v3506, 0.0
      %3599 = vadd.xlane.f32.xlu0 %v3598
      %v3600 = vpop.xlane.xlu0 %3599
      %v3601 = vsel %vm2629, %v3507, 0.0
      %3602 = vadd.xlane.f32.xlu0 %v3601
      %v3603 = vpop.xlane.xlu0 %3602
      %v3604 = vmul.f32 %v3510, %v3411
      %v3605 = vmul.f32 %v3513, %v3411
      %v3606 = vmul.f32 %v3516, %v3411
      %v3607 = vmul.f32 %v3519, %v3411
      %v3608 = vmul.f32 %v3522, %v3411
      %v3609 = vmul.f32 %v3525, %v3411
      %v3610 = vmul.f32 %v3528, %v3411
      %v3611 = vmul.f32 %v3531, %v3411
      %v3612 = vmul.f32 %v3534, %v3411
      %v3613 = vmul.f32 %v3537, %v3411
      %v3614 = vmul.f32 %v3540, %v3411
      %v3615 = vmul.f32 %v3543, %v3411
      %v3616 = vmul.f32 %v3546, %v3411
      %v3617 = vmul.f32 %v3549, %v3411
      %v3618 = vmul.f32 %v3552, %v3411
      %v3619 = vmul.f32 %v3555, %v3411
      %v3620 = vmul.f32 %v3558, %v3411
      %v3621 = vmul.f32 %v3561, %v3411
      %v3622 = vmul.f32 %v3564, %v3411
      %v3623 = vmul.f32 %v3567, %v3411
      %v3624 = vmul.f32 %v3570, %v3411
      %v3625 = vmul.f32 %v3573, %v3411
      %v3626 = vmul.f32 %v3576, %v3411
      %v3627 = vmul.f32 %v3579, %v3411
      %v3628 = vmul.f32 %v3582, %v3411
      %v3629 = vmul.f32 %v3585, %v3411
      %v3630 = vmul.f32 %v3588, %v3411
      %v3631 = vmul.f32 %v3591, %v3411
      %v3632 = vmul.f32 %v3594, %v3411
      %v3633 = vmul.f32 %v3597, %v3411
      %v3634 = vmul.f32 %v3600, %v3411
      %v3635 = vmul.f32 %v3603, %v3411
      %v3636 = vadd.f32 %v3604, 1e-05
      %v3637 = vadd.f32 %v3605, 1e-05
      %v3638 = vadd.f32 %v3606, 1e-05
      %v3639 = vadd.f32 %v3607, 1e-05
      %v3640 = vadd.f32 %v3608, 1e-05
      %v3641 = vadd.f32 %v3609, 1e-05
      %v3642 = vadd.f32 %v3610, 1e-05
      %v3643 = vadd.f32 %v3611, 1e-05
      %v3644 = vadd.f32 %v3612, 1e-05
      %v3645 = vadd.f32 %v3613, 1e-05
      %v3646 = vadd.f32 %v3614, 1e-05
      %v3647 = vadd.f32 %v3615, 1e-05
      %v3648 = vadd.f32 %v3616, 1e-05
      %v3649 = vadd.f32 %v3617, 1e-05
      %v3650 = vadd.f32 %v3618, 1e-05
      %v3651 = vadd.f32 %v3619, 1e-05
      %v3652 = vadd.f32 %v3620, 1e-05
      %v3653 = vadd.f32 %v3621, 1e-05
      %v3654 = vadd.f32 %v3622, 1e-05
      %v3655 = vadd.f32 %v3623, 1e-05
      %v3656 = vadd.f32 %v3624, 1e-05
      %v3657 = vadd.f32 %v3625, 1e-05
      %v3658 = vadd.f32 %v3626, 1e-05
      %v3659 = vadd.f32 %v3627, 1e-05
      %v3660 = vadd.f32 %v3628, 1e-05
      %v3661 = vadd.f32 %v3629, 1e-05
      %v3662 = vadd.f32 %v3630, 1e-05
      %v3663 = vadd.f32 %v3631, 1e-05
      %v3664 = vadd.f32 %v3632, 1e-05
      %v3665 = vadd.f32 %v3633, 1e-05
      %v3666 = vadd.f32 %v3634, 1e-05
      %v3667 = vadd.f32 %v3635, 1e-05
      %v3668 = vrsqrt.pop %v3636
      %v3669 = vrsqrt.pop %v3637
      %v3670 = vrsqrt.pop %v3638
      %v3671 = vrsqrt.pop %v3639
      %v3672 = vrsqrt.pop %v3640
      %v3673 = vrsqrt.pop %v3641
      %v3674 = vrsqrt.pop %v3642
      %v3675 = vrsqrt.pop %v3643
      %v3676 = vrsqrt.pop %v3644
      %v3677 = vrsqrt.pop %v3645
      %v3678 = vrsqrt.pop %v3646
      %v3679 = vrsqrt.pop %v3647
      %v3680 = vrsqrt.pop %v3648
      %v3681 = vrsqrt.pop %v3649
      %v3682 = vrsqrt.pop %v3650
      %v3683 = vrsqrt.pop %v3651
      %v3684 = vrsqrt.pop %v3652
      %v3685 = vrsqrt.pop %v3653
      %v3686 = vrsqrt.pop %v3654
      %v3687 = vrsqrt.pop %v3655
      %v3688 = vrsqrt.pop %v3656
      %v3689 = vrsqrt.pop %v3657
      %v3690 = vrsqrt.pop %v3658
      %v3691 = vrsqrt.pop %v3659
      %v3692 = vrsqrt.pop %v3660
      %v3693 = vrsqrt.pop %v3661
      %v3694 = vrsqrt.pop %v3662
      %v3695 = vrsqrt.pop %v3663
      %v3696 = vrsqrt.pop %v3664
      %v3697 = vrsqrt.pop %v3665
      %v3698 = vrsqrt.pop %v3666
      %v3699 = vrsqrt.pop %v3667
      %v3700 = vmul.f32 %v3444, %v3668
      %v3701 = vmul.f32 %v3445, %v3669
      %v3702 = vmul.f32 %v3446, %v3670
      %v3703 = vmul.f32 %v3447, %v3671
      %v3704 = vmul.f32 %v3448, %v3672
      %v3705 = vmul.f32 %v3449, %v3673
      %v3706 = vmul.f32 %v3450, %v3674
      %v3707 = vmul.f32 %v3451, %v3675
      %v3708 = vmul.f32 %v3452, %v3676
      %v3709 = vmul.f32 %v3453, %v3677
      %v3710 = vmul.f32 %v3454, %v3678
      %v3711 = vmul.f32 %v3455, %v3679
      %v3712 = vmul.f32 %v3456, %v3680
      %v3713 = vmul.f32 %v3457, %v3681
      %v3714 = vmul.f32 %v3458, %v3682
      %v3715 = vmul.f32 %v3459, %v3683
      %v3716 = vmul.f32 %v3460, %v3684
      %v3717 = vmul.f32 %v3461, %v3685
      %v3718 = vmul.f32 %v3462, %v3686
      %v3719 = vmul.f32 %v3463, %v3687
      %v3720 = vmul.f32 %v3464, %v3688
      %v3721 = vmul.f32 %v3465, %v3689
      %v3722 = vmul.f32 %v3466, %v3690
      %v3723 = vmul.f32 %v3467, %v3691
      %v3724 = vmul.f32 %v3468, %v3692
      %v3725 = vmul.f32 %v3469, %v3693
      %v3726 = vmul.f32 %v3470, %v3694
      %v3727 = vmul.f32 %v3471, %v3695
      %v3728 = vmul.f32 %v3472, %v3696
      %v3729 = vmul.f32 %v3473, %v3697
      %v3730 = vmul.f32 %v3474, %v3698
      %v3731 = vmul.f32 %v3475, %v3699
      %v3732 = vld [vmem:[%s15] sm:$0x1]
      %v3734 = vlaneseq
      %v3735 = vshrl.u32 %v3734, 7
      %v3736 = vsub.s32 0, %v3735
      %v3737 = vrot.slane %v3732, %v3736
      %v3739 = vmul.f32 %v3700, %v3737
      %v3740 = vmul.f32 %v3701, %v3737
      %v3741 = vmul.f32 %v3702, %v3737
      %v3742 = vmul.f32 %v3703, %v3737
      %v3743 = vmul.f32 %v3704, %v3737
      %v3744 = vmul.f32 %v3705, %v3737
      %v3745 = vmul.f32 %v3706, %v3737
      %v3746 = vmul.f32 %v3707, %v3737
      %v3747 = vmul.f32 %v3708, %v3737
      %v3748 = vmul.f32 %v3709, %v3737
      %v3749 = vmul.f32 %v3710, %v3737
      %v3750 = vmul.f32 %v3711, %v3737
      %v3751 = vmul.f32 %v3712, %v3737
      %v3752 = vmul.f32 %v3713, %v3737
      %v3753 = vmul.f32 %v3714, %v3737
      %v3754 = vmul.f32 %v3715, %v3737
      %v3755 = vmul.f32 %v3716, %v3737
      %v3756 = vmul.f32 %v3717, %v3737
      %v3757 = vmul.f32 %v3718, %v3737
      %v3758 = vmul.f32 %v3719, %v3737
      %v3759 = vmul.f32 %v3720, %v3737
      %v3760 = vmul.f32 %v3721, %v3737
      %v3761 = vmul.f32 %v3722, %v3737
      %v3762 = vmul.f32 %v3723, %v3737
      %v3763 = vmul.f32 %v3724, %v3737
      %v3764 = vmul.f32 %v3725, %v3737
      %v3765 = vmul.f32 %v3726, %v3737
      %v3766 = vmul.f32 %v3727, %v3737
      %v3767 = vmul.f32 %v3728, %v3737
      %v3768 = vmul.f32 %v3729, %v3737
      %v3769 = vmul.f32 %v3730, %v3737
      %v3770 = vmul.f32 %v3731, %v3737
      %v3771 = vld [vmem:[%s16] sm:$0x1]
      %v3773 = vlaneseq
      %v3774 = vshrl.u32 %v3773, 7
      %v3775 = vsub.s32 0, %v3774
      %v3776 = vrot.slane %v3771, %v3775
      %v3778 = vadd.f32 %v3739, %v3776
      %v3779 = vadd.f32 %v3740, %v3776
      %v3780 = vadd.f32 %v3741, %v3776
      %v3781 = vadd.f32 %v3742, %v3776
      %v3782 = vadd.f32 %v3743, %v3776
      %v3783 = vadd.f32 %v3744, %v3776
      %v3784 = vadd.f32 %v3745, %v3776
      %v3785 = vadd.f32 %v3746, %v3776
      %v3786 = vadd.f32 %v3747, %v3776
      %v3787 = vadd.f32 %v3748, %v3776
      %v3788 = vadd.f32 %v3749, %v3776
      %v3789 = vadd.f32 %v3750, %v3776
      %v3790 = vadd.f32 %v3751, %v3776
      %v3791 = vadd.f32 %v3752, %v3776
      %v3792 = vadd.f32 %v3753, %v3776
      %v3793 = vadd.f32 %v3754, %v3776
      %v3794 = vadd.f32 %v3755, %v3776
      %v3795 = vadd.f32 %v3756, %v3776
      %v3796 = vadd.f32 %v3757, %v3776
      %v3797 = vadd.f32 %v3758, %v3776
      %v3798 = vadd.f32 %v3759, %v3776
      %v3799 = vadd.f32 %v3760, %v3776
      %v3800 = vadd.f32 %v3761, %v3776
      %v3801 = vadd.f32 %v3762, %v3776
      %v3802 = vadd.f32 %v3763, %v3776
      %v3803 = vadd.f32 %v3764, %v3776
      %v3804 = vadd.f32 %v3765, %v3776
      %v3805 = vadd.f32 %v3766, %v3776
      %v3806 = vadd.f32 %v3767, %v3776
      %v3807 = vadd.f32 %v3768, %v3776
      %v3808 = vadd.f32 %v3769, %v3776
      %v3809 = vadd.f32 %v3770, %v3776
      %v3810 = vld [vmem:[%s781] sm:$0xff]
      %v3811 = vld [vmem:[%s781 + $0x8] sm:$0xff]
      %v3812 = vlaneseq
      %v3813 = vshrl.u32 %v3812, 7
      %v3814 = vsub.s32 0, %v3813
      %v3815 = vrot.slane %v3810, %v3814
      %3817 = vbcast.lane.b32.xlu0 %v3815, 256
      %v3818 = vpop.permute.xlu0 %3817
      %s3820 = sor.u32 256, 8
      %3821 = vbcast.lane.b32.xlu0 %v3815, %s3820
      %v3822 = vpop.permute.xlu0 %3821
      %v3823 = vlaneseq
      %v3824 = vshrl.u32 %v3823, 7
      %v3825 = vsub.s32 1, %v3824
      %v3826 = vrot.slane %v3810, %v3825
      %3828 = vbcast.lane.b32.xlu0 %v3826, 256
      %v3829 = vpop.permute.xlu0 %3828
      %s3831 = sor.u32 256, 8
      %3832 = vbcast.lane.b32.xlu0 %v3826, %s3831
      %v3833 = vpop.permute.xlu0 %3832
      %v3834 = vlaneseq
      %v3835 = vshrl.u32 %v3834, 7
      %v3836 = vsub.s32 2, %v3835
      %v3837 = vrot.slane %v3810, %v3836
      %3839 = vbcast.lane.b32.xlu0 %v3837, 256
      %v3840 = vpop.permute.xlu0 %3839
      %s3842 = sor.u32 256, 8
      %3843 = vbcast.lane.b32.xlu0 %v3837, %s3842
      %v3844 = vpop.permute.xlu0 %3843
      %v3845 = vlaneseq
      %v3846 = vshrl.u32 %v3845, 7
      %v3847 = vsub.s32 3, %v3846
      %v3848 = vrot.slane %v3810, %v3847
      %3850 = vbcast.lane.b32.xlu0 %v3848, 256
      %v3851 = vpop.permute.xlu0 %3850
      %s3853 = sor.u32 256, 8
      %3854 = vbcast.lane.b32.xlu0 %v3848, %s3853
      %v3855 = vpop.permute.xlu0 %3854
      %v3856 = vlaneseq
      %v3857 = vshrl.u32 %v3856, 7
      %v3858 = vsub.s32 4, %v3857
      %v3859 = vrot.slane %v3810, %v3858
      %3861 = vbcast.lane.b32.xlu0 %v3859, 256
      %v3862 = vpop.permute.xlu0 %3861
      %s3864 = sor.u32 256, 8
      %3865 = vbcast.lane.b32.xlu0 %v3859, %s3864
      %v3866 = vpop.permute.xlu0 %3865
      %v3867 = vlaneseq
      %v3868 = vshrl.u32 %v3867, 7
      %v3869 = vsub.s32 5, %v3868
      %v3870 = vrot.slane %v3810, %v3869
      %3872 = vbcast.lane.b32.xlu0 %v3870, 256
      %v3873 = vpop.permute.xlu0 %3872
      %s3875 = sor.u32 256, 8
      %3876 = vbcast.lane.b32.xlu0 %v3870, %s3875
      %v3877 = vpop.permute.xlu0 %3876
      %v3878 = vlaneseq
      %v3879 = vshrl.u32 %v3878, 7
      %v3880 = vsub.s32 6, %v3879
      %v3881 = vrot.slane %v3810, %v3880
      %3883 = vbcast.lane.b32.xlu0 %v3881, 256
      %v3884 = vpop.permute.xlu0 %3883
      %s3886 = sor.u32 256, 8
      %3887 = vbcast.lane.b32.xlu0 %v3881, %s3886
      %v3888 = vpop.permute.xlu0 %3887
      %v3889 = vlaneseq
      %v3890 = vshrl.u32 %v3889, 7
      %v3891 = vsub.s32 7, %v3890
      %v3892 = vrot.slane %v3810, %v3891
      %3894 = vbcast.lane.b32.xlu0 %v3892, 256
      %v3895 = vpop.permute.xlu0 %3894
      %s3897 = sor.u32 256, 8
      %3898 = vbcast.lane.b32.xlu0 %v3892, %s3897
      %v3899 = vpop.permute.xlu0 %3898
      %v3900 = vlaneseq
      %v3901 = vshrl.u32 %v3900, 7
      %v3902 = vsub.s32 0, %v3901
      %v3903 = vrot.slane %v3811, %v3902
      %3905 = vbcast.lane.b32.xlu0 %v3903, 256
      %v3906 = vpop.permute.xlu0 %3905
      %s3908 = sor.u32 256, 8
      %3909 = vbcast.lane.b32.xlu0 %v3903, %s3908
      %v3910 = vpop.permute.xlu0 %3909
      %v3911 = vlaneseq
      %v3912 = vshrl.u32 %v3911, 7
      %v3913 = vsub.s32 1, %v3912
      %v3914 = vrot.slane %v3811, %v3913
      %3916 = vbcast.lane.b32.xlu0 %v3914, 256
      %v3917 = vpop.permute.xlu0 %3916
      %s3919 = sor.u32 256, 8
      %3920 = vbcast.lane.b32.xlu0 %v3914, %s3919
      %v3921 = vpop.permute.xlu0 %3920
      %v3922 = vlaneseq
      %v3923 = vshrl.u32 %v3922, 7
      %v3924 = vsub.s32 2, %v3923
      %v3925 = vrot.slane %v3811, %v3924
      %3927 = vbcast.lane.b32.xlu0 %v3925, 256
      %v3928 = vpop.permute.xlu0 %3927
      %s3930 = sor.u32 256, 8
      %3931 = vbcast.lane.b32.xlu0 %v3925, %s3930
      %v3932 = vpop.permute.xlu0 %3931
      %v3933 = vlaneseq
      %v3934 = vshrl.u32 %v3933, 7
      %v3935 = vsub.s32 3, %v3934
      %v3936 = vrot.slane %v3811, %v3935
      %3938 = vbcast.lane.b32.xlu0 %v3936, 256
      %v3939 = vpop.permute.xlu0 %3938
      %s3941 = sor.u32 256, 8
      %3942 = vbcast.lane.b32.xlu0 %v3936, %s3941
      %v3943 = vpop.permute.xlu0 %3942
      %v3944 = vlaneseq
      %v3945 = vshrl.u32 %v3944, 7
      %v3946 = vsub.s32 4, %v3945
      %v3947 = vrot.slane %v3811, %v3946
      %3949 = vbcast.lane.b32.xlu0 %v3947, 256
      %v3950 = vpop.permute.xlu0 %3949
      %s3952 = sor.u32 256, 8
      %3953 = vbcast.lane.b32.xlu0 %v3947, %s3952
      %v3954 = vpop.permute.xlu0 %3953
      %v3955 = vlaneseq
      %v3956 = vshrl.u32 %v3955, 7
      %v3957 = vsub.s32 5, %v3956
      %v3958 = vrot.slane %v3811, %v3957
      %3960 = vbcast.lane.b32.xlu0 %v3958, 256
      %v3961 = vpop.permute.xlu0 %3960
      %s3963 = sor.u32 256, 8
      %3964 = vbcast.lane.b32.xlu0 %v3958, %s3963
      %v3965 = vpop.permute.xlu0 %3964
      %v3966 = vlaneseq
      %v3967 = vshrl.u32 %v3966, 7
      %v3968 = vsub.s32 6, %v3967
      %v3969 = vrot.slane %v3811, %v3968
      %3971 = vbcast.lane.b32.xlu0 %v3969, 256
      %v3972 = vpop.permute.xlu0 %3971
      %s3974 = sor.u32 256, 8
      %3975 = vbcast.lane.b32.xlu0 %v3969, %s3974
      %v3976 = vpop.permute.xlu0 %3975
      %v3977 = vlaneseq
      %v3978 = vshrl.u32 %v3977, 7
      %v3979 = vsub.s32 7, %v3978
      %v3980 = vrot.slane %v3811, %v3979
      %3982 = vbcast.lane.b32.xlu0 %v3980, 256
      %v3983 = vpop.permute.xlu0 %3982
      %s3985 = sor.u32 256, 8
      %3986 = vbcast.lane.b32.xlu0 %v3980, %s3985
      %v3987 = vpop.permute.xlu0 %3986
      %v3988 = vmul.f32 %v3778, %v3818
      %v3989 = vmul.f32 %v3779, %v3822
      %v3990 = vmul.f32 %v3780, %v3829
      %v3991 = vmul.f32 %v3781, %v3833
      %v3992 = vmul.f32 %v3782, %v3840
      %v3993 = vmul.f32 %v3783, %v3844
      %v3994 = vmul.f32 %v3784, %v3851
      %v3995 = vmul.f32 %v3785, %v3855
      %v3996 = vmul.f32 %v3786, %v3862
      %v3997 = vmul.f32 %v3787, %v3866
      %v3998 = vmul.f32 %v3788, %v3873
      %v3999 = vmul.f32 %v3789, %v3877
      %v4000 = vmul.f32 %v3790, %v3884
      %v4001 = vmul.f32 %v3791, %v3888
      %v4002 = vmul.f32 %v3792, %v3895
      %v4003 = vmul.f32 %v3793, %v3899
      %v4004 = vmul.f32 %v3794, %v3906
      %v4005 = vmul.f32 %v3795, %v3910
      %v4006 = vmul.f32 %v3796, %v3917
      %v4007 = vmul.f32 %v3797, %v3921
      %v4008 = vmul.f32 %v3798, %v3928
      %v4009 = vmul.f32 %v3799, %v3932
      %v4010 = vmul.f32 %v3800, %v3939
      %v4011 = vmul.f32 %v3801, %v3943
      %v4012 = vmul.f32 %v3802, %v3950
      %v4013 = vmul.f32 %v3803, %v3954
      %v4014 = vmul.f32 %v3804, %v3961
      %v4015 = vmul.f32 %v3805, %v3965
      %v4016 = vmul.f32 %v3806, %v3972
      %v4017 = vmul.f32 %v3807, %v3976
      %v4018 = vmul.f32 %v3808, %v3983
      %v4019 = vmul.f32 %v3809, %v3987
      %v4020 = vcombine.low %v3988, %v3992
      %v4021 = vcombine.high %v3988, %v3992
      %v4023 = vunpack.c.l.s4 1983009808
      %v4024 = vunpack.c.0.s8 %v4023
      %v4025 = vlaneseq
      %v4026 = vshrl.u32 %v4025, 7
      %v4027 = vsub.s32 %v4024, %v4026
      %v4028 = vrot.slane %v4020, %v4027
      %v4030 = vunpack.c.l.s4 1983009808
      %v4031 = vunpack.c.0.s8 %v4030
      %v4032 = vlaneseq
      %v4033 = vshrl.u32 %v4032, 7
      %v4034 = vsub.s32 %v4031, %v4033
      %v4035 = vrot.slane %v4021, %v4034
      %v4036 = vcombine.low %v3990, %v3994
      %v4037 = vcombine.high %v3990, %v3994
      %v4039 = vunpack.c.l.s4 1983009808
      %v4040 = vunpack.c.0.s8 %v4039
      %v4041 = vlaneseq
      %v4042 = vshrl.u32 %v4041, 7
      %v4043 = vsub.s32 %v4040, %v4042
      %v4044 = vrot.slane %v4036, %v4043
      %v4046 = vunpack.c.l.s4 1983009808
      %v4047 = vunpack.c.0.s8 %v4046
      %v4048 = vlaneseq
      %v4049 = vshrl.u32 %v4048, 7
      %v4050 = vsub.s32 %v4047, %v4049
      %v4051 = vrot.slane %v4037, %v4050
      %v4052 = vcombine.low %v3996, %v4000
      %v4053 = vcombine.high %v3996, %v4000
      %v4055 = vunpack.c.l.s4 1983009808
      %v4056 = vunpack.c.0.s8 %v4055
      %v4057 = vlaneseq
      %v4058 = vshrl.u32 %v4057, 7
      %v4059 = vsub.s32 %v4056, %v4058
      %v4060 = vrot.slane %v4052, %v4059
      %v4062 = vunpack.c.l.s4 1983009808
      %v4063 = vunpack.c.0.s8 %v4062
      %v4064 = vlaneseq
      %v4065 = vshrl.u32 %v4064, 7
      %v4066 = vsub.s32 %v4063, %v4065
      %v4067 = vrot.slane %v4053, %v4066
      %v4068 = vcombine.low %v3998, %v4002
      %v4069 = vcombine.high %v3998, %v4002
      %v4071 = vunpack.c.l.s4 1983009808
      %v4072 = vunpack.c.0.s8 %v4071
      %v4073 = vlaneseq
      %v4074 = vshrl.u32 %v4073, 7
      %v4075 = vsub.s32 %v4072, %v4074
      %v4076 = vrot.slane %v4068, %v4075
      %v4078 = vunpack.c.l.s4 1983009808
      %v4079 = vunpack.c.0.s8 %v4078
      %v4080 = vlaneseq
      %v4081 = vshrl.u32 %v4080, 7
      %v4082 = vsub.s32 %v4079, %v4081
      %v4083 = vrot.slane %v4069, %v4082
      %v4084 = vcombine.low %v4028, %v4044
      %v4085 = vcombine.high %v4028, %v4044
      %v4087 = vunpack.c.l.s4 1934713408
      %v4088 = vunpack.c.0.s8 %v4087
      %v4089 = vlaneseq
      %v4090 = vshrl.u32 %v4089, 7
      %v4091 = vsub.s32 %v4088, %v4090
      %v4092 = vrot.slane %v4084, %v4091
      %v4094 = vunpack.c.l.s4 1934713408
      %v4095 = vunpack.c.0.s8 %v4094
      %v4096 = vlaneseq
      %v4097 = vshrl.u32 %v4096, 7
      %v4098 = vsub.s32 %v4095, %v4097
      %v4099 = vrot.slane %v4085, %v4098
      %v4100 = vcombine.low %v4035, %v4051
      %v4101 = vcombine.high %v4035, %v4051
      %v4103 = vunpack.c.l.s4 1934713408
      %v4104 = vunpack.c.0.s8 %v4103
      %v4105 = vlaneseq
      %v4106 = vshrl.u32 %v4105, 7
      %v4107 = vsub.s32 %v4104, %v4106
      %v4108 = vrot.slane %v4100, %v4107
      %v4110 = vunpack.c.l.s4 1934713408
      %v4111 = vunpack.c.0.s8 %v4110
      %v4112 = vlaneseq
      %v4113 = vshrl.u32 %v4112, 7
      %v4114 = vsub.s32 %v4111, %v4113
      %v4115 = vrot.slane %v4101, %v4114
      %v4116 = vcombine.low %v4060, %v4076
      %v4117 = vcombine.high %v4060, %v4076
      %v4119 = vunpack.c.l.s4 1934713408
      %v4120 = vunpack.c.0.s8 %v4119
      %v4121 = vlaneseq
      %v4122 = vshrl.u32 %v4121, 7
      %v4123 = vsub.s32 %v4120, %v4122
      %v4124 = vrot.slane %v4116, %v4123
      %v4126 = vunpack.c.l.s4 1934713408
      %v4127 = vunpack.c.0.s8 %v4126
      %v4128 = vlaneseq
      %v4129 = vshrl.u32 %v4128, 7
      %v4130 = vsub.s32 %v4127, %v4129
      %v4131 = vrot.slane %v4117, %v4130
      %v4132 = vcombine.low %v4067, %v4083
      %v4133 = vcombine.high %v4067, %v4083
      %v4135 = vunpack.c.l.s4 1934713408
      %v4136 = vunpack.c.0.s8 %v4135
      %v4137 = vlaneseq
      %v4138 = vshrl.u32 %v4137, 7
      %v4139 = vsub.s32 %v4136, %v4138
      %v4140 = vrot.slane %v4132, %v4139
      %v4142 = vunpack.c.l.s4 1934713408
      %v4143 = vunpack.c.0.s8 %v4142
      %v4144 = vlaneseq
      %v4145 = vshrl.u32 %v4144, 7
      %v4146 = vsub.s32 %v4143, %v4145
      %v4147 = vrot.slane %v4133, %v4146
      %v4148 = vcombine.low %v4092, %v4124
      %v4149 = vcombine.high %v4092, %v4124
      %v4150 = vcombine.low %v4099, %v4131
      %v4151 = vcombine.high %v4099, %v4131
      %v4152 = vcombine.low %v4108, %v4140
      %v4153 = vcombine.high %v4108, %v4140
      %v4154 = vcombine.low %v4115, %v4147
      %v4155 = vcombine.high %v4115, %v4147
      %v4156 = vcombine.low %v4004, %v4008
      %v4157 = vcombine.high %v4004, %v4008
      %v4159 = vunpack.c.l.s4 1983009808
      %v4160 = vunpack.c.0.s8 %v4159
      %v4161 = vlaneseq
      %v4162 = vshrl.u32 %v4161, 7
      %v4163 = vsub.s32 %v4160, %v4162
      %v4164 = vrot.slane %v4156, %v4163
      %v4166 = vunpack.c.l.s4 1983009808
      %v4167 = vunpack.c.0.s8 %v4166
      %v4168 = vlaneseq
      %v4169 = vshrl.u32 %v4168, 7
      %v4170 = vsub.s32 %v4167, %v4169
      %v4171 = vrot.slane %v4157, %v4170
      %v4172 = vcombine.low %v4006, %v4010
      %v4173 = vcombine.high %v4006, %v4010
      %v4175 = vunpack.c.l.s4 1983009808
      %v4176 = vunpack.c.0.s8 %v4175
      %v4177 = vlaneseq
      %v4178 = vshrl.u32 %v4177, 7
      %v4179 = vsub.s32 %v4176, %v4178
      %v4180 = vrot.slane %v4172, %v4179
      %v4182 = vunpack.c.l.s4 1983009808
      %v4183 = vunpack.c.0.s8 %v4182
      %v4184 = vlaneseq
      %v4185 = vshrl.u32 %v4184, 7
      %v4186 = vsub.s32 %v4183, %v4185
      %v4187 = vrot.slane %v4173, %v4186
      %v4188 = vcombine.low %v4012, %v4016
      %v4189 = vcombine.high %v4012, %v4016
      %v4191 = vunpack.c.l.s4 1983009808
      %v4192 = vunpack.c.0.s8 %v4191
      %v4193 = vlaneseq
      %v4194 = vshrl.u32 %v4193, 7
      %v4195 = vsub.s32 %v4192, %v4194
      %v4196 = vrot.slane %v4188, %v4195
      %v4198 = vunpack.c.l.s4 1983009808
      %v4199 = vunpack.c.0.s8 %v4198
      %v4200 = vlaneseq
      %v4201 = vshrl.u32 %v4200, 7
      %v4202 = vsub.s32 %v4199, %v4201
      %v4203 = vrot.slane %v4189, %v4202
      %v4204 = vcombine.low %v4014, %v4018
      %v4205 = vcombine.high %v4014, %v4018
      %v4207 = vunpack.c.l.s4 1983009808
      %v4208 = vunpack.c.0.s8 %v4207
      %v4209 = vlaneseq
      %v4210 = vshrl.u32 %v4209, 7
      %v4211 = vsub.s32 %v4208, %v4210
      %v4212 = vrot.slane %v4204, %v4211
      %v4214 = vunpack.c.l.s4 1983009808
      %v4215 = vunpack.c.0.s8 %v4214
      %v4216 = vlaneseq
      %v4217 = vshrl.u32 %v4216, 7
      %v4218 = vsub.s32 %v4215, %v4217
      %v4219 = vrot.slane %v4205, %v4218
      %v4220 = vcombine.low %v4164, %v4180
      %v4221 = vcombine.high %v4164, %v4180
      %v4223 = vunpack.c.l.s4 1934713408
      %v4224 = vunpack.c.0.s8 %v4223
      %v4225 = vlaneseq
      %v4226 = vshrl.u32 %v4225, 7
      %v4227 = vsub.s32 %v4224, %v4226
      %v4228 = vrot.slane %v4220, %v4227
      %v4230 = vunpack.c.l.s4 1934713408
      %v4231 = vunpack.c.0.s8 %v4230
      %v4232 = vlaneseq
      %v4233 = vshrl.u32 %v4232, 7
      %v4234 = vsub.s32 %v4231, %v4233
      %v4235 = vrot.slane %v4221, %v4234
      %v4236 = vcombine.low %v4171, %v4187
      %v4237 = vcombine.high %v4171, %v4187
      %v4239 = vunpack.c.l.s4 1934713408
      %v4240 = vunpack.c.0.s8 %v4239
      %v4241 = vlaneseq
      %v4242 = vshrl.u32 %v4241, 7
      %v4243 = vsub.s32 %v4240, %v4242
      %v4244 = vrot.slane %v4236, %v4243
      %v4246 = vunpack.c.l.s4 1934713408
      %v4247 = vunpack.c.0.s8 %v4246
      %v4248 = vlaneseq
      %v4249 = vshrl.u32 %v4248, 7
      %v4250 = vsub.s32 %v4247, %v4249
      %v4251 = vrot.slane %v4237, %v4250
      %v4252 = vcombine.low %v4196, %v4212
      %v4253 = vcombine.high %v4196, %v4212
      %v4255 = vunpack.c.l.s4 1934713408
      %v4256 = vunpack.c.0.s8 %v4255
      %v4257 = vlaneseq
      %v4258 = vshrl.u32 %v4257, 7
      %v4259 = vsub.s32 %v4256, %v4258
      %v4260 = vrot.slane %v4252, %v4259
      %v4262 = vunpack.c.l.s4 1934713408
      %v4263 = vunpack.c.0.s8 %v4262
      %v4264 = vlaneseq
      %v4265 = vshrl.u32 %v4264, 7
      %v4266 = vsub.s32 %v4263, %v4265
      %v4267 = vrot.slane %v4253, %v4266
      %v4268 = vcombine.low %v4203, %v4219
      %v4269 = vcombine.high %v4203, %v4219
      %v4271 = vunpack.c.l.s4 1934713408
      %v4272 = vunpack.c.0.s8 %v4271
      %v4273 = vlaneseq
      %v4274 = vshrl.u32 %v4273, 7
      %v4275 = vsub.s32 %v4272, %v4274
      %v4276 = vrot.slane %v4268, %v4275
      %v4278 = vunpack.c.l.s4 1934713408
      %v4279 = vunpack.c.0.s8 %v4278
      %v4280 = vlaneseq
      %v4281 = vshrl.u32 %v4280, 7
      %v4282 = vsub.s32 %v4279, %v4281
      %v4283 = vrot.slane %v4269, %v4282
      %v4284 = vcombine.low %v4228, %v4260
      %v4285 = vcombine.high %v4228, %v4260
      %v4286 = vcombine.low %v4235, %v4267
      %v4287 = vcombine.high %v4235, %v4267
      %v4288 = vcombine.low %v4244, %v4276
      %v4289 = vcombine.high %v4244, %v4276
      %v4290 = vcombine.low %v4251, %v4283
      %v4291 = vcombine.high %v4251, %v4283
      %v4292 = vcombine.low %v3989, %v3993
      %v4293 = vcombine.high %v3989, %v3993
      %v4295 = vunpack.c.l.s4 1983009808
      %v4296 = vunpack.c.0.s8 %v4295
      %v4297 = vlaneseq
      %v4298 = vshrl.u32 %v4297, 7
      %v4299 = vsub.s32 %v4296, %v4298
      %v4300 = vrot.slane %v4292, %v4299
      %v4302 = vunpack.c.l.s4 1983009808
      %v4303 = vunpack.c.0.s8 %v4302
      %v4304 = vlaneseq
      %v4305 = vshrl.u32 %v4304, 7
      %v4306 = vsub.s32 %v4303, %v4305
      %v4307 = vrot.slane %v4293, %v4306
      %v4308 = vcombine.low %v3991, %v3995
      %v4309 = vcombine.high %v3991, %v3995
      %v4311 = vunpack.c.l.s4 1983009808
      %v4312 = vunpack.c.0.s8 %v4311
      %v4313 = vlaneseq
      %v4314 = vshrl.u32 %v4313, 7
      %v4315 = vsub.s32 %v4312, %v4314
      %v4316 = vrot.slane %v4308, %v4315
      %v4318 = vunpack.c.l.s4 1983009808
      %v4319 = vunpack.c.0.s8 %v4318
      %v4320 = vlaneseq
      %v4321 = vshrl.u32 %v4320, 7
      %v4322 = vsub.s32 %v4319, %v4321
      %v4323 = vrot.slane %v4309, %v4322
      %v4324 = vcombine.low %v3997, %v4001
      %v4325 = vcombine.high %v3997, %v4001
      %v4327 = vunpack.c.l.s4 1983009808
      %v4328 = vunpack.c.0.s8 %v4327
      %v4329 = vlaneseq
      %v4330 = vshrl.u32 %v4329, 7
      %v4331 = vsub.s32 %v4328, %v4330
      %v4332 = vrot.slane %v4324, %v4331
      %v4334 = vunpack.c.l.s4 1983009808
      %v4335 = vunpack.c.0.s8 %v4334
      %v4336 = vlaneseq
      %v4337 = vshrl.u32 %v4336, 7
      %v4338 = vsub.s32 %v4335, %v4337
      %v4339 = vrot.slane %v4325, %v4338
      %v4340 = vcombine.low %v3999, %v4003
      %v4341 = vcombine.high %v3999, %v4003
      %v4343 = vunpack.c.l.s4 1983009808
      %v4344 = vunpack.c.0.s8 %v4343
      %v4345 = vlaneseq
      %v4346 = vshrl.u32 %v4345, 7
      %v4347 = vsub.s32 %v4344, %v4346
      %v4348 = vrot.slane %v4340, %v4347
      %v4350 = vunpack.c.l.s4 1983009808
      %v4351 = vunpack.c.0.s8 %v4350
      %v4352 = vlaneseq
      %v4353 = vshrl.u32 %v4352, 7
      %v4354 = vsub.s32 %v4351, %v4353
      %v4355 = vrot.slane %v4341, %v4354
      %v4356 = vcombine.low %v4300, %v4316
      %v4357 = vcombine.high %v4300, %v4316
      %v4359 = vunpack.c.l.s4 1934713408
      %v4360 = vunpack.c.0.s8 %v4359
      %v4361 = vlaneseq
      %v4362 = vshrl.u32 %v4361, 7
      %v4363 = vsub.s32 %v4360, %v4362
      %v4364 = vrot.slane %v4356, %v4363
      %v4366 = vunpack.c.l.s4 1934713408
      %v4367 = vunpack.c.0.s8 %v4366
      %v4368 = vlaneseq
      %v4369 = vshrl.u32 %v4368, 7
      %v4370 = vsub.s32 %v4367, %v4369
      %v4371 = vrot.slane %v4357, %v4370
      %v4372 = vcombine.low %v4307, %v4323
      %v4373 = vcombine.high %v4307, %v4323
      %v4375 = vunpack.c.l.s4 1934713408
      %v4376 = vunpack.c.0.s8 %v4375
      %v4377 = vlaneseq
      %v4378 = vshrl.u32 %v4377, 7
      %v4379 = vsub.s32 %v4376, %v4378
      %v4380 = vrot.slane %v4372, %v4379
      %v4382 = vunpack.c.l.s4 1934713408
      %v4383 = vunpack.c.0.s8 %v4382
      %v4384 = vlaneseq
      %v4385 = vshrl.u32 %v4384, 7
      %v4386 = vsub.s32 %v4383, %v4385
      %v4387 = vrot.slane %v4373, %v4386
      %v4388 = vcombine.low %v4332, %v4348
      %v4389 = vcombine.high %v4332, %v4348
      %v4391 = vunpack.c.l.s4 1934713408
      %v4392 = vunpack.c.0.s8 %v4391
      %v4393 = vlaneseq
      %v4394 = vshrl.u32 %v4393, 7
      %v4395 = vsub.s32 %v4392, %v4394
      %v4396 = vrot.slane %v4388, %v4395
      %v4398 = vunpack.c.l.s4 1934713408
      %v4399 = vunpack.c.0.s8 %v4398
      %v4400 = vlaneseq
      %v4401 = vshrl.u32 %v4400, 7
      %v4402 = vsub.s32 %v4399, %v4401
      %v4403 = vrot.slane %v4389, %v4402
      %v4404 = vcombine.low %v4339, %v4355
      %v4405 = vcombine.high %v4339, %v4355
      %v4407 = vunpack.c.l.s4 1934713408
      %v4408 = vunpack.c.0.s8 %v4407
      %v4409 = vlaneseq
      %v4410 = vshrl.u32 %v4409, 7
      %v4411 = vsub.s32 %v4408, %v4410
      %v4412 = vrot.slane %v4404, %v4411
      %v4414 = vunpack.c.l.s4 1934713408
      %v4415 = vunpack.c.0.s8 %v4414
      %v4416 = vlaneseq
      %v4417 = vshrl.u32 %v4416, 7
      %v4418 = vsub.s32 %v4415, %v4417
      %v4419 = vrot.slane %v4405, %v4418
      %v4420 = vcombine.low %v4364, %v4396
      %v4421 = vcombine.high %v4364, %v4396
      %v4422 = vcombine.low %v4371, %v4403
      %v4423 = vcombine.high %v4371, %v4403
      %v4424 = vcombine.low %v4380, %v4412
      %v4425 = vcombine.high %v4380, %v4412
      %v4426 = vcombine.low %v4387, %v4419
      %v4427 = vcombine.high %v4387, %v4419
      %v4428 = vcombine.low %v4005, %v4009
      %v4429 = vcombine.high %v4005, %v4009
      %v4431 = vunpack.c.l.s4 1983009808
      %v4432 = vunpack.c.0.s8 %v4431
      %v4433 = vlaneseq
      %v4434 = vshrl.u32 %v4433, 7
      %v4435 = vsub.s32 %v4432, %v4434
      %v4436 = vrot.slane %v4428, %v4435
      %v4438 = vunpack.c.l.s4 1983009808
      %v4439 = vunpack.c.0.s8 %v4438
      %v4440 = vlaneseq
      %v4441 = vshrl.u32 %v4440, 7
      %v4442 = vsub.s32 %v4439, %v4441
      %v4443 = vrot.slane %v4429, %v4442
      %v4444 = vcombine.low %v4007, %v4011
      %v4445 = vcombine.high %v4007, %v4011
      %v4447 = vunpack.c.l.s4 1983009808
      %v4448 = vunpack.c.0.s8 %v4447
      %v4449 = vlaneseq
      %v4450 = vshrl.u32 %v4449, 7
      %v4451 = vsub.s32 %v4448, %v4450
      %v4452 = vrot.slane %v4444, %v4451
      %v4454 = vunpack.c.l.s4 1983009808
      %v4455 = vunpack.c.0.s8 %v4454
      %v4456 = vlaneseq
      %v4457 = vshrl.u32 %v4456, 7
      %v4458 = vsub.s32 %v4455, %v4457
      %v4459 = vrot.slane %v4445, %v4458
      %v4460 = vcombine.low %v4013, %v4017
      %v4461 = vcombine.high %v4013, %v4017
      %v4463 = vunpack.c.l.s4 1983009808
      %v4464 = vunpack.c.0.s8 %v4463
      %v4465 = vlaneseq
      %v4466 = vshrl.u32 %v4465, 7
      %v4467 = vsub.s32 %v4464, %v4466
      %v4468 = vrot.slane %v4460, %v4467
      %v4470 = vunpack.c.l.s4 1983009808
      %v4471 = vunpack.c.0.s8 %v4470
      %v4472 = vlaneseq
      %v4473 = vshrl.u32 %v4472, 7
      %v4474 = vsub.s32 %v4471, %v4473
      %v4475 = vrot.slane %v4461, %v4474
      %v4476 = vcombine.low %v4015, %v4019
      %v4477 = vcombine.high %v4015, %v4019
      %v4479 = vunpack.c.l.s4 1983009808
      %v4480 = vunpack.c.0.s8 %v4479
      %v4481 = vlaneseq
      %v4482 = vshrl.u32 %v4481, 7
      %v4483 = vsub.s32 %v4480, %v4482
      %v4484 = vrot.slane %v4476, %v4483
      %v4486 = vunpack.c.l.s4 1983009808
      %v4487 = vunpack.c.0.s8 %v4486
      %v4488 = vlaneseq
      %v4489 = vshrl.u32 %v4488, 7
      %v4490 = vsub.s32 %v4487, %v4489
      %v4491 = vrot.slane %v4477, %v4490
      %v4492 = vcombine.low %v4436, %v4452
      %v4493 = vcombine.high %v4436, %v4452
      %v4495 = vunpack.c.l.s4 1934713408
      %v4496 = vunpack.c.0.s8 %v4495
      %v4497 = vlaneseq
      %v4498 = vshrl.u32 %v4497, 7
      %v4499 = vsub.s32 %v4496, %v4498
      %v4500 = vrot.slane %v4492, %v4499
      %v4502 = vunpack.c.l.s4 1934713408
      %v4503 = vunpack.c.0.s8 %v4502
      %v4504 = vlaneseq
      %v4505 = vshrl.u32 %v4504, 7
      %v4506 = vsub.s32 %v4503, %v4505
      %v4507 = vrot.slane %v4493, %v4506
      %v4508 = vcombine.low %v4443, %v4459
      %v4509 = vcombine.high %v4443, %v4459
      %v4511 = vunpack.c.l.s4 1934713408
      %v4512 = vunpack.c.0.s8 %v4511
      %v4513 = vlaneseq
      %v4514 = vshrl.u32 %v4513, 7
      %v4515 = vsub.s32 %v4512, %v4514
      %v4516 = vrot.slane %v4508, %v4515
      %v4518 = vunpack.c.l.s4 1934713408
      %v4519 = vunpack.c.0.s8 %v4518
      %v4520 = vlaneseq
      %v4521 = vshrl.u32 %v4520, 7
      %v4522 = vsub.s32 %v4519, %v4521
      %v4523 = vrot.slane %v4509, %v4522
      %v4524 = vcombine.low %v4468, %v4484
      %v4525 = vcombine.high %v4468, %v4484
      %v4527 = vunpack.c.l.s4 1934713408
      %v4528 = vunpack.c.0.s8 %v4527
      %v4529 = vlaneseq
      %v4530 = vshrl.u32 %v4529, 7
      %v4531 = vsub.s32 %v4528, %v4530
      %v4532 = vrot.slane %v4524, %v4531
      %v4534 = vunpack.c.l.s4 1934713408
      %v4535 = vunpack.c.0.s8 %v4534
      %v4536 = vlaneseq
      %v4537 = vshrl.u32 %v4536, 7
      %v4538 = vsub.s32 %v4535, %v4537
      %v4539 = vrot.slane %v4525, %v4538
      %v4540 = vcombine.low %v4475, %v4491
      %v4541 = vcombine.high %v4475, %v4491
      %v4543 = vunpack.c.l.s4 1934713408
      %v4544 = vunpack.c.0.s8 %v4543
      %v4545 = vlaneseq
      %v4546 = vshrl.u32 %v4545, 7
      %v4547 = vsub.s32 %v4544, %v4546
      %v4548 = vrot.slane %v4540, %v4547
      %v4550 = vunpack.c.l.s4 1934713408
      %v4551 = vunpack.c.0.s8 %v4550
      %v4552 = vlaneseq
      %v4553 = vshrl.u32 %v4552, 7
      %v4554 = vsub.s32 %v4551, %v4553
      %v4555 = vrot.slane %v4541, %v4554
      %v4556 = vcombine.low %v4500, %v4532
      %v4557 = vcombine.high %v4500, %v4532
      %v4558 = vcombine.low %v4507, %v4539
      %v4559 = vcombine.high %v4507, %v4539
      %v4560 = vcombine.low %v4516, %v4548
      %v4561 = vcombine.high %v4516, %v4548
      %v4562 = vcombine.low %v4523, %v4555
      %v4563 = vcombine.high %v4523, %v4555
      %4566 = vrot.lane.b32.xlu0 %v4149, 32
      %v4567 = vpop.permute.xlu0 %4566
      %4568 = vrot.lane.b32.xlu0 %v4285, 32
      %v4569 = vpop.permute.xlu0 %4568
      %4574 = vrot.lane.b32.xlu0 %v4150, 64
      %v4575 = vpop.permute.xlu0 %4574
      %4576 = vrot.lane.b32.xlu0 %v4286, 64
      %v4577 = vpop.permute.xlu0 %4576
      %4582 = vrot.lane.b32.xlu0 %v4151, 96
      %v4583 = vpop.permute.xlu0 %4582
      %4584 = vrot.lane.b32.xlu0 %v4287, 96
      %v4585 = vpop.permute.xlu0 %4584
      %4590 = vrot.lane.b32.xlu0 %v4153, 32
      %v4591 = vpop.permute.xlu0 %4590
      %4592 = vrot.lane.b32.xlu0 %v4289, 32
      %v4593 = vpop.permute.xlu0 %4592
      %4598 = vrot.lane.b32.xlu0 %v4154, 64
      %v4599 = vpop.permute.xlu0 %4598
      %4600 = vrot.lane.b32.xlu0 %v4290, 64
      %v4601 = vpop.permute.xlu0 %4600
      %4606 = vrot.lane.b32.xlu0 %v4155, 96
      %v4607 = vpop.permute.xlu0 %4606
      %4608 = vrot.lane.b32.xlu0 %v4291, 96
      %v4609 = vpop.permute.xlu0 %4608
      %4614 = vrot.lane.b32.xlu0 %v4421, 32
      %v4615 = vpop.permute.xlu0 %4614
      %4616 = vrot.lane.b32.xlu0 %v4557, 32
      %v4617 = vpop.permute.xlu0 %4616
      %4622 = vrot.lane.b32.xlu0 %v4422, 64
      %v4623 = vpop.permute.xlu0 %4622
      %4624 = vrot.lane.b32.xlu0 %v4558, 64
      %v4625 = vpop.permute.xlu0 %4624
      %4630 = vrot.lane.b32.xlu0 %v4423, 96
      %v4631 = vpop.permute.xlu0 %4630
      %4632 = vrot.lane.b32.xlu0 %v4559, 96
      %v4633 = vpop.permute.xlu0 %4632
      %4638 = vrot.lane.b32.xlu0 %v4425, 32
      %v4639 = vpop.permute.xlu0 %4638
      %4640 = vrot.lane.b32.xlu0 %v4561, 32
      %v4641 = vpop.permute.xlu0 %4640
      %4646 = vrot.lane.b32.xlu0 %v4426, 64
      %v4647 = vpop.permute.xlu0 %4646
      %4648 = vrot.lane.b32.xlu0 %v4562, 64
      %v4649 = vpop.permute.xlu0 %4648
      %4654 = vrot.lane.b32.xlu0 %v4427, 96
      %v4655 = vpop.permute.xlu0 %4654
      %4656 = vrot.lane.b32.xlu0 %v4563, 96
      %v4657 = vpop.permute.xlu0 %4656
      %v4660 = vsel %vm2629, %v4148, %v4567
      %v4661 = vsel %vm2629, %v4284, %v4569
      %vm4662 = vcmask 523264
      %v4663 = vsel %vm4662, %v4660, %v4575
      %v4664 = vsel %vm4662, %v4661, %v4577
      %vm4665 = vcmask 785408
      %v4666 = vsel %vm4665, %v4663, %v4583
      %v4667 = vsel %vm4665, %v4664, %v4585
      %v4668 = vsel %vm2629, %v4152, %v4591
      %v4669 = vsel %vm2629, %v4288, %v4593
      %v4670 = vsel %vm4662, %v4668, %v4599
      %v4671 = vsel %vm4662, %v4669, %v4601
      %v4672 = vsel %vm4665, %v4670, %v4607
      %v4673 = vsel %vm4665, %v4671, %v4609
      %v4674 = vsel %vm2629, %v4420, %v4615
      %v4675 = vsel %vm2629, %v4556, %v4617
      %v4676 = vsel %vm4662, %v4674, %v4623
      %v4677 = vsel %vm4662, %v4675, %v4625
      %v4678 = vsel %vm4665, %v4676, %v4631
      %v4679 = vsel %vm4665, %v4677, %v4633
      %v4680 = vsel %vm2629, %v4424, %v4639
      %v4681 = vsel %vm2629, %v4560, %v4641
      %v4682 = vsel %vm4662, %v4680, %v4647
      %v4683 = vsel %vm4662, %v4681, %v4649
      %v4684 = vsel %vm4665, %v4682, %v4655
      %v4685 = vsel %vm4665, %v4683, %v4657
      %4686 = vst [vmem:[%s796] sm:$0xff] %v4666
      %4687 = vst [vmem:[%s796 + $0x8] sm:$0xff] %v4672
      %4688 = vst [vmem:[%s796 + $0x10] sm:$0xff] %v4678
      %4689 = vst [vmem:[%s796 + $0x18] sm:$0xff] %v4684
      %4690 = vst [vmem:[%s796 + $0x20] sm:$0xff] %v4667
      %4691 = vst [vmem:[%s796 + $0x28] sm:$0xff] %v4673
      %4692 = vst [vmem:[%s796 + $0x30] sm:$0xff] %v4679
      %4693 = vst [vmem:[%s796 + $0x38] sm:$0xff] %v4685
      %s4694 = smul.u32 2, %s33
      %s4695 = smul.u32 4, %s34
      %p4696 = scmp.lt.s32.totalorder %s35, 1
      %s4697 = scalar_select %p4696, %s35, 1
      %p4698 = scmp.lt.s32.totalorder %s4694, 1
      %s4699 = scalar_select %p4698, %s4694, 1
      %p4700 = scmp.lt.s32.totalorder %s4695, 3
      %s4701 = scalar_select %p4700, %s4695, 3
      %s4702 = smul.addr %s4699, 4
      %s4703 = sadd.s32 %s4701, %s4702
      %s4704 = smul.addr %s4697, 8
      %s4705 = sadd.s32 %s4703, %s4704
      %s4706 = smul.addr %s4705, 8
      %s4707 = scalar_lea.vmem %s17, %s4706
      // Predicated region
      $region89: #{full_edge_feature_net.1} parent=87 // pred_check
        %p4708 = pneg %p473
      $region90: #{full_edge_feature_net.1} parent=87 // pred_check_branch
        %4710 = sbr.rel (%p4708) target = $region92
      $region91: #{full_edge_feature_net.1} parent=87 // pred_region
        %s4711 = smul.u32 2, %s33
        %s4712 = smul.u32 4, %s34
      $region92: #{full_edge_feature_net.1} parent=87 // pred_fallthru
        _
    $region88: #{full_edge_feature_net.1} parent=5 // pred_fallthru
      _
    %p4713 = scmp.le.s32.totalorder 2, %s23
    // Predicated region
    $region93: #{full_edge_feature_net.1} parent=5 // pred_check
      %p4714 = pneg %p4713
    $region94: #{full_edge_feature_net.1} parent=5 // pred_check_branch
      %4716 = sbr.rel (%p4714) target = $region96
    $region95: #{full_edge_feature_net.1} parent=5 // pred_region
      %s4717 = ssub.s32 %s23, 2
      // Predicated region
      $region97: #{full_edge_feature_net.1} parent=95 // pred_check
        %p4718 = pneg %p479
      $region98: #{full_edge_feature_net.1} parent=95 // pred_check_branch
        %4720 = sbr.rel (%p4718) target = $region100
      $region99: #{full_edge_feature_net.1} parent=95 // pred_region
        %s4721 = smul.u32 2, %s36
        %s4722 = smul.u32 4, %s37
        %p4723 = scmp.lt.s32.totalorder %s38, 1
        %s4724 = scalar_select %p4723, %s38, 1
        %p4725 = scmp.lt.s32.totalorder %s4721, 1
        %s4726 = scalar_select %p4725, %s4721, 1
        %p4727 = scmp.lt.s32.totalorder %s4722, 3
        %s4728 = scalar_select %p4727, %s4722, 3
        %s4729 = smul.addr %s4726, 4
        %s4730 = sadd.s32 %s4728, %s4729
        %s4731 = smul.addr %s4724, 8
        %s4732 = sadd.s32 %s4730, %s4731
        %s4733 = smul.addr %s4732, 8
        %s4734 = scalar_lea.vmem %s17, %s4733
      $region100: #{full_edge_feature_net.1} parent=95 // pred_fallthru
        _
    $region96: #{full_edge_feature_net.1} parent=5 // pred_fallthru
      _
  $region6: #{full_edge_feature_net.1} parent=0 // loop_footer
    %s27 = sadd.s32 1, %s23
  $region7: #{full_edge_feature_net.1} parent=0 // loop_footer_branch
    %22 = sbr.rel target = $region3
  $region8: #{full_edge_feature_net.1} parent=0 // loop_exit
    _

</llo_original>
